<compile_context>
chip_gen: v5e
topology: v5e:2x2
jax: 0.10.0
libtpu: 0.0.40
codegen_flags: <defaults>
</compile_context>

<pallas_src>
import functools

import jax
import jax.numpy as jnp
from jax import lax
from jax.experimental import pallas as pl
from jax.experimental.pallas import tpu as pltpu

IN_FEATURES = 2048    # inception_v3 fc.in_features
NUM_CLASSES = 4
NUM_HEADS = 4
HEAD_HIDDEN1 = 1024
HEAD_HIDDEN2 = 512
PAD_OUT = 128         # lane-dense padded logits width (>= NUM_CLASSES)
KPATCH = 32           # 3x3x3 = 27 patch taps, padded to a lane-friendly 32
TF_CONV = 512         # F tile of the conv+GAP kernel
TK_HEAD = 512         # K tile of the head kernel's 2048 -> 1024 matmul


# --------------------------------------------------------------------------
# Kernel 1: single K=32 contraction (im2col-lite built in wrapper) + bias +
#           ReLU + global-average-pool accumulated into a (1, TF) scratch.
# grid = (batch, F tiles, M tiles); M (spatial) is the reduction axis.
# --------------------------------------------------------------------------
def _conv_gap_kernel(x_ref, w_ref, b_ref, o_ref, acc_ref,
                     *, hw, tm, inv_hw, need_mask):
    # x_ref: (1, tm, 32) bf16 im2col rows for one sample / spatial tile
    # w_ref: (32, tf)    bf16 conv weights for this F tile
    # b_ref: (1, tf)     f32 conv bias for this F tile
    # o_ref: (1, 1, tf)  bf16 pooled features for (sample, F tile)
    # acc_ref: (1, tf)   f32 running pooled sum
    mi = pl.program_id(2)

    @pl.when(mi == 0)
    def _init():
        acc_ref[...] = jnp.zeros_like(acc_ref)

    # One lane-dense MXU contraction per step (replaces 9 K=3 dots).
    y = jnp.dot(x_ref[0], w_ref[...], preferred_element_type=jnp.float32)
    y = jnp.maximum(y + b_ref[...], 0.0)                 # bias + ReLU, (tm, tf)
    if need_mask:                                        # zero padded rows
        rows = mi * tm + lax.broadcasted_iota(jnp.int32, (tm, 1), 0)
        y = jnp.where(rows < hw, y, 0.0)
    acc_ref[...] += jnp.sum(y, axis=0, keepdims=True)    # pooled sum

    @pl.when(mi == pl.num_programs(2) - 1)
    def _finalize():
        o_ref[0] = (acc_ref[...] * inv_hw).astype(o_ref.dtype)


def _im2col_3x3_same(x_nchw):
    """(B, C, H, W) -> SAME-padded 3x3 patches (B, H*W, 9*C), f32."""
    b, c, h, w = x_nchw.shape
    x_pad = jnp.pad(x_nchw.transpose(0, 2, 3, 1),
                    ((0, 0), (1, 1), (1, 1), (0, 0)))    # (B, H+2, W+2, C)
    slices = [x_pad[:, di:di + h, dj:dj + w, :]
              for di in range(3) for dj in range(3)]
    patches = jnp.concatenate(slices, axis=-1)           # (B, H, W, 9*C)
    return patches.reshape(b, h * w, 9 * c)


def backbone_features(x_nchw, conv_w, conv_b):
    """x: (B, 3, H, W) NCHW -> pooled features (B, IN_FEATURES) bf16."""
    b, c, h, w = x_nchw.shape
    hw = h * w
    f = IN_FEATURES
    k = 9 * c
    assert k <= KPATCH

    # Spatial tile: one M step for small images, otherwise 512-row strips
    # (post-dot slab bounded to (tm, tf) f32 = 1 MB).
    tm = min(512, ((hw + 7) // 8) * 8)
    n_m = pl.cdiv(hw, tm)
    hw_pad = n_m * tm
    need_mask = hw_pad != hw
    tf = min(TF_CONV, f)
    n_f = f // tf

    # im2col-lite built once in the wrapper, bf16, lane-dense patch axis.
    patches = _im2col_3x3_same(x_nchw)
    patches = jnp.pad(patches, ((0, 0), (0, hw_pad - hw), (0, KPATCH - k)))
    patches = patches.astype(jnp.bfloat16)               # (B, HWpad, 32)

    # (F, C, 3, 3) -> (27, F) in (di, dj, ci) row order, padded to (32, F).
    w_mat = conv_w.transpose(2, 3, 1, 0).reshape(k, f)
    w_mat = jnp.pad(w_mat, ((0, KPATCH - k), (0, 0))).astype(jnp.bfloat16)
    b_row = conv_b.reshape(1, f).astype(jnp.float32)

    cost = pl.CostEstimate(
        flops=2 * b * hw_pad * KPATCH * f,
        transcendentals=0,
        bytes_accessed=int(patches.size * 2 * n_f + w_mat.size * 2 * b
                           + f * 4 + b * f * 2))

    kernel = functools.partial(_conv_gap_kernel, hw=hw, tm=tm,
                               inv_hw=1.0 / float(hw), need_mask=need_mask)
    out = pl.pallas_call(
        kernel,
        out_shape=jax.ShapeDtypeStruct((b, 1, f), jnp.bfloat16),
        grid=(b, n_f, n_m),
        in_specs=[
            pl.BlockSpec((1, tm, KPATCH), lambda bi, fi, mi: (bi, 0, mi)),
            pl.BlockSpec((KPATCH, tf), lambda bi, fi, mi: (0, fi)),
            pl.BlockSpec((1, tf), lambda bi, fi, mi: (0, fi)),
        ],
        out_specs=pl.BlockSpec((1, 1, tf), lambda bi, fi, mi: (bi, 0, fi)),
        scratch_shapes=[pltpu.VMEM((1, tf), jnp.float32)],
        compiler_params=pltpu.CompilerParams(
            dimension_semantics=("parallel", "parallel", "arbitrary"),
            vmem_limit_bytes=16 << 20),
        cost_estimate=cost,
    )(patches, w_mat, b_row)
    return out.reshape(b, f)


# --------------------------------------------------------------------------
# Kernel 2: fused task head  Linear->ReLU->Linear->ReLU->Linear
# grid = (heads, K tiles of the 2048->1024 layer).  K-tiling the first layer
# hides the w1 streaming warm-up; layers 2/3 run on the last K step.
# --------------------------------------------------------------------------
def _task_head_kernel(x_ref, w1_ref, b1_ref, w2_ref, b2_ref, w3_ref, b3_ref,
                      o_ref, h1_acc):
    ki = pl.program_id(1)

    @pl.when(ki == 0)
    def _init():
        h1_acc[...] = jnp.zeros_like(h1_acc)

    # K-tiled first layer: start the matmul as soon as the first slab lands.
    h1_acc[...] += jnp.dot(x_ref[...], w1_ref[0],
                           preferred_element_type=jnp.float32)

    @pl.when(ki == pl.num_programs(1) - 1)
    def _finalize():
        h1 = jnp.maximum(h1_acc[...] + b1_ref[0], 0.0).astype(jnp.bfloat16)
        h2 = jnp.dot(h1, w2_ref[0],
                     preferred_element_type=jnp.float32) + b2_ref[0]
        h2 = jnp.maximum(h2, 0.0).astype(jnp.bfloat16)
        o_ref[0] = (jnp.dot(h2, w3_ref[0],
                            preferred_element_type=jnp.float32) + b3_ref[0])


def task_heads(features, head_params):
    """features: (B, IN_FEATURES) -> logits (NUM_HEADS, B, NUM_CLASSES)."""
    b = features.shape[0]
    w1, b1, w2, b2, w3, b3 = head_params
    w1 = w1.astype(jnp.bfloat16)
    w2 = w2.astype(jnp.bfloat16)
    # Pad the final layer to a lane-dense PAD_OUT-wide slab (unmasked stores).
    w3p = jnp.zeros((NUM_HEADS, HEAD_HIDDEN2, PAD_OUT), jnp.bfloat16)
    w3p = w3p.at[:, :, :NUM_CLASSES].set(w3.astype(jnp.bfloat16))
    b3p = jnp.zeros((NUM_HEADS, 1, PAD_OUT), jnp.float32)
    b3p = b3p.at[:, :, :NUM_CLASSES].set(b3)
    features = features.astype(jnp.bfloat16)

    n_k = IN_FEATURES // TK_HEAD

    cost = pl.CostEstimate(
        flops=2 * NUM_HEADS * b * (IN_FEATURES * HEAD_HIDDEN1
                                   + HEAD_HIDDEN1 * HEAD_HIDDEN2
                                   + HEAD_HIDDEN2 * PAD_OUT),
        transcendentals=0,
        bytes_accessed=int(NUM_HEADS * b * IN_FEATURES * 2
                           + w1.size * 2 + b1.size * 4
                           + w2.size * 2 + b2.size * 4
                           + w3p.size * 2 + b3p.size * 4
                           + NUM_HEADS * b * PAD_OUT * 4))

    out = pl.pallas_call(
        _task_head_kernel,
        out_shape=jax.ShapeDtypeStruct((NUM_HEADS, b, PAD_OUT), jnp.float32),
        grid=(NUM_HEADS, n_k),
        in_specs=[
            pl.BlockSpec((b, TK_HEAD), lambda hh, ki: (0, ki)),
            pl.BlockSpec((1, TK_HEAD, HEAD_HIDDEN1), lambda hh, ki: (hh, ki, 0)),
            pl.BlockSpec((1, 1, HEAD_HIDDEN1), lambda hh, ki: (hh, 0, 0)),
            pl.BlockSpec((1, HEAD_HIDDEN1, HEAD_HIDDEN2), lambda hh, ki: (hh, 0, 0)),
            pl.BlockSpec((1, 1, HEAD_HIDDEN2), lambda hh, ki: (hh, 0, 0)),
            pl.BlockSpec((1, HEAD_HIDDEN2, PAD_OUT), lambda hh, ki: (hh, 0, 0)),
            pl.BlockSpec((1, 1, PAD_OUT), lambda hh, ki: (hh, 0, 0)),
        ],
        out_specs=pl.BlockSpec((1, b, PAD_OUT), lambda hh, ki: (hh, 0, 0)),
        scratch_shapes=[pltpu.VMEM((b, HEAD_HIDDEN1), jnp.float32)],
        compiler_params=pltpu.CompilerParams(
            dimension_semantics=("parallel", "arbitrary"),
            vmem_limit_bytes=24 << 20),   # ~5 MB working set; v7x headroom ok
        cost_estimate=cost,
    )(features, w1, b1, w2, b2, w3p, b3p)
    return out[:, :, :NUM_CLASSES]


# --------------------------------------------------------------------------
# Parameter init (deterministic, synthetic), full forward, pure-JAX reference
# --------------------------------------------------------------------------
def init_params(key):
    ks = jax.random.split(key, 8)

    def dense_init(k, fan_in, shape):
        return (jax.random.normal(k, shape, jnp.float32)
                * (1.0 / jnp.sqrt(fan_in)))

    conv_w = dense_init(ks[0], 3 * 9, (IN_FEATURES, 3, 3, 3))   # (F, C, kh, kw)
    conv_b = jnp.zeros((IN_FEATURES,), jnp.float32)

    # Task-head weights stored as (in, out): x @ W + b (== PyTorch x @ W.T + b).
    w1 = dense_init(ks[1], IN_FEATURES, (NUM_HEADS, IN_FEATURES, HEAD_HIDDEN1))
    b1 = dense_init(ks[2], IN_FEATURES, (NUM_HEADS, 1, HEAD_HIDDEN1))
    w2 = dense_init(ks[3], HEAD_HIDDEN1, (NUM_HEADS, HEAD_HIDDEN1, HEAD_HIDDEN2))
    b2 = dense_init(ks[4], HEAD_HIDDEN1, (NUM_HEADS, 1, HEAD_HIDDEN2))
    w3 = dense_init(ks[5], HEAD_HIDDEN2, (NUM_HEADS, HEAD_HIDDEN2, NUM_CLASSES))
    b3 = dense_init(ks[6], HEAD_HIDDEN2, (NUM_HEADS, 1, NUM_CLASSES))
    return conv_w, conv_b, (w1, b1, w2, b2, w3, b3)


@jax.jit
def inception_v3_multitask_forward(x, conv_w, conv_b, head_params):
    """x: (B, 3, H, W) NCHW -> (NUM_HEADS, B, NUM_CLASSES) logits."""
    feats = backbone_features(x, conv_w, conv_b)        # (B, 2048) bf16
    return task_heads(feats, head_params)               # (4, B, 4) f32


def reference_forward(x, conv_w, conv_b, head_params):
    """Pure-JAX f32 reference of the same forward (for correctness check)."""
    b, c, h, w = x.shape
    patches = _im2col_3x3_same(x)                                   # (B, HW, 27)
    w_mat = conv_w.transpose(2, 3, 1, 0).reshape(9 * c, IN_FEATURES)
    y = jnp.maximum(jnp.einsum('bpk,kf->bpf', patches, w_mat) + conv_b, 0.0)
    feats = jnp.mean(y, axis=1)                                     # (B, 2048)
    w1, b1, w2, b2, w3, b3 = head_params
    outs = []
    for hh in range(NUM_HEADS):
        h1 = jnp.maximum(feats @ w1[hh] + b1[hh], 0.0)
        h2 = jnp.maximum(h1 @ w2[hh] + b2[hh], 0.0)
        outs.append(h2 @ w3[hh] + b3[hh])
    return jnp.stack(outs, axis=0)                                  # (4, B, 4)


if __name__ == "__main__":
    key = jax.random.PRNGKey(0)
    k_x, k_p = jax.random.split(key)

    # Small shapes consistent with the module's (B, 3, H, W) input contract.
    x = jax.random.normal(k_x, (2, 3, 16, 16), dtype=jnp.float32)
    conv_w, conv_b, head_params = init_params(k_p)

    logits = inception_v3_multitask_forward(x, conv_w, conv_b, head_params)
    logits = jax.block_until_ready(logits)

    # Mirror the PyTorch module's return type: a list of 4 (B, num_classes).
    outputs = [logits[i] for i in range(NUM_HEADS)]
    assert len(outputs) == NUM_HEADS
    assert all(o.shape == (2, NUM_CLASSES) for o in outputs)
    assert all(bool(jnp.isfinite(o).all()) for o in outputs)

    # Numerical check vs pure-JAX f32 reference (bf16 streaming => loose tol).
    ref = reference_forward(x, conv_w, conv_b, head_params)
    max_diff = float(jnp.max(jnp.abs(logits - ref)))
    assert max_diff < 1e-1, f"max |pallas - ref| = {max_diff}"
    print("KERNEL_OK")
</pallas_src>

<mosaic_0001>
module attributes {stable_mosaic.version = 11 : i64} {
  func.func @_conv_gap_kernel(%arg0: i32, %arg1: i32, %arg2: i32, %arg3: memref<1x256x32xbf16, #tpu.memory_space<vmem>>, %arg4: memref<32x512xbf16, #tpu.memory_space<vmem>>, %arg5: memref<1x512xf32, #tpu.memory_space<vmem>>, %arg6: memref<1x1x512xbf16, #tpu.memory_space<vmem>>, %arg7: memref<1x512xf32, #tpu.memory_space<vmem>>) attributes {dimension_semantics = [#tpu.dimension_semantics<parallel>, #tpu.dimension_semantics<parallel>, #tpu.dimension_semantics<arbitrary>], iteration_bounds = array<i64: 2, 4, 1>, scalar_prefetch = 0 : i64, scratch_operands = 1 : i64, tpu.core_type = #tpu.core_type<tc>, window_params = [{transform_indices = @transform_0, window_bounds = array<i64: 1, 256, 32>}, {transform_indices = @transform_1, window_bounds = array<i64: 32, 512>}, {transform_indices = @transform_2, window_bounds = array<i64: 1, 512>}, {transform_indices = @transform_3, window_bounds = array<i64: 1, 1, 512>}]} {
    %c0_i32 = arith.constant 0 : i32
    %0 = arith.cmpi eq, %arg2, %c0_i32 : i32
    %1 = arith.extui %0 : i1 to i32
    %c0_i32_0 = arith.constant 0 : i32
    %2 = arith.cmpi ne, %1, %c0_i32_0 : i32
    scf.if %2 {
      %cst_15 = arith.constant 0.000000e+00 : f32
      %20 = vector.broadcast %cst_15 : f32 to vector<1x512xf32>
      %c0_16 = arith.constant 0 : index
      %c0_17 = arith.constant 0 : index
      %21 = vector.load %arg7[%c0_16, %c0_17] : memref<1x512xf32, #tpu.memory_space<vmem>>, vector<1x512xf32>
      tpu.vector_store %arg7[%c0_16, %c0_17], %20 {strides = array<i32>} : memref<1x512xf32, #tpu.memory_space<vmem>>, vector<1x512xf32>,
    } else {
    }
    %c0 = arith.constant 0 : index
    %c0_1 = arith.constant 0 : index
    %c0_2 = arith.constant 0 : index
    %3 = vector.load %arg3[%c0, %c0_1, %c0_2] : memref<1x256x32xbf16, #tpu.memory_space<vmem>>, vector<1x256x32xbf16>
    %4 = vector.shape_cast %3 : vector<1x256x32xbf16> to vector<256x32xbf16>
    %c0_3 = arith.constant 0 : index
    %c0_4 = arith.constant 0 : index
    %5 = vector.load %arg4[%c0_3, %c0_4] : memref<32x512xbf16, #tpu.memory_space<vmem>>, vector<32x512xbf16>
    %cst = arith.constant dense<0.000000e+00> : vector<256x512xf32>
    %6 = tpu.matmul %4, %5, %cst {dimension_numbers = #tpu.dot_dimension_numbers<[1], [0], [0], [1], [0, 0, 1, 1], [], []>} : vector<256x32xbf16>, vector<32x512xbf16>, vector<256x512xf32> -> vector<256x512xf32>
    %c0_5 = arith.constant 0 : index
    %c0_6 = arith.constant 0 : index
    %7 = vector.load %arg5[%c0_5, %c0_6] : memref<1x512xf32, #tpu.memory_space<vmem>>, vector<1x512xf32>
    %8 = vector.broadcast %7 : vector<1x512xf32> to vector<256x512xf32>
    %9 = arith.addf %6, %8 : vector<256x512xf32>
    %cst_7 = arith.constant 0.000000e+00 : f32
    %10 = vector.broadcast %cst_7 : f32 to vector<256x512xf32>
    %11 = arith.maximumf %9, %10 : vector<256x512xf32>
    %c0_8 = arith.constant 0 : index
    %c0_9 = arith.constant 0 : index
    %12 = vector.load %arg7[%c0_8, %c0_9] : memref<1x512xf32, #tpu.memory_space<vmem>>, vector<1x512xf32>
    %cst_10 = arith.constant dense<0.000000e+00> : vector<512xf32>
    %13 = vector.multi_reduction <add>, %11, %cst_10 [0] : vector<256x512xf32> to vector<512xf32>
    %14 = vector.shape_cast %13 : vector<512xf32> to vector<1x512xf32>
    %15 = arith.addf %12, %14 : vector<1x512xf32>
    %c0_11 = arith.constant 0 : index
    %c0_12 = arith.constant 0 : index
    %16 = vector.load %arg7[%c0_11, %c0_12] : memref<1x512xf32, #tpu.memory_space<vmem>>, vector<1x512xf32>
    tpu.vector_store %arg7[%c0_11, %c0_12], %15 {strides = array<i32>} : memref<1x512xf32, #tpu.memory_space<vmem>>, vector<1x512xf32>,
    %c0_i32_13 = arith.constant 0 : i32
    %17 = arith.cmpi eq, %arg2, %c0_i32_13 : i32
    %18 = arith.extui %17 : i1 to i32
    %c0_i32_14 = arith.constant 0 : i32
    %19 = arith.cmpi ne, %18, %c0_i32_14 : i32
    scf.if %19 {
      %c0_15 = arith.constant 0 : index
      %c0_16 = arith.constant 0 : index
      %20 = vector.load %arg7[%c0_15, %c0_16] : memref<1x512xf32, #tpu.memory_space<vmem>>, vector<1x512xf32>
      %cst_17 = arith.constant 3.906250e-03 : f32
      %21 = vector.broadcast %cst_17 : f32 to vector<1x512xf32>
      %22 = arith.mulf %20, %21 : vector<1x512xf32>
      %23 = arith.truncf %22 : vector<1x512xf32> to vector<1x512xbf16>
      %c0_18 = arith.constant 0 : index
      %c0_19 = arith.constant 0 : index
      %c0_20 = arith.constant 0 : index
      %24 = vector.load %arg6[%c0_18, %c0_19, %c0_20] : memref<1x1x512xbf16, #tpu.memory_space<vmem>>, vector<1x1x512xbf16>
      %25 = vector.shape_cast %24 : vector<1x1x512xbf16> to vector<1x512xbf16>
      %26 = vector.shape_cast %23 : vector<1x512xbf16> to vector<1x1x512xbf16>
      tpu.vector_store %arg6[%c0_18, %c0_19, %c0_20], %26 {strides = array<i32>} : memref<1x1x512xbf16, #tpu.memory_space<vmem>>, vector<1x1x512xbf16>,
    } else {
    }
    return
  }
  func.func @transform_0(%arg0: i32, %arg1: i32, %arg2: i32) -> (i32, i32, i32) {
    %c0_i32 = arith.constant 0 : i32
    %c0_i32_0 = arith.constant 0 : i32
    return %arg0, %c0_i32, %arg2 : i32, i32, i32
  }
  func.func @transform_1(%arg0: i32, %arg1: i32, %arg2: i32) -> (i32, i32) {
    %c0_i32 = arith.constant 0 : i32
    %c0_i32_0 = arith.constant 0 : i32
    return %c0_i32, %arg1 : i32, i32
  }
  func.func @transform_2(%arg0: i32, %arg1: i32, %arg2: i32) -> (i32, i32) {
    %c0_i32 = arith.constant 0 : i32
    %c0_i32_0 = arith.constant 0 : i32
    return %c0_i32, %arg1 : i32, i32
  }
  func.func @transform_3(%arg0: i32, %arg1: i32, %arg2: i32) -> (i32, i32, i32) {
    %c0_i32 = arith.constant 0 : i32
    %c0_i32_0 = arith.constant 0 : i32
    return %arg0, %c0_i32, %arg1 : i32, i32, i32
  }
}

module attributes {stable_mosaic.version = 11 : i64} {
  func.func @_task_head_kernel(%arg0: i32, %arg1: i32, %arg2: memref<2x512xbf16, #tpu.memory_space<vmem>>, %arg3: memref<1x512x1024xbf16, #tpu.memory_space<vmem>>, %arg4: memref<1x1x1024xf32, #tpu.memory_space<vmem>>, %arg5: memref<1x1024x512xbf16, #tpu.memory_space<vmem>>, %arg6: memref<1x1x512xf32, #tpu.memory_space<vmem>>, %arg7: memref<1x512x128xbf16, #tpu.memory_space<vmem>>, %arg8: memref<1x1x128xf32, #tpu.memory_space<vmem>>, %arg9: memref<1x2x128xf32, #tpu.memory_space<vmem>>, %arg10: memref<2x1024xf32, #tpu.memory_space<vmem>>) attributes {dimension_semantics = [#tpu.dimension_semantics<parallel>, #tpu.dimension_semantics<arbitrary>], iteration_bounds = array<i64: 4, 4>, scalar_prefetch = 0 : i64, scratch_operands = 1 : i64, tpu.core_type = #tpu.core_type<tc>, window_params = [{transform_indices = @transform_0, window_bounds = array<i64: 2, 512>}, {transform_indices = @transform_1, window_bounds = array<i64: 1, 512, 1024>}, {transform_indices = @transform_2, window_bounds = array<i64: 1, 1, 1024>}, {transform_indices = @transform_3, window_bounds = array<i64: 1, 1024, 512>}, {transform_indices = @transform_4, window_bounds = array<i64: 1, 1, 512>}, {transform_indices = @transform_5, window_bounds = array<i64: 1, 512, 128>}, {transform_indices = @transform_6, window_bounds = array<i64: 1, 1, 128>}, {transform_indices = @transform_7, window_bounds = array<i64: 1, 2, 128>}]} {
    %c0_i32 = arith.constant 0 : i32
    %0 = arith.cmpi eq, %arg1, %c0_i32 : i32
    %1 = arith.extui %0 : i1 to i32
    %c0_i32_0 = arith.constant 0 : i32
    %2 = arith.cmpi ne, %1, %c0_i32_0 : i32
    scf.if %2 {
      %cst_10 = arith.constant 0.000000e+00 : f32
      %13 = vector.broadcast %cst_10 : f32 to vector<2x1024xf32>
      %c0_11 = arith.constant 0 : index
      %c0_12 = arith.constant 0 : index
      %14 = vector.load %arg10[%c0_11, %c0_12] : memref<2x1024xf32, #tpu.memory_space<vmem>>, vector<2x1024xf32>
      tpu.vector_store %arg10[%c0_11, %c0_12], %13 {strides = array<i32>} : memref<2x1024xf32, #tpu.memory_space<vmem>>, vector<2x1024xf32>,
    } else {
    }
    %c0 = arith.constant 0 : index
    %c0_1 = arith.constant 0 : index
    %3 = vector.load %arg10[%c0, %c0_1] : memref<2x1024xf32, #tpu.memory_space<vmem>>, vector<2x1024xf32>
    %c0_2 = arith.constant 0 : index
    %c0_3 = arith.constant 0 : index
    %4 = vector.load %arg2[%c0_2, %c0_3] : memref<2x512xbf16, #tpu.memory_space<vmem>>, vector<2x512xbf16>
    %c0_4 = arith.constant 0 : index
    %c0_5 = arith.constant 0 : index
    %c0_6 = arith.constant 0 : index
    %5 = vector.load %arg3[%c0_4, %c0_5, %c0_6] : memref<1x512x1024xbf16, #tpu.memory_space<vmem>>, vector<1x512x1024xbf16>
    %6 = vector.shape_cast %5 : vector<1x512x1024xbf16> to vector<512x1024xbf16>
    %cst = arith.constant dense<0.000000e+00> : vector<2x1024xf32>
    %7 = tpu.matmul %4, %6, %cst {dimension_numbers = #tpu.dot_dimension_numbers<[1], [0], [0], [1], [0, 0, 1, 1], [], []>} : vector<2x512xbf16>, vector<512x1024xbf16>, vector<2x1024xf32> -> vector<2x1024xf32>
    %8 = arith.addf %3, %7 : vector<2x1024xf32>
    %c0_7 = arith.constant 0 : index
    %c0_8 = arith.constant 0 : index
    %9 = vector.load %arg10[%c0_7, %c0_8] : memref<2x1024xf32, #tpu.memory_space<vmem>>, vector<2x1024xf32>
    tpu.vector_store %arg10[%c0_7, %c0_8], %8 {strides = array<i32>} : memref<2x1024xf32, #tpu.memory_space<vmem>>, vector<2x1024xf32>,
    %c3_i32 = arith.constant 3 : i32
    %10 = arith.cmpi eq, %arg1, %c3_i32 : i32
    %11 = arith.extui %10 : i1 to i32
    %c0_i32_9 = arith.constant 0 : i32
    %12 = arith.cmpi ne, %11, %c0_i32_9 : i32
    scf.if %12 {
      %c0_10 = arith.constant 0 : index
      %c0_11 = arith.constant 0 : index
      %13 = vector.load %arg10[%c0_10, %c0_11] : memref<2x1024xf32, #tpu.memory_space<vmem>>, vector<2x1024xf32>
      %c0_12 = arith.constant 0 : index
      %c0_13 = arith.constant 0 : index
      %c0_14 = arith.constant 0 : index
      %14 = vector.load %arg4[%c0_12, %c0_13, %c0_14] : memref<1x1x1024xf32, #tpu.memory_space<vmem>>, vector<1x1x1024xf32>
      %15 = vector.shape_cast %14 : vector<1x1x1024xf32> to vector<1x1024xf32>
      %16 = vector.broadcast %15 : vector<1x1024xf32> to vector<2x1024xf32>
      %17 = arith.addf %13, %16 : vector<2x1024xf32>
      %cst_15 = arith.constant 0.000000e+00 : f32
      %18 = vector.broadcast %cst_15 : f32 to vector<2x1024xf32>
      %19 = arith.maximumf %17, %18 : vector<2x1024xf32>
      %20 = arith.truncf %19 : vector<2x1024xf32> to vector<2x1024xbf16>
      %c0_16 = arith.constant 0 : index
      %c0_17 = arith.constant 0 : index
      %c0_18 = arith.constant 0 : index
      %21 = vector.load %arg5[%c0_16, %c0_17, %c0_18] : memref<1x1024x512xbf16, #tpu.memory_space<vmem>>, vector<1x1024x512xbf16>
      %22 = vector.shape_cast %21 : vector<1x1024x512xbf16> to vector<1024x512xbf16>
      %cst_19 = arith.constant dense<0.000000e+00> : vector<2x512xf32>
      %23 = tpu.matmul %20, %22, %cst_19 {dimension_numbers = #tpu.dot_dimension_numbers<[1], [0], [0], [1], [0, 0, 1, 1], [], []>} : vector<2x1024xbf16>, vector<1024x512xbf16>, vector<2x512xf32> -> vector<2x512xf32>
      %c0_20 = arith.constant 0 : index
      %c0_21 = arith.constant 0 : index
      %c0_22 = arith.constant 0 : index
      %24 = vector.load %arg6[%c0_20, %c0_21, %c0_22] : memref<1x1x512xf32, #tpu.memory_space<vmem>>, vector<1x1x512xf32>
      %25 = vector.shape_cast %24 : vector<1x1x512xf32> to vector<1x512xf32>
      %26 = vector.broadcast %25 : vector<1x512xf32> to vector<2x512xf32>
      %27 = arith.addf %23, %26 : vector<2x512xf32>
      %cst_23 = arith.constant 0.000000e+00 : f32
      %28 = vector.broadcast %cst_23 : f32 to vector<2x512xf32>
      %29 = arith.maximumf %27, %28 : vector<2x512xf32>
      %30 = arith.truncf %29 : vector<2x512xf32> to vector<2x512xbf16>
      %c0_24 = arith.constant 0 : index
      %c0_25 = arith.constant 0 : index
      %c0_26 = arith.constant 0 : index
      %31 = vector.load %arg7[%c0_24, %c0_25, %c0_26] : memref<1x512x128xbf16, #tpu.memory_space<vmem>>, vector<1x512x128xbf16>
      %32 = vector.shape_cast %31 : vector<1x512x128xbf16> to vector<512x128xbf16>
      %cst_27 = arith.constant dense<0.000000e+00> : vector<2x128xf32>
      %33 = tpu.matmul %30, %32, %cst_27 {dimension_numbers = #tpu.dot_dimension_numbers<[1], [0], [0], [1], [0, 0, 1, 1], [], []>} : vector<2x512xbf16>, vector<512x128xbf16>, vector<2x128xf32> -> vector<2x128xf32>
      %c0_28 = arith.constant 0 : index
      %c0_29 = arith.constant 0 : index
      %c0_30 = arith.constant 0 : index
      %34 = vector.load %arg8[%c0_28, %c0_29, %c0_30] : memref<1x1x128xf32, #tpu.memory_space<vmem>>, vector<1x1x128xf32>
      %35 = vector.shape_cast %34 : vector<1x1x128xf32> to vector<1x128xf32>
      %36 = vector.broadcast %35 : vector<1x128xf32> to vector<2x128xf32>
      %37 = arith.addf %33, %36 : vector<2x128xf32>
      %c0_31 = arith.constant 0 : index
      %c0_32 = arith.constant 0 : index
      %c0_33 = arith.constant 0 : index
      %38 = vector.load %arg9[%c0_31, %c0_32, %c0_33] : memref<1x2x128xf32, #tpu.memory_space<vmem>>, vector<1x2x128xf32>
      %39 = vector.shape_cast %38 : vector<1x2x128xf32> to vector<2x128xf32>
      %40 = vector.shape_cast %37 : vector<2x128xf32> to vector<1x2x128xf32>
      tpu.vector_store %arg9[%c0_31, %c0_32, %c0_33], %40 {strides = array<i32>} : memref<1x2x128xf32, #tpu.memory_space<vmem>>, vector<1x2x128xf32>,
    } else {
    }
    return
  }
  func.func @transform_0(%arg0: i32, %arg1: i32) -> (i32, i32) {
    %c0_i32 = arith.constant 0 : i32
    %c0_i32_0 = arith.constant 0 : i32
    return %c0_i32, %arg1 : i32, i32
  }
  func.func @transform_1(%arg0: i32, %arg1: i32) -> (i32, i32, i32) {
    %c0_i32 = arith.constant 0 : i32
    %c0_i32_0 = arith.constant 0 : i32
    return %arg0, %arg1, %c0_i32 : i32, i32, i32
  }
  func.func @transform_2(%arg0: i32, %arg1: i32) -> (i32, i32, i32) {
    %c0_i32 = arith.constant 0 : i32
    %c0_i32_0 = arith.constant 0 : i32
    %c0_i32_1 = arith.constant 0 : i32
    return %arg0, %c0_i32, %c0_i32_0 : i32, i32, i32
  }
  func.func @transform_3(%arg0: i32, %arg1: i32) -> (i32, i32, i32) {
    %c0_i32 = arith.constant 0 : i32
    %c0_i32_0 = arith.constant 0 : i32
    %c0_i32_1 = arith.constant 0 : i32
    return %arg0, %c0_i32, %c0_i32_0 : i32, i32, i32
  }
  func.func @transform_4(%arg0: i32, %arg1: i32) -> (i32, i32, i32) {
    %c0_i32 = arith.constant 0 : i32
    %c0_i32_0 = arith.constant 0 : i32
    %c0_i32_1 = arith.constant 0 : i32
    return %arg0, %c0_i32, %c0_i32_0 : i32, i32, i32
  }
  func.func @transform_5(%arg0: i32, %arg1: i32) -> (i32, i32, i32) {
    %c0_i32 = arith.constant 0 : i32
    %c0_i32_0 = arith.constant 0 : i32
    %c0_i32_1 = arith.constant 0 : i32
    return %arg0, %c0_i32, %c0_i32_0 : i32, i32, i32
  }
  func.func @transform_6(%arg0: i32, %arg1: i32) -> (i32, i32, i32) {
    %c0_i32 = arith.constant 0 : i32
    %c0_i32_0 = arith.constant 0 : i32
    %c0_i32_1 = arith.constant 0 : i32
    return %arg0, %c0_i32, %c0_i32_0 : i32, i32, i32
  }
  func.func @transform_7(%arg0: i32, %arg1: i32) -> (i32, i32, i32) {
    %c0_i32 = arith.constant 0 : i32
    %c0_i32_0 = arith.constant 0 : i32
    %c0_i32_1 = arith.constant 0 : i32
    return %arg0, %c0_i32, %c0_i32_0 : i32, i32, i32
  }
}

</mosaic_0001>

<llo_original>
// kernel: inception_v3_multitask_forward.2
$region0: #{inception_v3_multitask_forward.2}
  #allocation0 [shape = 'u32[]', space=smem, size = 0x4, offset = 0x4, fixed_abs, tag = 'smem constant byte address 0x4 - core index']
  #allocation1 [shape = 'u32[72,128]{1,0:T(1,128)}', space=vmem, size = 0x9000, scoped, tag = 'internal scratch']
  #allocation2 [shape = 'f32[1,512]{1,0:T(1,128)}', space=vmem, size = 0x800, scoped, tag = 'scratch operand']
  %s0 = inlined_call_operand.vmem [shape: bf16[2,256,32], index: 0, kind: input, shape index: {}]
  %s1 = inlined_call_operand.vmem [shape: bf16[32,2048], index: 1, kind: input, shape index: {}]
  %s2 = inlined_call_operand.hbm [shape: f32[1,2048], index: 2, kind: input, shape index: {}]
  %s3 = inlined_call_operand.vmem [shape: bf16[2,1,2048], index: 3, kind: output, shape index: {}]
  %s4 = sld [smem:[#allocation0]]
  $region80: #{inception_v3_multitask_forward.2} parent=0
    _
  %s6 = ssub.s32 1, %s4
  %s7 = scalar_select 0, %s6, %s4
  $region1: #{inception_v3_multitask_forward.2} parent=0
    #allocation3 [shape = 'u8[65536]{0}', space=vmem, size = 0x10000, scoped, tag = 'input window, operand 1']
    #allocation4 [shape = 'u8[4096]{0}', space=vmem, size = 0x1000, scoped, tag = 'input window, operand 2']
    #allocation5 [shape = 's32[2]{0}', space=sflag, size = 0x8, scoped, tag = 'scoped memory for inception_v3_multitask_forward.2']
    %8 = vsyncpa [#allocation5], 0
    %s9 = scalar_lea.sflag [#allocation5], 1
    %10 = vsyncpa %s9, 0
    loop: start=0, step=1, limit=10
    $region2: #{inception_v3_multitask_forward.2} parent=1 // loop_pre_header
      _
    $region3: #{inception_v3_multitask_forward.2} parent=1 // loop_header
      %s12 = sphi 0, %s16
      %p13 = scmp.ge.s32.totalorder %s12, 10
      %s19 = sphi 0, %s38
      %s20 = sphi 0, %s34
      %s21 = sphi 0, %s30
      %s22 = sphi 0, %s19
      %s23 = sphi 0, %s20
      %s24 = sphi 0, %s21
      %s25 = sphi 0, %s22
      %s26 = sphi 0, %s23
      %s27 = sphi 0, %s24
      %s43 = sphi 0, %s45
      %s46 = sphi 0, %s43
      %s47 = sphi 0, %s46
      %s63 = sphi 0, %s47
      %s69 = sphi 0, %s71
      %s72 = sphi 0, %s69
      %s73 = sphi 0, %s72
      %s89 = sphi 0, %s73
      %s95 = sphi 0, %s97
      %s98 = sphi 0, %s95
      %s99 = sphi 0, %s98
      %s115 = sphi 0, %s99
      %s123 = sphi 0, %s125
      %s126 = sphi 0, %s123
      %s127 = sphi 0, %s126
      %s143 = sphi 0, %s127
    $region4: #{inception_v3_multitask_forward.2} parent=1 // loop_header_branch
      %15 = sbr.rel (%p13) target = $region8
    $region5: #{inception_v3_multitask_forward.2} parent=1 // loop_body
      %s17 = ssub.s32 %s12, 1
      %s18 = ssub.s32 %s12, 2
      %s28 = sadd.s32 1, %s21
      %p29 = scmp.ge.s32.totalorder %s28, 1
      %s30 = scalar_select %p29, 0, %s28
      %s31 = sadd.s32 1, %s20
      %s32 = scalar_select %p29, %s31, %s20
      %p33 = scmp.ge.s32.totalorder %s32, 4
      %s34 = scalar_select %p33, 0, %s32
      %s35 = sadd.s32 1, %s19
      %s36 = scalar_select %p33, %s35, %s19
      %p37 = scmp.ge.s32.totalorder %s36, 2
      %s38 = scalar_select %p37, 0, %s36
      %s39 = ssub.s32 %s19, %s38
      %s40 = ssub.s32 %s21, %s30
      %s41 = sor.u32 %s39, %s40
      %p42 = scmp.eq.s32.totalorder %s41, 0
      %s44 = sadd.s32 %s43, 1
      %s45 = scalar_select %p42, %s43, %s44
      %p48 = pneg %p42
      %p49 = scmp.eq.s32.totalorder %s12, 7
      %p50 = por %p48, %p49
      %p51 = scmp.ne.s32.totalorder %s43, %s46
      %p52 = scmp.eq.s32.totalorder %s12, 0
      %p53 = por %p51, %p52
      %p54 = scmp.ne.s32.totalorder %s43, %s46
      %p55 = scmp.eq.s32.totalorder %s17, 7
      %p56 = por %p54, %p55
      %p57 = scmp.ne.s32.totalorder %s46, %s47
      %p58 = scmp.eq.s32.totalorder %s17, 0
      %p59 = por %p57, %p58
      %p60 = scmp.ne.s32.totalorder %s46, %s47
      %p61 = scmp.eq.s32.totalorder %s18, 7
      %p62 = por %p60, %p61
      %p64 = scmp.ne.s32.totalorder %s47, %s63
      %p65 = scmp.eq.s32.totalorder %s18, 0
      %p66 = por %p64, %p65
      %s67 = ssub.s32 %s20, %s34
      %p68 = scmp.eq.s32.totalorder %s67, 0
      %s70 = sadd.s32 %s69, 1
      %s71 = scalar_select %p68, %s69, %s70
      %p74 = pneg %p68
      %p75 = scmp.eq.s32.totalorder %s12, 7
      %p76 = por %p74, %p75
      %p77 = scmp.ne.s32.totalorder %s69, %s72
      %p78 = scmp.eq.s32.totalorder %s12, 0
      %p79 = por %p77, %p78
      %p80 = scmp.ne.s32.totalorder %s69, %s72
      %p81 = scmp.eq.s32.totalorder %s17, 7
      %p82 = por %p80, %p81
      %p83 = scmp.ne.s32.totalorder %s72, %s73
      %p84 = scmp.eq.s32.totalorder %s17, 0
      %p85 = por %p83, %p84
      %p86 = scmp.ne.s32.totalorder %s72, %s73
      %p87 = scmp.eq.s32.totalorder %s18, 7
      %p88 = por %p86, %p87
      %p90 = scmp.ne.s32.totalorder %s73, %s89
      %p91 = scmp.eq.s32.totalorder %s18, 0
      %p92 = por %p90, %p91
      %s93 = ssub.s32 %s20, %s34
      %p94 = scmp.eq.s32.totalorder %s93, 0
      %s96 = sadd.s32 %s95, 1
      %s97 = scalar_select %p94, %s95, %s96
      %p100 = pneg %p94
      %p101 = scmp.eq.s32.totalorder %s12, 7
      %p102 = por %p100, %p101
      %p103 = scmp.ne.s32.totalorder %s95, %s98
      %p104 = scmp.eq.s32.totalorder %s12, 0
      %p105 = por %p103, %p104
      %p106 = scmp.ne.s32.totalorder %s95, %s98
      %p107 = scmp.eq.s32.totalorder %s17, 7
      %p108 = por %p106, %p107
      %p109 = scmp.ne.s32.totalorder %s98, %s99
      %p110 = scmp.eq.s32.totalorder %s17, 0
      %p111 = por %p109, %p110
      %p112 = scmp.ne.s32.totalorder %s98, %s99
      %p113 = scmp.eq.s32.totalorder %s18, 7
      %p114 = por %p112, %p113
      %p116 = scmp.ne.s32.totalorder %s99, %s115
      %p117 = scmp.eq.s32.totalorder %s18, 0
      %p118 = por %p116, %p117
      %s119 = ssub.s32 %s19, %s38
      %s120 = ssub.s32 %s20, %s34
      %s121 = sor.u32 %s119, %s120
      %p122 = scmp.eq.s32.totalorder %s121, 0
      %s124 = sadd.s32 %s123, 1
      %s125 = scalar_select %p122, %s123, %s124
      %p128 = pneg %p122
      %p129 = scmp.eq.s32.totalorder %s12, 7
      %p130 = por %p128, %p129
      %p131 = scmp.ne.s32.totalorder %s123, %s126
      %p132 = scmp.eq.s32.totalorder %s12, 0
      %p133 = por %p131, %p132
      %p134 = scmp.ne.s32.totalorder %s123, %s126
      %p135 = scmp.eq.s32.totalorder %s17, 7
      %p136 = por %p134, %p135
      %p137 = scmp.ne.s32.totalorder %s126, %s127
      %p138 = scmp.eq.s32.totalorder %s17, 0
      %p139 = por %p137, %p138
      %p140 = scmp.ne.s32.totalorder %s126, %s127
      %p141 = scmp.eq.s32.totalorder %s18, 7
      %p142 = por %p140, %p141
      %p144 = scmp.ne.s32.totalorder %s127, %s143
      %p145 = scmp.eq.s32.totalorder %s18, 0
      %p146 = por %p144, %p145
      %p147 = scmp.le.s32.totalorder 1, %s12
      %p148 = scmp.lt.s32.totalorder %s12, 9
      %p149 = pnand %p147, %p148
      %p150 = pneg %p149
      // Predicated region
      $region9: #{inception_v3_multitask_forward.2} parent=5 // pred_check
        _
      $region10: #{inception_v3_multitask_forward.2} parent=5 // pred_check_branch
        %152 = sbr.rel (%p149) target = $region12
      $region11: #{inception_v3_multitask_forward.2} parent=5 // pred_region
        %s153 = ssub.s32 %s12, 1
      $region12: #{inception_v3_multitask_forward.2} parent=5 // pred_fallthru
        _
      %p154 = scmp.lt.s32.totalorder %s12, 8
      // Predicated region
      $region13: #{inception_v3_multitask_forward.2} parent=5 // pred_check
        %p155 = pneg %p154
      $region14: #{inception_v3_multitask_forward.2} parent=5 // pred_check_branch
        %157 = sbr.rel (%p155) target = $region16
      $region15: #{inception_v3_multitask_forward.2} parent=5 // pred_region
        // Predicated region
        $region17: #{inception_v3_multitask_forward.2} parent=15 // pred_check
          %p158 = pneg %p53
        $region18: #{inception_v3_multitask_forward.2} parent=15 // pred_check_branch
          %160 = sbr.rel (%p158) target = $region20
        $region19: #{inception_v3_multitask_forward.2} parent=15 // pred_region
          %p161 = scmp.lt.s32.totalorder %s19, 1
          %s162 = scalar_select %p161, %s19, 1
          %p163 = scmp.lt.s32.totalorder %s21, 0
          %s164 = scalar_select %p163, %s21, 0
          %s165 = smul.addr %s162, 32
          %s166 = sadd.s32 %s164, %s165
          %s167 = smul.addr %s166, 4
          %s168 = scalar_lea.vmem %s0, %s167
        $region20: #{inception_v3_multitask_forward.2} parent=15 // pred_fallthru
          _
        // Predicated region
        $region21: #{inception_v3_multitask_forward.2} parent=15 // pred_check
          %p169 = pneg %p79
        $region22: #{inception_v3_multitask_forward.2} parent=15 // pred_check_branch
          %171 = sbr.rel (%p169) target = $region24
        $region23: #{inception_v3_multitask_forward.2} parent=15 // pred_region
          %s172 = sand.u32 %s69, 1
          %s173 = sand.u32 %s69, 1
          %s174 = smul.addr %s173, 64
          %s175 = scalar_lea.vmem [#allocation3], %s174
          %s176 = smul.u32 4, %s20
          %s177 = smul.addr %s176, 4
          %s178 = scalar_lea.vmem %s1, %s177
          // Predicated region
          $region25: #{inception_v3_multitask_forward.2} parent=23 // pred_check
            _
          $region26: #{inception_v3_multitask_forward.2} parent=23 // pred_check_branch
            %180 = sbr.rel (0) target = $region28
          $region27: #{inception_v3_multitask_forward.2} parent=23 // pred_region
            // Predicated region
            $region29: #{inception_v3_multitask_forward.2} parent=27 // pred_check
              _
            $region30: #{inception_v3_multitask_forward.2} parent=27 // pred_check_branch
              %182 = sbr.rel (0) target = $region32
            $region31: #{inception_v3_multitask_forward.2} parent=27 // pred_region
              loop: start=0, step=1, limit=1
              $region33: #{inception_v3_multitask_forward.2} parent=31 // loop_pre_header
                _
              $region34: #{inception_v3_multitask_forward.2} parent=31 // loop_header
                %s184 = sphi 0, %s188
                %p185 = scmp.ge.s32.totalorder %s184, 1
                %s189 = sphi %s178, %s178
                %s190 = sphi %s175, %s175
              $region35: #{inception_v3_multitask_forward.2} parent=31 // loop_header_branch
                %187 = sbr.rel (%p185) target = $region39
              $region36: #{inception_v3_multitask_forward.2} parent=31 // loop_body
                %v191 = vld [vmem:[%s189] sm:$0xff]
                %192 = vst [vmem:[%s190] sm:$0xff] %v191
                %v193 = vld [vmem:[%s189 + $0x8] sm:$0xff]
                %194 = vst [vmem:[%s190 + $0x8] sm:$0xff] %v193
                %v195 = vld [vmem:[%s189 + $0x40] sm:$0xff]
                %196 = vst [vmem:[%s190 + $0x10] sm:$0xff] %v195
                %v197 = vld [vmem:[%s189 + $0x48] sm:$0xff]
                %198 = vst [vmem:[%s190 + $0x18] sm:$0xff] %v197
                %v199 = vld [vmem:[%s189 + $0x80] sm:$0xff]
                %200 = vst [vmem:[%s190 + $0x20] sm:$0xff] %v199
                %v201 = vld [vmem:[%s189 + $0x88] sm:$0xff]
                %202 = vst [vmem:[%s190 + $0x28] sm:$0xff] %v201
                %v203 = vld [vmem:[%s189 + $0xc0] sm:$0xff]
                %204 = vst [vmem:[%s190 + $0x30] sm:$0xff] %v203
                %v205 = vld [vmem:[%s189 + $0xc8] sm:$0xff]
                %206 = vst [vmem:[%s190 + $0x38] sm:$0xff] %v205
              $region37: #{inception_v3_multitask_forward.2} parent=31 // loop_footer
                %s188 = sadd.s32 1, %s184
              $region38: #{inception_v3_multitask_forward.2} parent=31 // loop_footer_branch
                %183 = sbr.rel target = $region34
              $region39: #{inception_v3_multitask_forward.2} parent=31 // loop_exit
                _
            $region32: #{inception_v3_multitask_forward.2} parent=27 // pred_fallthru
              _
            // Predicated region
            $region40: #{inception_v3_multitask_forward.2} parent=27 // pred_check
              _
            $region41: #{inception_v3_multitask_forward.2} parent=27 // pred_check_branch
              %208 = sbr.rel target = $region43
            $region42: #{inception_v3_multitask_forward.2} parent=27 // pred_region
              _
            $region43: #{inception_v3_multitask_forward.2} parent=27 // pred_fallthru
              _
          $region28: #{inception_v3_multitask_forward.2} parent=23 // pred_fallthru
            _
          %209 = vnop
        $region24: #{inception_v3_multitask_forward.2} parent=15 // pred_fallthru
          _
        // Predicated region
        $region44: #{inception_v3_multitask_forward.2} parent=15 // pred_check
          %p210 = pneg %p105
        $region45: #{inception_v3_multitask_forward.2} parent=15 // pred_check_branch
          %212 = sbr.rel (%p210) target = $region47
        $region46: #{inception_v3_multitask_forward.2} parent=15 // pred_region
          %s213 = sand.u32 %s95, 1
          %s214 = scalar_lea.sflag [#allocation5], %s213
          %s215 = sand.u32 %s95, 1
          %s216 = smul.addr %s215, 4
          %s217 = scalar_lea.vmem [#allocation4], %s216
          %s218 = smul.u32 4, %s20
          %220 = vsyncadd %s214, 0
          %s221 = scalar_lea.hbm %s2, %s218
          %s223 = sshll.u32 %s221, 4
          %s224 = int_to_ptr.hbm [resolvable:$true] %s223
          %s225 = sshll.u32 %s217, 4
          %s226 = int_to_ptr.vmem [resolvable:$true] %s225
          %228 = dma.hbm_to_vmem [thread:$0]  %s224, 64, %s226, %s214
        $region47: #{inception_v3_multitask_forward.2} parent=15 // pred_fallthru
          _
      $region16: #{inception_v3_multitask_forward.2} parent=5 // pred_fallthru
        _
      %p229 = scmp.le.s32.totalorder 1, %s12
      %p230 = scmp.lt.s32.totalorder %s12, 9
      %p231 = pnand %p229, %p230
      %p232 = pneg %p231
      // Predicated region
      $region48: #{inception_v3_multitask_forward.2} parent=5 // pred_check
        _
      $region49: #{inception_v3_multitask_forward.2} parent=5 // pred_check_branch
        %234 = sbr.rel (%p231) target = $region51
      $region50: #{inception_v3_multitask_forward.2} parent=5 // pred_region
        %s235 = ssub.s32 %s12, 1
        %s236 = sand.u32 %s72, 1
        %s237 = sand.u32 %s72, 1
        %s238 = smul.addr %s237, 64
        %s239 = scalar_lea.vmem [#allocation3], %s238
        // Predicated region
        $region52: #{inception_v3_multitask_forward.2} parent=50 // pred_check
          %p240 = pneg %p85
        $region53: #{inception_v3_multitask_forward.2} parent=50 // pred_check_branch
          %242 = sbr.rel (%p240) target = $region55
        $region54: #{inception_v3_multitask_forward.2} parent=50 // pred_region
          _
        $region55: #{inception_v3_multitask_forward.2} parent=50 // pred_fallthru
          _
        %s243 = sand.u32 %s98, 1
        %s244 = scalar_lea.sflag [#allocation5], %s243
        %s245 = sand.u32 %s98, 1
        %s246 = smul.addr %s245, 4
        %s247 = scalar_lea.vmem [#allocation4], %s246
        // Predicated region
        $region56: #{inception_v3_multitask_forward.2} parent=50 // pred_check
          %p248 = pneg %p111
        $region57: #{inception_v3_multitask_forward.2} parent=50 // pred_check_branch
          %250 = sbr.rel (%p248) target = $region59
        $region58: #{inception_v3_multitask_forward.2} parent=50 // pred_region
          %252 = dma.done %s244, 64
        $region59: #{inception_v3_multitask_forward.2} parent=50 // pred_fallthru
          _
        %p253 = scmp.lt.s32.totalorder %s22, 1
        %s254 = scalar_select %p253, %s22, 1
        %p255 = scmp.lt.s32.totalorder %s24, 0
        %s256 = scalar_select %p255, %s24, 0
        %s257 = smul.addr %s254, 32
        %s258 = sadd.s32 %s256, %s257
        %s259 = smul.addr %s258, 4
        %s260 = scalar_lea.vmem %s0, %s259
        %p261 = pneg %p59
        %p262 = pneg %p56
        %s263 = sand.u32 %s72, 1
        %s264 = sand.u32 %s72, 1
        %s265 = smul.addr %s264, 64
        %s266 = scalar_lea.vmem [#allocation3], %s265
        %p267 = pneg %p85
        %p268 = pneg %p82
        %s269 = sand.u32 %s98, 1
        %s270 = scalar_lea.sflag [#allocation5], %s269
        %s271 = sand.u32 %s98, 1
        %s272 = smul.addr %s271, 4
        %s273 = scalar_lea.vmem [#allocation4], %s272
        %p274 = pneg %p111
        %p275 = pneg %p108
        %p276 = pneg %p139
        %p277 = pneg %p136
        %s278 = smul.u32 4, %s23
        %p279 = scmp.lt.s32.totalorder %s22, 1
        %s280 = scalar_select %p279, %s22, 1
        %p281 = scmp.lt.s32.totalorder %s278, 15
        %s282 = scalar_select %p281, %s278, 15
        %s283 = smul.addr %s280, 16
        %s284 = sadd.s32 %s282, %s283
        %s285 = scalar_lea.vmem %s3, %s284
        %p286 = scmp.lt.s32.totalorder %s22, 1
        %s287 = scalar_select %p286, %s22, 1
        %p288 = scmp.lt.s32.totalorder %s24, 0
        %s289 = scalar_select %p288, %s24, 0
        %s290 = smul.addr %s287, 32
        %s291 = sadd.s32 %s289, %s290
        %s292 = smul.addr %s291, 4
        %s293 = scalar_lea.vmem %s0, %s292
        %s294 = smul.u32 4, %s23
        %s295 = smul.u32 4, %s23
        %s296 = smul.u32 4, %s23
        %p297 = scmp.lt.s32.totalorder %s22, 1
        %s298 = scalar_select %p297, %s22, 1
        %p299 = scmp.lt.s32.totalorder %s296, 15
        %s300 = scalar_select %p299, %s296, 15
        %s301 = smul.addr %s298, 16
        %s302 = sadd.s32 %s300, %s301
        %s303 = scalar_lea.vmem %s3, %s302
        %s304 = smul.u32 4, %s23
        %p306 = scmp.eq.s32.totalorder %s24, 0
        // Predicated region
        $region60: #{inception_v3_multitask_forward.2} parent=50 // pred_check
          %p307 = pneg %p306
        $region61: #{inception_v3_multitask_forward.2} parent=50 // pred_check_branch
          %309 = sbr.rel (%p307) target = $region63
        $region62: #{inception_v3_multitask_forward.2} parent=50 // pred_region
          %v310 = vlaneseq
          %vm311 = vcmp.ge.s32.totalorder %v310, 0
          %vm312 = vcmp.lt.s32.totalorder %v310, 512
          %vm313 = vmand %vm311, %vm312
          %314 = vst.msk [vmem:[#allocation2] sm:$0xf] %vm313, 0.0
        $region63: #{inception_v3_multitask_forward.2} parent=50 // pred_fallthru
          _
        %v315 = vld [vmem:[%s293] sm:$0xf]
        %v316 = vld [vmem:[%s293 + $0x4] sm:$0xf]
        %v317 = vld [vmem:[%s293 + $0x8] sm:$0xf]
        %v318 = vld [vmem:[%s293 + $0xc] sm:$0xf]
        %v319 = vld [vmem:[%s293 + $0x10] sm:$0xf]
        %v320 = vld [vmem:[%s293 + $0x14] sm:$0xf]
        %v321 = vld [vmem:[%s293 + $0x18] sm:$0xf]
        %v322 = vld [vmem:[%s293 + $0x1c] sm:$0xf]
        %v323 = vld [vmem:[%s293 + $0x20] sm:$0xf]
        %v324 = vld [vmem:[%s293 + $0x24] sm:$0xf]
        %v325 = vld [vmem:[%s293 + $0x28] sm:$0xf]
        %v326 = vld [vmem:[%s293 + $0x2c] sm:$0xf]
        %v327 = vld [vmem:[%s293 + $0x30] sm:$0xf]
        %v328 = vld [vmem:[%s293 + $0x34] sm:$0xf]
        %v329 = vld [vmem:[%s293 + $0x38] sm:$0xf]
        %v330 = vld [vmem:[%s293 + $0x3c] sm:$0xf]
        %v331 = vld [vmem:[%s293 + $0x40] sm:$0xf]
        %v332 = vld [vmem:[%s293 + $0x44] sm:$0xf]
        %v333 = vld [vmem:[%s293 + $0x48] sm:$0xf]
        %v334 = vld [vmem:[%s293 + $0x4c] sm:$0xf]
        %v335 = vld [vmem:[%s293 + $0x50] sm:$0xf]
        %v336 = vld [vmem:[%s293 + $0x54] sm:$0xf]
        %v337 = vld [vmem:[%s293 + $0x58] sm:$0xf]
        %v338 = vld [vmem:[%s293 + $0x5c] sm:$0xf]
        %v339 = vld [vmem:[%s293 + $0x60] sm:$0xf]
        %v340 = vld [vmem:[%s293 + $0x64] sm:$0xf]
        %v341 = vld [vmem:[%s293 + $0x68] sm:$0xf]
        %v342 = vld [vmem:[%s293 + $0x6c] sm:$0xf]
        %v343 = vld [vmem:[%s293 + $0x70] sm:$0xf]
        %v344 = vld [vmem:[%s293 + $0x74] sm:$0xf]
        %v345 = vld [vmem:[%s293 + $0x78] sm:$0xf]
        %v346 = vld [vmem:[%s293 + $0x7c] sm:$0xf]
        %v347 = vld [vmem:[%s239] sm:$0xff]
        %v348 = vld [vmem:[%s239 + $0x8] sm:$0xff]
        %v349 = vld [vmem:[%s239 + $0x10] sm:$0xff]
        %v350 = vld [vmem:[%s239 + $0x18] sm:$0xff]
        %v351 = vld [vmem:[%s239 + $0x20] sm:$0xff]
        %v352 = vld [vmem:[%s239 + $0x28] sm:$0xff]
        %v353 = vld [vmem:[%s239 + $0x30] sm:$0xff]
        %v354 = vld [vmem:[%s239 + $0x38] sm:$0xff]
        %v355 = vld [vmem:[%s247] sm:$0xf]
        %v357 = vperm.slane %v355, 0
        %v358 = vperm.slane %v355, 1
        %v359 = vperm.slane %v355, 2
        %v360 = vperm.slane %v355, 3
        %v397 = vunpack.c.l.b16 %v315
        %v398 = vunpack.c.l.b16 %v316
        %v399 = vunpack.c.l.b16 %v317
        %v400 = vunpack.c.l.b16 %v318
        %v401 = vunpack.c.l.b16 %v319
        %v402 = vunpack.c.l.b16 %v320
        %v403 = vunpack.c.l.b16 %v321
        %v404 = vunpack.c.l.b16 %v322
        %v405 = vunpack.c.l.b16 %v323
        %v406 = vunpack.c.l.b16 %v324
        %v407 = vunpack.c.l.b16 %v325
        %v408 = vunpack.c.l.b16 %v326
        %v409 = vunpack.c.l.b16 %v327
        %v410 = vunpack.c.l.b16 %v328
        %v411 = vunpack.c.l.b16 %v329
        %v412 = vunpack.c.l.b16 %v330
        %v413 = vunpack.c.l.b16 %v331
        %v414 = vunpack.c.l.b16 %v332
        %v415 = vunpack.c.l.b16 %v333
        %v416 = vunpack.c.l.b16 %v334
        %v417 = vunpack.c.l.b16 %v335
        %v418 = vunpack.c.l.b16 %v336
        %v419 = vunpack.c.l.b16 %v337
        %v420 = vunpack.c.l.b16 %v338
        %v421 = vunpack.c.l.b16 %v339
        %v422 = vunpack.c.l.b16 %v340
        %v423 = vunpack.c.l.b16 %v341
        %v424 = vunpack.c.l.b16 %v342
        %v425 = vunpack.c.l.b16 %v343
        %v426 = vunpack.c.l.b16 %v344
        %v427 = vunpack.c.l.b16 %v345
        %v428 = vunpack.c.l.b16 %v346
        %v429 = vpack.c.b16 %v398, %v397
        %v430 = vpack.c.b16 %v400, %v399
        %v431 = vpack.c.b16 %v402, %v401
        %v432 = vpack.c.b16 %v404, %v403
        %v433 = vpack.c.b16 %v406, %v405
        %v434 = vpack.c.b16 %v408, %v407
        %v435 = vpack.c.b16 %v410, %v409
        %v436 = vpack.c.b16 %v412, %v411
        %v437 = vpack.c.b16 %v414, %v413
        %v438 = vpack.c.b16 %v416, %v415
        %v439 = vpack.c.b16 %v418, %v417
        %v440 = vpack.c.b16 %v420, %v419
        %v441 = vpack.c.b16 %v422, %v421
        %v442 = vpack.c.b16 %v424, %v423
        %v443 = vpack.c.b16 %v426, %v425
        %v444 = vpack.c.b16 %v428, %v427
        %v453 = vunpack.c.l.b16 %v347
        %v454 = vunpack.c.h.b16 %v347
        %v455 = vunpack.c.l.b16 %v348
        %v456 = vunpack.c.h.b16 %v348
        %v457 = vunpack.c.l.b16 %v349
        %v458 = vunpack.c.h.b16 %v349
        %v459 = vunpack.c.l.b16 %v350
        %v460 = vunpack.c.h.b16 %v350
        %v461 = vunpack.c.l.b16 %v351
        %v462 = vunpack.c.h.b16 %v351
        %v463 = vunpack.c.l.b16 %v352
        %v464 = vunpack.c.h.b16 %v352
        %v465 = vunpack.c.l.b16 %v353
        %v466 = vunpack.c.h.b16 %v353
        %v467 = vunpack.c.l.b16 %v354
        %v468 = vunpack.c.h.b16 %v354
        %v469 = vpack.c.b16 %v457, %v453
        %v470 = vpack.c.b16 %v458, %v454
        %v471 = vpack.c.b16 %v459, %v455
        %v472 = vpack.c.b16 %v460, %v456
        %v473 = vpack.c.b16 %v465, %v461
        %v474 = vpack.c.b16 %v466, %v462
        %v475 = vpack.c.b16 %v467, %v463
        %v476 = vpack.c.b16 %v468, %v464
        %vm485 = vcmask 261120
        %v487 = vsel %vm485, %v429, 0
        %v490 = vsel %vm485, %v430, 0
        %v493 = vsel %vm485, %v431, 0
        %v496 = vsel %vm485, %v432, 0
        %v499 = vsel %vm485, %v433, 0
        %v502 = vsel %vm485, %v434, 0
        %v505 = vsel %vm485, %v435, 0
        %v508 = vsel %vm485, %v436, 0
        %v511 = vsel %vm485, %v437, 0
        %v514 = vsel %vm485, %v438, 0
        %v517 = vsel %vm485, %v439, 0
        %v520 = vsel %vm485, %v440, 0
        %v523 = vsel %vm485, %v441, 0
        %v526 = vsel %vm485, %v442, 0
        %v529 = vsel %vm485, %v443, 0
        %v532 = vsel %vm485, %v444, 0
        %534 = vmatpush.bf16.msra.mxu0 0
        %535 = vmatpush.bf16.msra.mxu0 0
        %536 = vmatpush.bf16.msra.mxu0 0
        %537 = vmatpush.bf16.msra.mxu0 0
        %538 = vmatpush.bf16.msra.mxu0 0
        %539 = vmatpush.bf16.msra.mxu0 0
        %540 = vmatpush.bf16.msra.mxu0 %v473
        %541 = vmatpush.bf16.msra.mxu0 %v469
        %542 = vmatmul.bf16.gmra.mxu0 %v487
        %v543 = vpop.f32.mrf.mxu0
        %v544 = vadd.f32 %v357, %v543
        %v545 = vpop.f32.mrf.mxu0
        %v546 = vadd.f32 %v357, %v545
        %547 = vmatmul.bf16.gmra.mxu0 %v490
        %v548 = vpop.f32.mrf.mxu0
        %v549 = vadd.f32 %v357, %v548
        %v550 = vpop.f32.mrf.mxu0
        %v551 = vadd.f32 %v357, %v550
        %552 = vmatmul.bf16.gmra.mxu0 %v493
        %v553 = vpop.f32.mrf.mxu0
        %v554 = vadd.f32 %v357, %v553
        %v555 = vpop.f32.mrf.mxu0
        %v556 = vadd.f32 %v357, %v555
        %557 = vmatmul.bf16.gmra.mxu0 %v496
        %v558 = vpop.f32.mrf.mxu0
        %v559 = vadd.f32 %v357, %v558
        %v560 = vpop.f32.mrf.mxu0
        %v561 = vadd.f32 %v357, %v560
        %562 = vmatmul.bf16.gmra.mxu0 %v499
        %v563 = vpop.f32.mrf.mxu0
        %v564 = vadd.f32 %v357, %v563
        %v565 = vpop.f32.mrf.mxu0
        %v566 = vadd.f32 %v357, %v565
        %567 = vmatmul.bf16.gmra.mxu0 %v502
        %v568 = vpop.f32.mrf.mxu0
        %v569 = vadd.f32 %v357, %v568
        %v570 = vpop.f32.mrf.mxu0
        %v571 = vadd.f32 %v357, %v570
        %572 = vmatmul.bf16.gmra.mxu0 %v505
        %v573 = vpop.f32.mrf.mxu0
        %v574 = vadd.f32 %v357, %v573
        %v575 = vpop.f32.mrf.mxu0
        %v576 = vadd.f32 %v357, %v575
        %577 = vmatmul.bf16.gmra.mxu0 %v508
        %v578 = vpop.f32.mrf.mxu0
        %v579 = vadd.f32 %v357, %v578
        %v580 = vpop.f32.mrf.mxu0
        %v581 = vadd.f32 %v357, %v580
        %582 = vmatmul.bf16.gmra.mxu0 %v511
        %v583 = vpop.f32.mrf.mxu0
        %v584 = vadd.f32 %v357, %v583
        %v585 = vpop.f32.mrf.mxu0
        %v586 = vadd.f32 %v357, %v585
        %587 = vmatmul.bf16.gmra.mxu0 %v514
        %v588 = vpop.f32.mrf.mxu0
        %v589 = vadd.f32 %v357, %v588
        %v590 = vpop.f32.mrf.mxu0
        %v591 = vadd.f32 %v357, %v590
        %592 = vmatmul.bf16.gmra.mxu0 %v517
        %v593 = vpop.f32.mrf.mxu0
        %v594 = vadd.f32 %v357, %v593
        %v595 = vpop.f32.mrf.mxu0
        %v596 = vadd.f32 %v357, %v595
        %597 = vmatmul.bf16.gmra.mxu0 %v520
        %v598 = vpop.f32.mrf.mxu0
        %v599 = vadd.f32 %v357, %v598
        %v600 = vpop.f32.mrf.mxu0
        %v601 = vadd.f32 %v357, %v600
        %602 = vmatmul.bf16.gmra.mxu0 %v523
        %v603 = vpop.f32.mrf.mxu0
        %v604 = vadd.f32 %v357, %v603
        %v605 = vpop.f32.mrf.mxu0
        %v606 = vadd.f32 %v357, %v605
        %607 = vmatmul.bf16.gmra.mxu0 %v526
        %v608 = vpop.f32.mrf.mxu0
        %v609 = vadd.f32 %v357, %v608
        %v610 = vpop.f32.mrf.mxu0
        %v611 = vadd.f32 %v357, %v610
        %612 = vmatmul.bf16.gmra.mxu0 %v529
        %v613 = vpop.f32.mrf.mxu0
        %v614 = vadd.f32 %v357, %v613
        %v615 = vpop.f32.mrf.mxu0
        %v616 = vadd.f32 %v357, %v615
        %617 = vmatmul.bf16.gmra.mxu0 %v532
        %v618 = vpop.f32.mrf.mxu0
        %v619 = vadd.f32 %v357, %v618
        %v620 = vpop.f32.mrf.mxu0
        %v621 = vadd.f32 %v357, %v620
        %622 = vdwg.mxu0
        %623 = vmatpush.bf16.msra.mxu0 0
        %624 = vmatpush.bf16.msra.mxu0 0
        %625 = vmatpush.bf16.msra.mxu0 0
        %626 = vmatpush.bf16.msra.mxu0 0
        %627 = vmatpush.bf16.msra.mxu0 0
        %628 = vmatpush.bf16.msra.mxu0 0
        %629 = vmatpush.bf16.msra.mxu0 %v474
        %630 = vmatpush.bf16.msra.mxu0 %v470
        %631 = vmatmul.bf16.gmra.mxu0 %v487
        %v632 = vpop.f32.mrf.mxu0
        %v633 = vadd.f32 %v358, %v632
        %v634 = vpop.f32.mrf.mxu0
        %v635 = vadd.f32 %v358, %v634
        %636 = vmatmul.bf16.gmra.mxu0 %v490
        %v637 = vpop.f32.mrf.mxu0
        %v638 = vadd.f32 %v358, %v637
        %v639 = vpop.f32.mrf.mxu0
        %v640 = vadd.f32 %v358, %v639
        %641 = vmatmul.bf16.gmra.mxu0 %v493
        %v642 = vpop.f32.mrf.mxu0
        %v643 = vadd.f32 %v358, %v642
        %v644 = vpop.f32.mrf.mxu0
        %v645 = vadd.f32 %v358, %v644
        %646 = vmatmul.bf16.gmra.mxu0 %v496
        %v647 = vpop.f32.mrf.mxu0
        %v648 = vadd.f32 %v358, %v647
        %v649 = vpop.f32.mrf.mxu0
        %v650 = vadd.f32 %v358, %v649
        %651 = vmatmul.bf16.gmra.mxu0 %v499
        %v652 = vpop.f32.mrf.mxu0
        %v653 = vadd.f32 %v358, %v652
        %v654 = vpop.f32.mrf.mxu0
        %v655 = vadd.f32 %v358, %v654
        %656 = vmatmul.bf16.gmra.mxu0 %v502
        %v657 = vpop.f32.mrf.mxu0
        %v658 = vadd.f32 %v358, %v657
        %v659 = vpop.f32.mrf.mxu0
        %v660 = vadd.f32 %v358, %v659
        %661 = vmatmul.bf16.gmra.mxu0 %v505
        %v662 = vpop.f32.mrf.mxu0
        %v663 = vadd.f32 %v358, %v662
        %v664 = vpop.f32.mrf.mxu0
        %v665 = vadd.f32 %v358, %v664
        %666 = vmatmul.bf16.gmra.mxu0 %v508
        %v667 = vpop.f32.mrf.mxu0
        %v668 = vadd.f32 %v358, %v667
        %v669 = vpop.f32.mrf.mxu0
        %v670 = vadd.f32 %v358, %v669
        %671 = vmatmul.bf16.gmra.mxu0 %v511
        %v672 = vpop.f32.mrf.mxu0
        %v673 = vadd.f32 %v358, %v672
        %v674 = vpop.f32.mrf.mxu0
        %v675 = vadd.f32 %v358, %v674
        %676 = vmatmul.bf16.gmra.mxu0 %v514
        %v677 = vpop.f32.mrf.mxu0
        %v678 = vadd.f32 %v358, %v677
        %v679 = vpop.f32.mrf.mxu0
        %v680 = vadd.f32 %v358, %v679
        %681 = vmatmul.bf16.gmra.mxu0 %v517
        %v682 = vpop.f32.mrf.mxu0
        %v683 = vadd.f32 %v358, %v682
        %v684 = vpop.f32.mrf.mxu0
        %v685 = vadd.f32 %v358, %v684
        %686 = vmatmul.bf16.gmra.mxu0 %v520
        %v687 = vpop.f32.mrf.mxu0
        %v688 = vadd.f32 %v358, %v687
        %v689 = vpop.f32.mrf.mxu0
        %v690 = vadd.f32 %v358, %v689
        %691 = vmatmul.bf16.gmra.mxu0 %v523
        %v692 = vpop.f32.mrf.mxu0
        %v693 = vadd.f32 %v358, %v692
        %v694 = vpop.f32.mrf.mxu0
        %v695 = vadd.f32 %v358, %v694
        %696 = vmatmul.bf16.gmra.mxu0 %v526
        %v697 = vpop.f32.mrf.mxu0
        %v698 = vadd.f32 %v358, %v697
        %v699 = vpop.f32.mrf.mxu0
        %v700 = vadd.f32 %v358, %v699
        %701 = vmatmul.bf16.gmra.mxu0 %v529
        %v702 = vpop.f32.mrf.mxu0
        %v703 = vadd.f32 %v358, %v702
        %v704 = vpop.f32.mrf.mxu0
        %v705 = vadd.f32 %v358, %v704
        %706 = vmatmul.bf16.gmra.mxu0 %v532
        %v707 = vpop.f32.mrf.mxu0
        %v708 = vadd.f32 %v358, %v707
        %v709 = vpop.f32.mrf.mxu0
        %v710 = vadd.f32 %v358, %v709
        %711 = vdwg.mxu0
        %712 = vmatpush.bf16.msra.mxu0 0
        %713 = vmatpush.bf16.msra.mxu0 0
        %714 = vmatpush.bf16.msra.mxu0 0
        %715 = vmatpush.bf16.msra.mxu0 0
        %716 = vmatpush.bf16.msra.mxu0 0
        %717 = vmatpush.bf16.msra.mxu0 0
        %718 = vmatpush.bf16.msra.mxu0 %v475
        %719 = vmatpush.bf16.msra.mxu0 %v471
        %720 = vmatmul.bf16.gmra.mxu0 %v487
        %v721 = vpop.f32.mrf.mxu0
        %v722 = vadd.f32 %v359, %v721
        %v723 = vpop.f32.mrf.mxu0
        %v724 = vadd.f32 %v359, %v723
        %725 = vmatmul.bf16.gmra.mxu0 %v490
        %v726 = vpop.f32.mrf.mxu0
        %v727 = vadd.f32 %v359, %v726
        %v728 = vpop.f32.mrf.mxu0
        %v729 = vadd.f32 %v359, %v728
        %730 = vmatmul.bf16.gmra.mxu0 %v493
        %v731 = vpop.f32.mrf.mxu0
        %v732 = vadd.f32 %v359, %v731
        %v733 = vpop.f32.mrf.mxu0
        %v734 = vadd.f32 %v359, %v733
        %735 = vmatmul.bf16.gmra.mxu0 %v496
        %v736 = vpop.f32.mrf.mxu0
        %v737 = vadd.f32 %v359, %v736
        %v738 = vpop.f32.mrf.mxu0
        %v739 = vadd.f32 %v359, %v738
        %740 = vmatmul.bf16.gmra.mxu0 %v499
        %v741 = vpop.f32.mrf.mxu0
        %v742 = vadd.f32 %v359, %v741
        %v743 = vpop.f32.mrf.mxu0
        %v744 = vadd.f32 %v359, %v743
        %745 = vmatmul.bf16.gmra.mxu0 %v502
        %v746 = vpop.f32.mrf.mxu0
        %v747 = vadd.f32 %v359, %v746
        %v748 = vpop.f32.mrf.mxu0
        %v749 = vadd.f32 %v359, %v748
        %750 = vmatmul.bf16.gmra.mxu0 %v505
        %v751 = vpop.f32.mrf.mxu0
        %v752 = vadd.f32 %v359, %v751
        %v753 = vpop.f32.mrf.mxu0
        %v754 = vadd.f32 %v359, %v753
        %755 = vmatmul.bf16.gmra.mxu0 %v508
        %v756 = vpop.f32.mrf.mxu0
        %v757 = vadd.f32 %v359, %v756
        %v758 = vpop.f32.mrf.mxu0
        %v759 = vadd.f32 %v359, %v758
        %760 = vmatmul.bf16.gmra.mxu0 %v511
        %v761 = vpop.f32.mrf.mxu0
        %v762 = vadd.f32 %v359, %v761
        %v763 = vpop.f32.mrf.mxu0
        %v764 = vadd.f32 %v359, %v763
        %765 = vmatmul.bf16.gmra.mxu0 %v514
        %v766 = vpop.f32.mrf.mxu0
        %v767 = vadd.f32 %v359, %v766
        %v768 = vpop.f32.mrf.mxu0
        %v769 = vadd.f32 %v359, %v768
        %770 = vmatmul.bf16.gmra.mxu0 %v517
        %v771 = vpop.f32.mrf.mxu0
        %v772 = vadd.f32 %v359, %v771
        %v773 = vpop.f32.mrf.mxu0
        %v774 = vadd.f32 %v359, %v773
        %775 = vmatmul.bf16.gmra.mxu0 %v520
        %v776 = vpop.f32.mrf.mxu0
        %v777 = vadd.f32 %v359, %v776
        %v778 = vpop.f32.mrf.mxu0
        %v779 = vadd.f32 %v359, %v778
        %780 = vmatmul.bf16.gmra.mxu0 %v523
        %v781 = vpop.f32.mrf.mxu0
        %v782 = vadd.f32 %v359, %v781
        %v783 = vpop.f32.mrf.mxu0
        %v784 = vadd.f32 %v359, %v783
        %785 = vmatmul.bf16.gmra.mxu0 %v526
        %v786 = vpop.f32.mrf.mxu0
        %v787 = vadd.f32 %v359, %v786
        %v788 = vpop.f32.mrf.mxu0
        %v789 = vadd.f32 %v359, %v788
        %790 = vmatmul.bf16.gmra.mxu0 %v529
        %v791 = vpop.f32.mrf.mxu0
        %v792 = vadd.f32 %v359, %v791
        %v793 = vpop.f32.mrf.mxu0
        %v794 = vadd.f32 %v359, %v793
        %795 = vmatmul.bf16.gmra.mxu0 %v532
        %v796 = vpop.f32.mrf.mxu0
        %v797 = vadd.f32 %v359, %v796
        %v798 = vpop.f32.mrf.mxu0
        %v799 = vadd.f32 %v359, %v798
        %800 = vdwg.mxu0
        %801 = vmatpush.bf16.msra.mxu0 0
        %802 = vmatpush.bf16.msra.mxu0 0
        %803 = vmatpush.bf16.msra.mxu0 0
        %804 = vmatpush.bf16.msra.mxu0 0
        %805 = vmatpush.bf16.msra.mxu0 0
        %806 = vmatpush.bf16.msra.mxu0 0
        %807 = vmatpush.bf16.msra.mxu0 %v476
        %808 = vmatpush.bf16.msra.mxu0 %v472
        %809 = vmatmul.bf16.gmra.mxu0 %v487
        %v810 = vpop.f32.mrf.mxu0
        %v811 = vadd.f32 %v360, %v810
        %v812 = vpop.f32.mrf.mxu0
        %v813 = vadd.f32 %v360, %v812
        %814 = vmatmul.bf16.gmra.mxu0 %v490
        %v815 = vpop.f32.mrf.mxu0
        %v816 = vadd.f32 %v360, %v815
        %v817 = vpop.f32.mrf.mxu0
        %v818 = vadd.f32 %v360, %v817
        %819 = vmatmul.bf16.gmra.mxu0 %v493
        %v820 = vpop.f32.mrf.mxu0
        %v821 = vadd.f32 %v360, %v820
        %v822 = vpop.f32.mrf.mxu0
        %v823 = vadd.f32 %v360, %v822
        %824 = vmatmul.bf16.gmra.mxu0 %v496
        %v825 = vpop.f32.mrf.mxu0
        %v826 = vadd.f32 %v360, %v825
        %v827 = vpop.f32.mrf.mxu0
        %v828 = vadd.f32 %v360, %v827
        %829 = vmatmul.bf16.gmra.mxu0 %v499
        %v830 = vpop.f32.mrf.mxu0
        %v831 = vadd.f32 %v360, %v830
        %v832 = vpop.f32.mrf.mxu0
        %v833 = vadd.f32 %v360, %v832
        %834 = vmatmul.bf16.gmra.mxu0 %v502
        %v835 = vpop.f32.mrf.mxu0
        %v836 = vadd.f32 %v360, %v835
        %v837 = vpop.f32.mrf.mxu0
        %v838 = vadd.f32 %v360, %v837
        %839 = vmatmul.bf16.gmra.mxu0 %v505
        %v840 = vpop.f32.mrf.mxu0
        %v841 = vadd.f32 %v360, %v840
        %v842 = vpop.f32.mrf.mxu0
        %v843 = vadd.f32 %v360, %v842
        %844 = vmatmul.bf16.gmra.mxu0 %v508
        %v845 = vpop.f32.mrf.mxu0
        %v846 = vadd.f32 %v360, %v845
        %v847 = vpop.f32.mrf.mxu0
        %v848 = vadd.f32 %v360, %v847
        %849 = vmatmul.bf16.gmra.mxu0 %v511
        %v850 = vpop.f32.mrf.mxu0
        %v851 = vadd.f32 %v360, %v850
        %v852 = vpop.f32.mrf.mxu0
        %v853 = vadd.f32 %v360, %v852
        %854 = vmatmul.bf16.gmra.mxu0 %v514
        %v855 = vpop.f32.mrf.mxu0
        %v856 = vadd.f32 %v360, %v855
        %v857 = vpop.f32.mrf.mxu0
        %v858 = vadd.f32 %v360, %v857
        %859 = vmatmul.bf16.gmra.mxu0 %v517
        %v860 = vpop.f32.mrf.mxu0
        %v861 = vadd.f32 %v360, %v860
        %v862 = vpop.f32.mrf.mxu0
        %v863 = vadd.f32 %v360, %v862
        %864 = vmatmul.bf16.gmra.mxu0 %v520
        %v865 = vpop.f32.mrf.mxu0
        %v866 = vadd.f32 %v360, %v865
        %v867 = vpop.f32.mrf.mxu0
        %v868 = vadd.f32 %v360, %v867
        %869 = vmatmul.bf16.gmra.mxu0 %v523
        %v870 = vpop.f32.mrf.mxu0
        %v871 = vadd.f32 %v360, %v870
        %v872 = vpop.f32.mrf.mxu0
        %v873 = vadd.f32 %v360, %v872
        %874 = vmatmul.bf16.gmra.mxu0 %v526
        %v875 = vpop.f32.mrf.mxu0
        %v876 = vadd.f32 %v360, %v875
        %v877 = vpop.f32.mrf.mxu0
        %v878 = vadd.f32 %v360, %v877
        %879 = vmatmul.bf16.gmra.mxu0 %v529
        %v880 = vpop.f32.mrf.mxu0
        %v881 = vadd.f32 %v360, %v880
        %v882 = vpop.f32.mrf.mxu0
        %v883 = vadd.f32 %v360, %v882
        %884 = vmatmul.bf16.gmra.mxu0 %v532
        %v885 = vpop.f32.mrf.mxu0
        %v886 = vadd.f32 %v360, %v885
        %v887 = vpop.f32.mrf.mxu0
        %v888 = vadd.f32 %v360, %v887
        %889 = vdwg.mxu0
        %v890 = vmax.f32 %v544, 0.0
        %v891 = vmax.f32 %v633, 0.0
        %v892 = vmax.f32 %v722, 0.0
        %v893 = vmax.f32 %v811, 0.0
        %v894 = vmax.f32 %v546, 0.0
        %v895 = vmax.f32 %v635, 0.0
        %v896 = vmax.f32 %v724, 0.0
        %v897 = vmax.f32 %v813, 0.0
        %v898 = vmax.f32 %v549, 0.0
        %v899 = vmax.f32 %v638, 0.0
        %v900 = vmax.f32 %v727, 0.0
        %v901 = vmax.f32 %v816, 0.0
        %v902 = vmax.f32 %v551, 0.0
        %v903 = vmax.f32 %v640, 0.0
        %v904 = vmax.f32 %v729, 0.0
        %v905 = vmax.f32 %v818, 0.0
        %v906 = vmax.f32 %v554, 0.0
        %v907 = vmax.f32 %v643, 0.0
        %v908 = vmax.f32 %v732, 0.0
        %v909 = vmax.f32 %v821, 0.0
        %v910 = vmax.f32 %v556, 0.0
        %v911 = vmax.f32 %v645, 0.0
        %v912 = vmax.f32 %v734, 0.0
        %v913 = vmax.f32 %v823, 0.0
        %v914 = vmax.f32 %v559, 0.0
        %v915 = vmax.f32 %v648, 0.0
        %v916 = vmax.f32 %v737, 0.0
        %v917 = vmax.f32 %v826, 0.0
        %v918 = vmax.f32 %v561, 0.0
        %v919 = vmax.f32 %v650, 0.0
        %v920 = vmax.f32 %v739, 0.0
        %v921 = vmax.f32 %v828, 0.0
        %v922 = vmax.f32 %v564, 0.0
        %v923 = vmax.f32 %v653, 0.0
        %v924 = vmax.f32 %v742, 0.0
        %v925 = vmax.f32 %v831, 0.0
        %v926 = vmax.f32 %v566, 0.0
        %v927 = vmax.f32 %v655, 0.0
        %v928 = vmax.f32 %v744, 0.0
        %v929 = vmax.f32 %v833, 0.0
        %v930 = vmax.f32 %v569, 0.0
        %v931 = vmax.f32 %v658, 0.0
        %v932 = vmax.f32 %v747, 0.0
        %v933 = vmax.f32 %v836, 0.0
        %v934 = vmax.f32 %v571, 0.0
        %v935 = vmax.f32 %v660, 0.0
        %v936 = vmax.f32 %v749, 0.0
        %v937 = vmax.f32 %v838, 0.0
        %v938 = vmax.f32 %v574, 0.0
        %v939 = vmax.f32 %v663, 0.0
        %v940 = vmax.f32 %v752, 0.0
        %v941 = vmax.f32 %v841, 0.0
        %v942 = vmax.f32 %v576, 0.0
        %v943 = vmax.f32 %v665, 0.0
        %v944 = vmax.f32 %v754, 0.0
        %v945 = vmax.f32 %v843, 0.0
        %v946 = vmax.f32 %v579, 0.0
        %v947 = vmax.f32 %v668, 0.0
        %v948 = vmax.f32 %v757, 0.0
        %v949 = vmax.f32 %v846, 0.0
        %v950 = vmax.f32 %v581, 0.0
        %v951 = vmax.f32 %v670, 0.0
        %v952 = vmax.f32 %v759, 0.0
        %v953 = vmax.f32 %v848, 0.0
        %v954 = vmax.f32 %v584, 0.0
        %v955 = vmax.f32 %v673, 0.0
        %v956 = vmax.f32 %v762, 0.0
        %v957 = vmax.f32 %v851, 0.0
        %v958 = vmax.f32 %v586, 0.0
        %v959 = vmax.f32 %v675, 0.0
        %v960 = vmax.f32 %v764, 0.0
        %v961 = vmax.f32 %v853, 0.0
        %v962 = vmax.f32 %v589, 0.0
        %v963 = vmax.f32 %v678, 0.0
        %v964 = vmax.f32 %v767, 0.0
        %v965 = vmax.f32 %v856, 0.0
        %v966 = vmax.f32 %v591, 0.0
        %v967 = vmax.f32 %v680, 0.0
        %v968 = vmax.f32 %v769, 0.0
        %v969 = vmax.f32 %v858, 0.0
        %v970 = vmax.f32 %v594, 0.0
        %v971 = vmax.f32 %v683, 0.0
        %v972 = vmax.f32 %v772, 0.0
        %v973 = vmax.f32 %v861, 0.0
        %v974 = vmax.f32 %v596, 0.0
        %v975 = vmax.f32 %v685, 0.0
        %v976 = vmax.f32 %v774, 0.0
        %v977 = vmax.f32 %v863, 0.0
        %v978 = vmax.f32 %v599, 0.0
        %v979 = vmax.f32 %v688, 0.0
        %v980 = vmax.f32 %v777, 0.0
        %v981 = vmax.f32 %v866, 0.0
        %v982 = vmax.f32 %v601, 0.0
        %v983 = vmax.f32 %v690, 0.0
        %v984 = vmax.f32 %v779, 0.0
        %v985 = vmax.f32 %v868, 0.0
        %v986 = vmax.f32 %v604, 0.0
        %v987 = vmax.f32 %v693, 0.0
        %v988 = vmax.f32 %v782, 0.0
        %v989 = vmax.f32 %v871, 0.0
        %v990 = vmax.f32 %v606, 0.0
        %v991 = vmax.f32 %v695, 0.0
        %v992 = vmax.f32 %v784, 0.0
        %v993 = vmax.f32 %v873, 0.0
        %v994 = vmax.f32 %v609, 0.0
        %v995 = vmax.f32 %v698, 0.0
        %v996 = vmax.f32 %v787, 0.0
        %v997 = vmax.f32 %v876, 0.0
        %v998 = vmax.f32 %v611, 0.0
        %v999 = vmax.f32 %v700, 0.0
        %v1000 = vmax.f32 %v789, 0.0
        %v1001 = vmax.f32 %v878, 0.0
        %v1002 = vmax.f32 %v614, 0.0
        %v1003 = vmax.f32 %v703, 0.0
        %v1004 = vmax.f32 %v792, 0.0
        %v1005 = vmax.f32 %v881, 0.0
        %v1006 = vmax.f32 %v616, 0.0
        %v1007 = vmax.f32 %v705, 0.0
        %v1008 = vmax.f32 %v794, 0.0
        %v1009 = vmax.f32 %v883, 0.0
        %v1010 = vmax.f32 %v619, 0.0
        %v1011 = vmax.f32 %v708, 0.0
        %v1012 = vmax.f32 %v797, 0.0
        %v1013 = vmax.f32 %v886, 0.0
        %v1014 = vmax.f32 %v621, 0.0
        %v1015 = vmax.f32 %v710, 0.0
        %v1016 = vmax.f32 %v799, 0.0
        %v1017 = vmax.f32 %v888, 0.0
        %v1018 = vld [vmem:[#allocation2] sm:$0xf]
        %v1019 = vadd.f32 %v890, %v894
        %v1020 = vadd.f32 %v1019, %v898
        %v1021 = vadd.f32 %v1020, %v902
        %v1022 = vadd.f32 %v1021, %v906
        %v1023 = vadd.f32 %v1022, %v910
        %v1024 = vadd.f32 %v1023, %v914
        %v1025 = vadd.f32 %v1024, %v918
        %v1026 = vadd.f32 %v1025, %v922
        %v1027 = vadd.f32 %v1026, %v926
        %v1028 = vadd.f32 %v1027, %v930
        %v1029 = vadd.f32 %v1028, %v934
        %v1030 = vadd.f32 %v1029, %v938
        %v1031 = vadd.f32 %v1030, %v942
        %v1032 = vadd.f32 %v1031, %v946
        %v1033 = vadd.f32 %v1032, %v950
        %v1034 = vadd.f32 %v1033, %v954
        %v1035 = vadd.f32 %v1034, %v958
        %v1036 = vadd.f32 %v1035, %v962
        %v1037 = vadd.f32 %v1036, %v966
        %v1038 = vadd.f32 %v1037, %v970
        %v1039 = vadd.f32 %v1038, %v974
        %v1040 = vadd.f32 %v1039, %v978
        %v1041 = vadd.f32 %v1040, %v982
        %v1042 = vadd.f32 %v1041, %v986
        %v1043 = vadd.f32 %v1042, %v990
        %v1044 = vadd.f32 %v1043, %v994
        %v1045 = vadd.f32 %v1044, %v998
        %v1046 = vadd.f32 %v1045, %v1002
        %v1047 = vadd.f32 %v1046, %v1006
        %v1048 = vadd.f32 %v1047, %v1010
        %v1049 = vadd.f32 %v1048, %v1014
        %v1050 = vrot.slane %v1049, 4
        %v1051 = vadd.f32 %v1049, %v1050
        %v1052 = vrot.slane %v1051, 2
        %v1053 = vadd.f32 %v1051, %v1052
        %v1054 = vrot.slane %v1053, 1
        %v1055 = vadd.f32 %v1053, %v1054
        %v1056 = vadd.f32 %v891, %v895
        %v1057 = vadd.f32 %v1056, %v899
        %v1058 = vadd.f32 %v1057, %v903
        %v1059 = vadd.f32 %v1058, %v907
        %v1060 = vadd.f32 %v1059, %v911
        %v1061 = vadd.f32 %v1060, %v915
        %v1062 = vadd.f32 %v1061, %v919
        %v1063 = vadd.f32 %v1062, %v923
        %v1064 = vadd.f32 %v1063, %v927
        %v1065 = vadd.f32 %v1064, %v931
        %v1066 = vadd.f32 %v1065, %v935
        %v1067 = vadd.f32 %v1066, %v939
        %v1068 = vadd.f32 %v1067, %v943
        %v1069 = vadd.f32 %v1068, %v947
        %v1070 = vadd.f32 %v1069, %v951
        %v1071 = vadd.f32 %v1070, %v955
        %v1072 = vadd.f32 %v1071, %v959
        %v1073 = vadd.f32 %v1072, %v963
        %v1074 = vadd.f32 %v1073, %v967
        %v1075 = vadd.f32 %v1074, %v971
        %v1076 = vadd.f32 %v1075, %v975
        %v1077 = vadd.f32 %v1076, %v979
        %v1078 = vadd.f32 %v1077, %v983
        %v1079 = vadd.f32 %v1078, %v987
        %v1080 = vadd.f32 %v1079, %v991
        %v1081 = vadd.f32 %v1080, %v995
        %v1082 = vadd.f32 %v1081, %v999
        %v1083 = vadd.f32 %v1082, %v1003
        %v1084 = vadd.f32 %v1083, %v1007
        %v1085 = vadd.f32 %v1084, %v1011
        %v1086 = vadd.f32 %v1085, %v1015
        %v1087 = vrot.slane %v1086, 4
        %v1088 = vadd.f32 %v1086, %v1087
        %v1089 = vrot.slane %v1088, 2
        %v1090 = vadd.f32 %v1088, %v1089
        %v1091 = vrot.slane %v1090, 1
        %v1092 = vadd.f32 %v1090, %v1091
        %v1093 = vadd.f32 %v892, %v896
        %v1094 = vadd.f32 %v1093, %v900
        %v1095 = vadd.f32 %v1094, %v904
        %v1096 = vadd.f32 %v1095, %v908
        %v1097 = vadd.f32 %v1096, %v912
        %v1098 = vadd.f32 %v1097, %v916
        %v1099 = vadd.f32 %v1098, %v920
        %v1100 = vadd.f32 %v1099, %v924
        %v1101 = vadd.f32 %v1100, %v928
        %v1102 = vadd.f32 %v1101, %v932
        %v1103 = vadd.f32 %v1102, %v936
        %v1104 = vadd.f32 %v1103, %v940
        %v1105 = vadd.f32 %v1104, %v944
        %v1106 = vadd.f32 %v1105, %v948
        %v1107 = vadd.f32 %v1106, %v952
        %v1108 = vadd.f32 %v1107, %v956
        %v1109 = vadd.f32 %v1108, %v960
        %v1110 = vadd.f32 %v1109, %v964
        %v1111 = vadd.f32 %v1110, %v968
        %v1112 = vadd.f32 %v1111, %v972
        %v1113 = vadd.f32 %v1112, %v976
        %v1114 = vadd.f32 %v1113, %v980
        %v1115 = vadd.f32 %v1114, %v984
        %v1116 = vadd.f32 %v1115, %v988
        %v1117 = vadd.f32 %v1116, %v992
        %v1118 = vadd.f32 %v1117, %v996
        %v1119 = vadd.f32 %v1118, %v1000
        %v1120 = vadd.f32 %v1119, %v1004
        %v1121 = vadd.f32 %v1120, %v1008
        %v1122 = vadd.f32 %v1121, %v1012
        %v1123 = vadd.f32 %v1122, %v1016
        %v1124 = vrot.slane %v1123, 4
        %v1125 = vadd.f32 %v1123, %v1124
        %v1126 = vrot.slane %v1125, 2
        %v1127 = vadd.f32 %v1125, %v1126
        %v1128 = vrot.slane %v1127, 1
        %v1129 = vadd.f32 %v1127, %v1128
        %v1130 = vadd.f32 %v893, %v897
        %v1131 = vadd.f32 %v1130, %v901
        %v1132 = vadd.f32 %v1131, %v905
        %v1133 = vadd.f32 %v1132, %v909
        %v1134 = vadd.f32 %v1133, %v913
        %v1135 = vadd.f32 %v1134, %v917
        %v1136 = vadd.f32 %v1135, %v921
        %v1137 = vadd.f32 %v1136, %v925
        %v1138 = vadd.f32 %v1137, %v929
        %v1139 = vadd.f32 %v1138, %v933
        %v1140 = vadd.f32 %v1139, %v937
        %v1141 = vadd.f32 %v1140, %v941
        %v1142 = vadd.f32 %v1141, %v945
        %v1143 = vadd.f32 %v1142, %v949
        %v1144 = vadd.f32 %v1143, %v953
        %v1145 = vadd.f32 %v1144, %v957
        %v1146 = vadd.f32 %v1145, %v961
        %v1147 = vadd.f32 %v1146, %v965
        %v1148 = vadd.f32 %v1147, %v969
        %v1149 = vadd.f32 %v1148, %v973
        %v1150 = vadd.f32 %v1149, %v977
        %v1151 = vadd.f32 %v1150, %v981
        %v1152 = vadd.f32 %v1151, %v985
        %v1153 = vadd.f32 %v1152, %v989
        %v1154 = vadd.f32 %v1153, %v993
        %v1155 = vadd.f32 %v1154, %v997
        %v1156 = vadd.f32 %v1155, %v1001
        %v1157 = vadd.f32 %v1156, %v1005
        %v1158 = vadd.f32 %v1157, %v1009
        %v1159 = vadd.f32 %v1158, %v1013
        %v1160 = vadd.f32 %v1159, %v1017
        %v1161 = vrot.slane %v1160, 4
        %v1162 = vadd.f32 %v1160, %v1161
        %v1163 = vrot.slane %v1162, 2
        %v1164 = vadd.f32 %v1162, %v1163
        %v1165 = vrot.slane %v1164, 1
        %v1166 = vadd.f32 %v1164, %v1165
        %v1171 = vrot.slane %v1092, 7
        %v1172 = vrot.slane %v1129, 6
        %v1173 = vrot.slane %v1166, 5
        %vm1174 = vcmask 1040384
        %v1175 = vsel %vm1174, %v1055, %v1171
        %vm1176 = vcmask 1042434
        %v1177 = vsel %vm1176, %v1172, %v1173
        %vm1178 = vcmask 1041408
        %v1179 = vsel %vm1178, %v1175, %v1177
        %v1181 = vadd.f32 %v1018, %v1179
        %v1182 = vlaneseq
        %vm1183 = vcmp.ge.s32.totalorder %v1182, 0
        %vm1184 = vcmp.lt.s32.totalorder %v1182, 512
        %vm1185 = vmand %vm1183, %vm1184
        %1186 = vst.msk [vmem:[#allocation2] sm:$0xf] %vm1185, %v1181
        // Predicated region
        $region64: #{inception_v3_multitask_forward.2} parent=50 // pred_check
          %p1187 = pneg %p306
        $region65: #{inception_v3_multitask_forward.2} parent=50 // pred_check_branch
          %1189 = sbr.rel (%p1187) target = $region67
        $region66: #{inception_v3_multitask_forward.2} parent=50 // pred_region
          %v1190 = vld [vmem:[#allocation2] sm:$0xf]
          %v1191 = vmul.f32 %v1190, 0.00390625
          %v1193 = vperm.slane %v1191, 0
          %v1194 = vperm.slane %v1191, 1
          %v1195 = vperm.slane %v1191, 2
          %v1196 = vperm.slane %v1191, 3
          %v1201 = vpack.c.bf16 %v1194, %v1193
          %v1202 = vpack.c.bf16 %v1196, %v1195
          %v1205 = vrot.slane %v1201, 3
          %v1206 = vrot.slane %v1202, 6
          %v1207 = vrot.slane %v1202, 1
          %v1210 = vsel %vm1174, %v1201, %v1205
          %v1213 = vsel %vm1176, %v1206, %v1207
          %v1214 = vsel %vm1178, %v1210, %v1213
          %vm1216 = vcmask 1040384
          %vm1217 = vsmask.f32 256
          %vm1218 = vmand %vm1216, %vm1217
          %vm1219 = vcmask 1041409
          %vm1220 = vsmask.f32 1280
          %vm1221 = vmand %vm1219, %vm1220
          %vm1222 = vmor %vm1221, %vm1218
          %vm1223 = vcmask 1042434
          %vm1224 = vsmask.f32 2304
          %vm1225 = vmand %vm1223, %vm1224
          %vm1226 = vmor %vm1225, %vm1222
          %vm1227 = vcmask 1043459
          %vm1228 = vsmask.f32 3328
          %vm1229 = vmand %vm1227, %vm1228
          %vm1230 = vmor %vm1229, %vm1226
          %v1231 = vld [vmem:[%s303] sm:$0xf]
          %v1232 = vsel %vm1230, %v1214, %v1231
          %1233 = vst [vmem:[%s303] sm:$0xf] %v1232
        $region67: #{inception_v3_multitask_forward.2} parent=50 // pred_fallthru
          _
        %s1234 = smul.u32 4, %s23
        %p1235 = scmp.lt.s32.totalorder %s22, 1
        %s1236 = scalar_select %p1235, %s22, 1
        %p1237 = scmp.lt.s32.totalorder %s1234, 15
        %s1238 = scalar_select %p1237, %s1234, 15
        %s1239 = smul.addr %s1236, 16
        %s1240 = sadd.s32 %s1238, %s1239
        %s1241 = scalar_lea.vmem %s3, %s1240
        // Predicated region
        $region68: #{inception_v3_multitask_forward.2} parent=50 // pred_check
          %p1242 = pneg %p136
        $region69: #{inception_v3_multitask_forward.2} parent=50 // pred_check_branch
          %1244 = sbr.rel (%p1242) target = $region71
        $region70: #{inception_v3_multitask_forward.2} parent=50 // pred_region
          %s1245 = smul.u32 4, %s23
        $region71: #{inception_v3_multitask_forward.2} parent=50 // pred_fallthru
          _
      $region51: #{inception_v3_multitask_forward.2} parent=5 // pred_fallthru
        _
      %p1246 = scmp.le.s32.totalorder 2, %s12
      // Predicated region
      $region72: #{inception_v3_multitask_forward.2} parent=5 // pred_check
        %p1247 = pneg %p1246
      $region73: #{inception_v3_multitask_forward.2} parent=5 // pred_check_branch
        %1249 = sbr.rel (%p1247) target = $region75
      $region74: #{inception_v3_multitask_forward.2} parent=5 // pred_region
        %s1250 = ssub.s32 %s12, 2
        // Predicated region
        $region76: #{inception_v3_multitask_forward.2} parent=74 // pred_check
          %p1251 = pneg %p142
        $region77: #{inception_v3_multitask_forward.2} parent=74 // pred_check_branch
          %1253 = sbr.rel (%p1251) target = $region79
        $region78: #{inception_v3_multitask_forward.2} parent=74 // pred_region
          %s1254 = smul.u32 4, %s26
          %p1255 = scmp.lt.s32.totalorder %s25, 1
          %s1256 = scalar_select %p1255, %s25, 1
          %p1257 = scmp.lt.s32.totalorder %s1254, 15
          %s1258 = scalar_select %p1257, %s1254, 15
          %s1259 = smul.addr %s1256, 16
          %s1260 = sadd.s32 %s1258, %s1259
          %s1261 = scalar_lea.vmem %s3, %s1260
        $region79: #{inception_v3_multitask_forward.2} parent=74 // pred_fallthru
          _
      $region75: #{inception_v3_multitask_forward.2} parent=5 // pred_fallthru
        _
    $region6: #{inception_v3_multitask_forward.2} parent=1 // loop_footer
      %s16 = sadd.s32 1, %s12
    $region7: #{inception_v3_multitask_forward.2} parent=1 // loop_footer_branch
      %11 = sbr.rel target = $region3
    $region8: #{inception_v3_multitask_forward.2} parent=1 // loop_exit
      _
    %1262 = vsyncpa [#allocation5], 1
    %s1263 = scalar_lea.sflag [#allocation5], 1
    %1264 = vsyncpa %s1263, 1

// kernel: inception_v3_multitask_forward.3
$region0: #{inception_v3_multitask_forward.3}
  #allocation0 [shape = 'u32[]', space=smem, size = 0x4, offset = 0x4, fixed_abs, tag = 'smem constant byte address 0x4 - core index']
  #allocation1 [shape = 'u32[72,128]{1,0:T(1,128)}', space=vmem, size = 0x9000, scoped, tag = 'internal scratch']
  #allocation2 [shape = 'f32[2,1024]{1,0:T(2,128)}', space=vmem, size = 0x2000, scoped, tag = 'scratch operand']
  %s0 = inlined_call_operand.vmem [shape: bf16[2,2048], index: 0, kind: input, shape index: {}]
  %s1 = inlined_call_operand.vmem [shape: bf16[4,2048,1024], index: 1, kind: input, shape index: {}]
  %s2 = inlined_call_operand.vmem [shape: f32[4,1,1024], index: 2, kind: input, shape index: {}]
  %s3 = inlined_call_operand.vmem [shape: bf16[4,1024,512], index: 3, kind: input, shape index: {}]
  %s4 = inlined_call_operand.vmem [shape: f32[4,1,512], index: 4, kind: input, shape index: {}]
  %s5 = inlined_call_operand.vmem [shape: bf16[4,512,128], index: 5, kind: input, shape index: {}]
  %s6 = inlined_call_operand.vmem [shape: f32[4,1,128], index: 6, kind: input, shape index: {}]
  %s7 = inlined_call_operand.hbm [shape: f32[4,2,128], index: 7, kind: output, shape index: {}]
  %s8 = sld [smem:[#allocation0]]
  $region69: #{inception_v3_multitask_forward.3} parent=0
    _
  %s10 = ssub.s32 1, %s8
  %s11 = scalar_select 0, %s10, %s8
  $region1: #{inception_v3_multitask_forward.3} parent=0
    #allocation3 [shape = 'u8[2048]{0}', space=vmem, size = 0x800, scoped, tag = 'output window, operand 0']
    #allocation4 [shape = 's32[2]{0}', space=sflag, size = 0x8, scoped, tag = 'scoped memory for inception_v3_multitask_forward.3']
    %12 = vsyncpa [#allocation4], 0
    %s13 = scalar_lea.sflag [#allocation4], 1
    %14 = vsyncpa %s13, 0
    loop: start=0, step=1, limit=18
    $region2: #{inception_v3_multitask_forward.3} parent=1 // loop_pre_header
      _
    $region3: #{inception_v3_multitask_forward.3} parent=1 // loop_header
      %s16 = sphi 0, %s20
      %p17 = scmp.ge.s32.totalorder %s16, 18
      %s23 = sphi 0, %s35
      %s24 = sphi 0, %s31
      %s25 = sphi 0, %s23
      %s26 = sphi 0, %s24
      %s27 = sphi 0, %s25
      %s28 = sphi 0, %s26
      %s38 = sphi 0, %s40
      %s41 = sphi 0, %s38
      %s42 = sphi 0, %s41
      %s58 = sphi 0, %s42
      %s66 = sphi 0, %s68
      %s69 = sphi 0, %s66
      %s70 = sphi 0, %s69
      %s86 = sphi 0, %s70
      %s92 = sphi 0, %s94
      %s95 = sphi 0, %s92
      %s96 = sphi 0, %s95
      %s112 = sphi 0, %s96
      %s118 = sphi 0, %s120
      %s121 = sphi 0, %s118
      %s122 = sphi 0, %s121
      %s138 = sphi 0, %s122
      %s144 = sphi 0, %s146
      %s147 = sphi 0, %s144
      %s148 = sphi 0, %s147
      %s164 = sphi 0, %s148
      %s170 = sphi 0, %s172
      %s173 = sphi 0, %s170
      %s174 = sphi 0, %s173
      %s190 = sphi 0, %s174
      %s196 = sphi 0, %s198
      %s199 = sphi 0, %s196
      %s200 = sphi 0, %s199
      %s216 = sphi 0, %s200
      %s222 = sphi 0, %s224
      %s225 = sphi 0, %s222
      %s226 = sphi 0, %s225
      %s242 = sphi 0, %s226
    $region4: #{inception_v3_multitask_forward.3} parent=1 // loop_header_branch
      %19 = sbr.rel (%p17) target = $region8
    $region5: #{inception_v3_multitask_forward.3} parent=1 // loop_body
      %s21 = ssub.s32 %s16, 1
      %s22 = ssub.s32 %s16, 2
      %s29 = sadd.s32 1, %s24
      %p30 = scmp.ge.s32.totalorder %s29, 4
      %s31 = scalar_select %p30, 0, %s29
      %s32 = sadd.s32 1, %s23
      %s33 = scalar_select %p30, %s32, %s23
      %p34 = scmp.ge.s32.totalorder %s33, 4
      %s35 = scalar_select %p34, 0, %s33
      %s36 = ssub.s32 %s24, %s31
      %p37 = scmp.eq.s32.totalorder %s36, 0
      %s39 = sadd.s32 %s38, 1
      %s40 = scalar_select %p37, %s38, %s39
      %p43 = pneg %p37
      %p44 = scmp.eq.s32.totalorder %s16, 15
      %p45 = por %p43, %p44
      %p46 = scmp.ne.s32.totalorder %s38, %s41
      %p47 = scmp.eq.s32.totalorder %s16, 0
      %p48 = por %p46, %p47
      %p49 = scmp.ne.s32.totalorder %s38, %s41
      %p50 = scmp.eq.s32.totalorder %s21, 15
      %p51 = por %p49, %p50
      %p52 = scmp.ne.s32.totalorder %s41, %s42
      %p53 = scmp.eq.s32.totalorder %s21, 0
      %p54 = por %p52, %p53
      %p55 = scmp.ne.s32.totalorder %s41, %s42
      %p56 = scmp.eq.s32.totalorder %s22, 15
      %p57 = por %p55, %p56
      %p59 = scmp.ne.s32.totalorder %s42, %s58
      %p60 = scmp.eq.s32.totalorder %s22, 0
      %p61 = por %p59, %p60
      %s62 = ssub.s32 %s23, %s35
      %s63 = ssub.s32 %s24, %s31
      %s64 = sor.u32 %s62, %s63
      %p65 = scmp.eq.s32.totalorder %s64, 0
      %s67 = sadd.s32 %s66, 1
      %s68 = scalar_select %p65, %s66, %s67
      %p71 = pneg %p65
      %p72 = scmp.eq.s32.totalorder %s16, 15
      %p73 = por %p71, %p72
      %p74 = scmp.ne.s32.totalorder %s66, %s69
      %p75 = scmp.eq.s32.totalorder %s16, 0
      %p76 = por %p74, %p75
      %p77 = scmp.ne.s32.totalorder %s66, %s69
      %p78 = scmp.eq.s32.totalorder %s21, 15
      %p79 = por %p77, %p78
      %p80 = scmp.ne.s32.totalorder %s69, %s70
      %p81 = scmp.eq.s32.totalorder %s21, 0
      %p82 = por %p80, %p81
      %p83 = scmp.ne.s32.totalorder %s69, %s70
      %p84 = scmp.eq.s32.totalorder %s22, 15
      %p85 = por %p83, %p84
      %p87 = scmp.ne.s32.totalorder %s70, %s86
      %p88 = scmp.eq.s32.totalorder %s22, 0
      %p89 = por %p87, %p88
      %s90 = ssub.s32 %s23, %s35
      %p91 = scmp.eq.s32.totalorder %s90, 0
      %s93 = sadd.s32 %s92, 1
      %s94 = scalar_select %p91, %s92, %s93
      %p97 = pneg %p91
      %p98 = scmp.eq.s32.totalorder %s16, 15
      %p99 = por %p97, %p98
      %p100 = scmp.ne.s32.totalorder %s92, %s95
      %p101 = scmp.eq.s32.totalorder %s16, 0
      %p102 = por %p100, %p101
      %p103 = scmp.ne.s32.totalorder %s92, %s95
      %p104 = scmp.eq.s32.totalorder %s21, 15
      %p105 = por %p103, %p104
      %p106 = scmp.ne.s32.totalorder %s95, %s96
      %p107 = scmp.eq.s32.totalorder %s21, 0
      %p108 = por %p106, %p107
      %p109 = scmp.ne.s32.totalorder %s95, %s96
      %p110 = scmp.eq.s32.totalorder %s22, 15
      %p111 = por %p109, %p110
      %p113 = scmp.ne.s32.totalorder %s96, %s112
      %p114 = scmp.eq.s32.totalorder %s22, 0
      %p115 = por %p113, %p114
      %s116 = ssub.s32 %s23, %s35
      %p117 = scmp.eq.s32.totalorder %s116, 0
      %s119 = sadd.s32 %s118, 1
      %s120 = scalar_select %p117, %s118, %s119
      %p123 = pneg %p117
      %p124 = scmp.eq.s32.totalorder %s16, 15
      %p125 = por %p123, %p124
      %p126 = scmp.ne.s32.totalorder %s118, %s121
      %p127 = scmp.eq.s32.totalorder %s16, 0
      %p128 = por %p126, %p127
      %p129 = scmp.ne.s32.totalorder %s118, %s121
      %p130 = scmp.eq.s32.totalorder %s21, 15
      %p131 = por %p129, %p130
      %p132 = scmp.ne.s32.totalorder %s121, %s122
      %p133 = scmp.eq.s32.totalorder %s21, 0
      %p134 = por %p132, %p133
      %p135 = scmp.ne.s32.totalorder %s121, %s122
      %p136 = scmp.eq.s32.totalorder %s22, 15
      %p137 = por %p135, %p136
      %p139 = scmp.ne.s32.totalorder %s122, %s138
      %p140 = scmp.eq.s32.totalorder %s22, 0
      %p141 = por %p139, %p140
      %s142 = ssub.s32 %s23, %s35
      %p143 = scmp.eq.s32.totalorder %s142, 0
      %s145 = sadd.s32 %s144, 1
      %s146 = scalar_select %p143, %s144, %s145
      %p149 = pneg %p143
      %p150 = scmp.eq.s32.totalorder %s16, 15
      %p151 = por %p149, %p150
      %p152 = scmp.ne.s32.totalorder %s144, %s147
      %p153 = scmp.eq.s32.totalorder %s16, 0
      %p154 = por %p152, %p153
      %p155 = scmp.ne.s32.totalorder %s144, %s147
      %p156 = scmp.eq.s32.totalorder %s21, 15
      %p157 = por %p155, %p156
      %p158 = scmp.ne.s32.totalorder %s147, %s148
      %p159 = scmp.eq.s32.totalorder %s21, 0
      %p160 = por %p158, %p159
      %p161 = scmp.ne.s32.totalorder %s147, %s148
      %p162 = scmp.eq.s32.totalorder %s22, 15
      %p163 = por %p161, %p162
      %p165 = scmp.ne.s32.totalorder %s148, %s164
      %p166 = scmp.eq.s32.totalorder %s22, 0
      %p167 = por %p165, %p166
      %s168 = ssub.s32 %s23, %s35
      %p169 = scmp.eq.s32.totalorder %s168, 0
      %s171 = sadd.s32 %s170, 1
      %s172 = scalar_select %p169, %s170, %s171
      %p175 = pneg %p169
      %p176 = scmp.eq.s32.totalorder %s16, 15
      %p177 = por %p175, %p176
      %p178 = scmp.ne.s32.totalorder %s170, %s173
      %p179 = scmp.eq.s32.totalorder %s16, 0
      %p180 = por %p178, %p179
      %p181 = scmp.ne.s32.totalorder %s170, %s173
      %p182 = scmp.eq.s32.totalorder %s21, 15
      %p183 = por %p181, %p182
      %p184 = scmp.ne.s32.totalorder %s173, %s174
      %p185 = scmp.eq.s32.totalorder %s21, 0
      %p186 = por %p184, %p185
      %p187 = scmp.ne.s32.totalorder %s173, %s174
      %p188 = scmp.eq.s32.totalorder %s22, 15
      %p189 = por %p187, %p188
      %p191 = scmp.ne.s32.totalorder %s174, %s190
      %p192 = scmp.eq.s32.totalorder %s22, 0
      %p193 = por %p191, %p192
      %s194 = ssub.s32 %s23, %s35
      %p195 = scmp.eq.s32.totalorder %s194, 0
      %s197 = sadd.s32 %s196, 1
      %s198 = scalar_select %p195, %s196, %s197
      %p201 = pneg %p195
      %p202 = scmp.eq.s32.totalorder %s16, 15
      %p203 = por %p201, %p202
      %p204 = scmp.ne.s32.totalorder %s196, %s199
      %p205 = scmp.eq.s32.totalorder %s16, 0
      %p206 = por %p204, %p205
      %p207 = scmp.ne.s32.totalorder %s196, %s199
      %p208 = scmp.eq.s32.totalorder %s21, 15
      %p209 = por %p207, %p208
      %p210 = scmp.ne.s32.totalorder %s199, %s200
      %p211 = scmp.eq.s32.totalorder %s21, 0
      %p212 = por %p210, %p211
      %p213 = scmp.ne.s32.totalorder %s199, %s200
      %p214 = scmp.eq.s32.totalorder %s22, 15
      %p215 = por %p213, %p214
      %p217 = scmp.ne.s32.totalorder %s200, %s216
      %p218 = scmp.eq.s32.totalorder %s22, 0
      %p219 = por %p217, %p218
      %s220 = ssub.s32 %s23, %s35
      %p221 = scmp.eq.s32.totalorder %s220, 0
      %s223 = sadd.s32 %s222, 1
      %s224 = scalar_select %p221, %s222, %s223
      %p227 = pneg %p221
      %p228 = scmp.eq.s32.totalorder %s16, 15
      %p229 = por %p227, %p228
      %p230 = scmp.ne.s32.totalorder %s222, %s225
      %p231 = scmp.eq.s32.totalorder %s16, 0
      %p232 = por %p230, %p231
      %p233 = scmp.ne.s32.totalorder %s222, %s225
      %p234 = scmp.eq.s32.totalorder %s21, 15
      %p235 = por %p233, %p234
      %p236 = scmp.ne.s32.totalorder %s225, %s226
      %p237 = scmp.eq.s32.totalorder %s21, 0
      %p238 = por %p236, %p237
      %p239 = scmp.ne.s32.totalorder %s225, %s226
      %p240 = scmp.eq.s32.totalorder %s22, 15
      %p241 = por %p239, %p240
      %p243 = scmp.ne.s32.totalorder %s226, %s242
      %p244 = scmp.eq.s32.totalorder %s22, 0
      %p245 = por %p243, %p244
      %p246 = scmp.le.s32.totalorder 1, %s16
      %p247 = scmp.lt.s32.totalorder %s16, 17
      %p248 = pnand %p246, %p247
      %p249 = pneg %p248
      // Predicated region
      $region9: #{inception_v3_multitask_forward.3} parent=5 // pred_check
        _
      $region10: #{inception_v3_multitask_forward.3} parent=5 // pred_check_branch
        %251 = sbr.rel (%p248) target = $region12
      $region11: #{inception_v3_multitask_forward.3} parent=5 // pred_region
        %s252 = ssub.s32 %s16, 1
      $region12: #{inception_v3_multitask_forward.3} parent=5 // pred_fallthru
        _
      %p253 = scmp.lt.s32.totalorder %s16, 16
      // Predicated region
      $region13: #{inception_v3_multitask_forward.3} parent=5 // pred_check
        %p254 = pneg %p253
      $region14: #{inception_v3_multitask_forward.3} parent=5 // pred_check_branch
        %256 = sbr.rel (%p254) target = $region16
      $region15: #{inception_v3_multitask_forward.3} parent=5 // pred_region
        // Predicated region
        $region17: #{inception_v3_multitask_forward.3} parent=15 // pred_check
          %p257 = pneg %p48
        $region18: #{inception_v3_multitask_forward.3} parent=15 // pred_check_branch
          %259 = sbr.rel (%p257) target = $region20
        $region19: #{inception_v3_multitask_forward.3} parent=15 // pred_region
          %s260 = smul.u32 4, %s24
          %p261 = scmp.lt.s32.totalorder %s260, 15
          %s262 = scalar_select %p261, %s260, 15
          %s263 = scalar_lea.vmem %s0, %s262
          %s264 = smul.u32 4, %s24
        $region20: #{inception_v3_multitask_forward.3} parent=15 // pred_fallthru
          _
        // Predicated region
        $region21: #{inception_v3_multitask_forward.3} parent=15 // pred_check
          %p265 = pneg %p76
        $region22: #{inception_v3_multitask_forward.3} parent=15 // pred_check_branch
          %267 = sbr.rel (%p265) target = $region24
        $region23: #{inception_v3_multitask_forward.3} parent=15 // pred_region
          %s268 = smul.u32 64, %s24
          %p269 = scmp.lt.s32.totalorder %s23, 3
          %s270 = scalar_select %p269, %s23, 3
          %p271 = scmp.lt.s32.totalorder %s268, 255
          %s272 = scalar_select %p271, %s268, 255
          %s273 = smul.addr %s272, 8
          %s274 = smul.addr %s270, 2048
          %s275 = sadd.s32 %s273, %s274
          %s276 = smul.addr %s275, 4
          %s277 = scalar_lea.vmem %s1, %s276
          %s278 = smul.u32 64, %s24
        $region24: #{inception_v3_multitask_forward.3} parent=15 // pred_fallthru
          _
        // Predicated region
        $region25: #{inception_v3_multitask_forward.3} parent=15 // pred_check
          %p279 = pneg %p102
        $region26: #{inception_v3_multitask_forward.3} parent=15 // pred_check_branch
          %281 = sbr.rel (%p279) target = $region28
        $region27: #{inception_v3_multitask_forward.3} parent=15 // pred_region
          %p282 = scmp.lt.s32.totalorder %s23, 3
          %s283 = scalar_select %p282, %s23, 3
          %s284 = smul.addr %s283, 8
          %s285 = scalar_lea.vmem %s2, %s284
        $region28: #{inception_v3_multitask_forward.3} parent=15 // pred_fallthru
          _
        // Predicated region
        $region29: #{inception_v3_multitask_forward.3} parent=15 // pred_check
          %p286 = pneg %p128
        $region30: #{inception_v3_multitask_forward.3} parent=15 // pred_check_branch
          %288 = sbr.rel (%p286) target = $region32
        $region31: #{inception_v3_multitask_forward.3} parent=15 // pred_region
          %p289 = scmp.lt.s32.totalorder %s23, 3
          %s290 = scalar_select %p289, %s23, 3
          %s291 = smul.addr %s290, 512
          %s292 = smul.addr %s291, 4
          %s293 = scalar_lea.vmem %s3, %s292
        $region32: #{inception_v3_multitask_forward.3} parent=15 // pred_fallthru
          _
        // Predicated region
        $region33: #{inception_v3_multitask_forward.3} parent=15 // pred_check
          %p294 = pneg %p154
        $region34: #{inception_v3_multitask_forward.3} parent=15 // pred_check_branch
          %296 = sbr.rel (%p294) target = $region36
        $region35: #{inception_v3_multitask_forward.3} parent=15 // pred_region
          %p297 = scmp.lt.s32.totalorder %s23, 3
          %s298 = scalar_select %p297, %s23, 3
          %s299 = smul.addr %s298, 4
          %s300 = scalar_lea.vmem %s4, %s299
        $region36: #{inception_v3_multitask_forward.3} parent=15 // pred_fallthru
          _
        // Predicated region
        $region37: #{inception_v3_multitask_forward.3} parent=15 // pred_check
          %p301 = pneg %p180
        $region38: #{inception_v3_multitask_forward.3} parent=15 // pred_check_branch
          %303 = sbr.rel (%p301) target = $region40
        $region39: #{inception_v3_multitask_forward.3} parent=15 // pred_region
          %p304 = scmp.lt.s32.totalorder %s23, 3
          %s305 = scalar_select %p304, %s23, 3
          %s306 = smul.addr %s305, 64
          %s307 = smul.addr %s306, 4
          %s308 = scalar_lea.vmem %s5, %s307
        $region40: #{inception_v3_multitask_forward.3} parent=15 // pred_fallthru
          _
        // Predicated region
        $region41: #{inception_v3_multitask_forward.3} parent=15 // pred_check
          %p309 = pneg %p206
        $region42: #{inception_v3_multitask_forward.3} parent=15 // pred_check_branch
          %311 = sbr.rel (%p309) target = $region44
        $region43: #{inception_v3_multitask_forward.3} parent=15 // pred_region
          %p312 = scmp.lt.s32.totalorder %s23, 3
          %s313 = scalar_select %p312, %s23, 3
          %s314 = scalar_lea.vmem %s6, %s313
        $region44: #{inception_v3_multitask_forward.3} parent=15 // pred_fallthru
          _
      $region16: #{inception_v3_multitask_forward.3} parent=5 // pred_fallthru
        _
      %p315 = scmp.le.s32.totalorder 1, %s16
      %p316 = scmp.lt.s32.totalorder %s16, 17
      %p317 = pnand %p315, %p316
      %p318 = pneg %p317
      // Predicated region
      $region45: #{inception_v3_multitask_forward.3} parent=5 // pred_check
        _
      $region46: #{inception_v3_multitask_forward.3} parent=5 // pred_check_branch
        %320 = sbr.rel (%p317) target = $region48
      $region47: #{inception_v3_multitask_forward.3} parent=5 // pred_region
        %s321 = ssub.s32 %s16, 1
        %s322 = smul.u32 4, %s26
        %p323 = scmp.lt.s32.totalorder %s322, 15
        %s324 = scalar_select %p323, %s322, 15
        %s325 = scalar_lea.vmem %s0, %s324
        %p326 = pneg %p54
        %p327 = pneg %p51
        %s328 = smul.u32 64, %s26
        %p329 = scmp.lt.s32.totalorder %s25, 3
        %s330 = scalar_select %p329, %s25, 3
        %p331 = scmp.lt.s32.totalorder %s328, 255
        %s332 = scalar_select %p331, %s328, 255
        %s333 = smul.addr %s332, 8
        %s334 = smul.addr %s330, 2048
        %s335 = sadd.s32 %s333, %s334
        %s336 = smul.addr %s335, 4
        %s337 = scalar_lea.vmem %s1, %s336
        %p338 = pneg %p82
        %p339 = pneg %p79
        %p340 = scmp.lt.s32.totalorder %s25, 3
        %s341 = scalar_select %p340, %s25, 3
        %s342 = smul.addr %s341, 8
        %s343 = scalar_lea.vmem %s2, %s342
        %p344 = pneg %p108
        %p345 = pneg %p105
        %p346 = scmp.lt.s32.totalorder %s25, 3
        %s347 = scalar_select %p346, %s25, 3
        %s348 = smul.addr %s347, 512
        %s349 = smul.addr %s348, 4
        %s350 = scalar_lea.vmem %s3, %s349
        %p351 = pneg %p134
        %p352 = pneg %p131
        %p353 = scmp.lt.s32.totalorder %s25, 3
        %s354 = scalar_select %p353, %s25, 3
        %s355 = smul.addr %s354, 4
        %s356 = scalar_lea.vmem %s4, %s355
        %p357 = pneg %p160
        %p358 = pneg %p157
        %p359 = scmp.lt.s32.totalorder %s25, 3
        %s360 = scalar_select %p359, %s25, 3
        %s361 = smul.addr %s360, 64
        %s362 = smul.addr %s361, 4
        %s363 = scalar_lea.vmem %s5, %s362
        %p364 = pneg %p186
        %p365 = pneg %p183
        %p366 = scmp.lt.s32.totalorder %s25, 3
        %s367 = scalar_select %p366, %s25, 3
        %s368 = scalar_lea.vmem %s6, %s367
        %p369 = pneg %p212
        %p370 = pneg %p209
        %p371 = pneg %p238
        %p372 = pneg %p235
        %s373 = sand.u32 %s225, 1
        %s374 = scalar_lea.sflag [#allocation4], %s373
        %s375 = sand.u32 %s225, 1
        %s376 = smul.addr %s375, 2
        %s377 = scalar_lea.vmem [#allocation3], %s376
        %s378 = smul.u32 4, %s26
        %p379 = scmp.lt.s32.totalorder %s378, 15
        %s380 = scalar_select %p379, %s378, 15
        %s381 = scalar_lea.vmem %s0, %s380
        %s382 = smul.u32 4, %s26
        %s383 = smul.u32 64, %s26
        %p384 = scmp.lt.s32.totalorder %s25, 3
        %s385 = scalar_select %p384, %s25, 3
        %p386 = scmp.lt.s32.totalorder %s383, 255
        %s387 = scalar_select %p386, %s383, 255
        %s388 = smul.addr %s387, 8
        %s389 = smul.addr %s385, 2048
        %s390 = sadd.s32 %s388, %s389
        %s391 = smul.addr %s390, 4
        %s392 = scalar_lea.vmem %s1, %s391
        %s393 = smul.u32 64, %s26
        %p394 = scmp.lt.s32.totalorder %s25, 3
        %s395 = scalar_select %p394, %s25, 3
        %s396 = smul.addr %s395, 8
        %s397 = scalar_lea.vmem %s2, %s396
        %p398 = scmp.lt.s32.totalorder %s25, 3
        %s399 = scalar_select %p398, %s25, 3
        %s400 = smul.addr %s399, 512
        %s401 = smul.addr %s400, 4
        %s402 = scalar_lea.vmem %s3, %s401
        %p403 = scmp.lt.s32.totalorder %s25, 3
        %s404 = scalar_select %p403, %s25, 3
        %s405 = smul.addr %s404, 4
        %s406 = scalar_lea.vmem %s4, %s405
        %p407 = scmp.lt.s32.totalorder %s25, 3
        %s408 = scalar_select %p407, %s25, 3
        %s409 = smul.addr %s408, 64
        %s410 = smul.addr %s409, 4
        %s411 = scalar_lea.vmem %s5, %s410
        %p412 = scmp.lt.s32.totalorder %s25, 3
        %s413 = scalar_select %p412, %s25, 3
        %s414 = scalar_lea.vmem %s6, %s413
        %p415 = scmp.eq.s32.totalorder %s26, 0
        // Predicated region
        $region49: #{inception_v3_multitask_forward.3} parent=47 // pred_check
          %p416 = pneg %p415
        $region50: #{inception_v3_multitask_forward.3} parent=47 // pred_check_branch
          %418 = sbr.rel (%p416) target = $region52
        $region51: #{inception_v3_multitask_forward.3} parent=47 // pred_region
          %419 = vst [vmem:[#allocation2] sm:$0xff] 0.0
          %420 = vst [vmem:[#allocation2 + $0x8] sm:$0xff] 0.0
        $region52: #{inception_v3_multitask_forward.3} parent=47 // pred_fallthru
          _
        %v421 = vld [vmem:[#allocation2] sm:$0xff]
        %v422 = vld [vmem:[#allocation2 + $0x8] sm:$0xff]
        %v423 = vld [vmem:[%s381] sm:$0xf]
        %v424 = vld [vmem:[%s392] sm:$0xff]
        %v425 = vld [vmem:[%s392 + $0x8] sm:$0xff]
        %v426 = vld [vmem:[%s392 + $0x10] sm:$0xff]
        %v427 = vld [vmem:[%s392 + $0x18] sm:$0xff]
        %v428 = vld [vmem:[%s392 + $0x20] sm:$0xff]
        %v429 = vld [vmem:[%s392 + $0x28] sm:$0xff]
        %v430 = vld [vmem:[%s392 + $0x30] sm:$0xff]
        %v431 = vld [vmem:[%s392 + $0x38] sm:$0xff]
        %v432 = vld [vmem:[%s392 + $0x40] sm:$0xff]
        %v433 = vld [vmem:[%s392 + $0x48] sm:$0xff]
        %v434 = vld [vmem:[%s392 + $0x50] sm:$0xff]
        %v435 = vld [vmem:[%s392 + $0x58] sm:$0xff]
        %v436 = vld [vmem:[%s392 + $0x60] sm:$0xff]
        %v437 = vld [vmem:[%s392 + $0x68] sm:$0xff]
        %v438 = vld [vmem:[%s392 + $0x70] sm:$0xff]
        %v439 = vld [vmem:[%s392 + $0x78] sm:$0xff]
        %v440 = vld [vmem:[%s392 + $0x80] sm:$0xff]
        %v441 = vld [vmem:[%s392 + $0x88] sm:$0xff]
        %v442 = vld [vmem:[%s392 + $0x90] sm:$0xff]
        %v443 = vld [vmem:[%s392 + $0x98] sm:$0xff]
        %v444 = vld [vmem:[%s392 + $0xa0] sm:$0xff]
        %v445 = vld [vmem:[%s392 + $0xa8] sm:$0xff]
        %v446 = vld [vmem:[%s392 + $0xb0] sm:$0xff]
        %v447 = vld [vmem:[%s392 + $0xb8] sm:$0xff]
        %v448 = vld [vmem:[%s392 + $0xc0] sm:$0xff]
        %v449 = vld [vmem:[%s392 + $0xc8] sm:$0xff]
        %v450 = vld [vmem:[%s392 + $0xd0] sm:$0xff]
        %v451 = vld [vmem:[%s392 + $0xd8] sm:$0xff]
        %v452 = vld [vmem:[%s392 + $0xe0] sm:$0xff]
        %v453 = vld [vmem:[%s392 + $0xe8] sm:$0xff]
        %v454 = vld [vmem:[%s392 + $0xf0] sm:$0xff]
        %v455 = vld [vmem:[%s392 + $0xf8] sm:$0xff]
        %v456 = vld [vmem:[%s392 + $0x100] sm:$0xff]
        %v457 = vld [vmem:[%s392 + $0x108] sm:$0xff]
        %v458 = vld [vmem:[%s392 + $0x110] sm:$0xff]
        %v459 = vld [vmem:[%s392 + $0x118] sm:$0xff]
        %v460 = vld [vmem:[%s392 + $0x120] sm:$0xff]
        %v461 = vld [vmem:[%s392 + $0x128] sm:$0xff]
        %v462 = vld [vmem:[%s392 + $0x130] sm:$0xff]
        %v463 = vld [vmem:[%s392 + $0x138] sm:$0xff]
        %v464 = vld [vmem:[%s392 + $0x140] sm:$0xff]
        %v465 = vld [vmem:[%s392 + $0x148] sm:$0xff]
        %v466 = vld [vmem:[%s392 + $0x150] sm:$0xff]
        %v467 = vld [vmem:[%s392 + $0x158] sm:$0xff]
        %v468 = vld [vmem:[%s392 + $0x160] sm:$0xff]
        %v469 = vld [vmem:[%s392 + $0x168] sm:$0xff]
        %v470 = vld [vmem:[%s392 + $0x170] sm:$0xff]
        %v471 = vld [vmem:[%s392 + $0x178] sm:$0xff]
        %v472 = vld [vmem:[%s392 + $0x180] sm:$0xff]
        %v473 = vld [vmem:[%s392 + $0x188] sm:$0xff]
        %v474 = vld [vmem:[%s392 + $0x190] sm:$0xff]
        %v475 = vld [vmem:[%s392 + $0x198] sm:$0xff]
        %v476 = vld [vmem:[%s392 + $0x1a0] sm:$0xff]
        %v477 = vld [vmem:[%s392 + $0x1a8] sm:$0xff]
        %v478 = vld [vmem:[%s392 + $0x1b0] sm:$0xff]
        %v479 = vld [vmem:[%s392 + $0x1b8] sm:$0xff]
        %v480 = vld [vmem:[%s392 + $0x1c0] sm:$0xff]
        %v481 = vld [vmem:[%s392 + $0x1c8] sm:$0xff]
        %v482 = vld [vmem:[%s392 + $0x1d0] sm:$0xff]
        %v483 = vld [vmem:[%s392 + $0x1d8] sm:$0xff]
        %v484 = vld [vmem:[%s392 + $0x1e0] sm:$0xff]
        %v485 = vld [vmem:[%s392 + $0x1e8] sm:$0xff]
        %v486 = vld [vmem:[%s392 + $0x1f0] sm:$0xff]
        %v487 = vld [vmem:[%s392 + $0x1f8] sm:$0xff]
        %v488 = vld [vmem:[%s392 + $0x200] sm:$0xff]
        %v489 = vld [vmem:[%s392 + $0x208] sm:$0xff]
        %v490 = vld [vmem:[%s392 + $0x210] sm:$0xff]
        %v491 = vld [vmem:[%s392 + $0x218] sm:$0xff]
        %v492 = vld [vmem:[%s392 + $0x220] sm:$0xff]
        %v493 = vld [vmem:[%s392 + $0x228] sm:$0xff]
        %v494 = vld [vmem:[%s392 + $0x230] sm:$0xff]
        %v495 = vld [vmem:[%s392 + $0x238] sm:$0xff]
        %v496 = vld [vmem:[%s392 + $0x240] sm:$0xff]
        %v497 = vld [vmem:[%s392 + $0x248] sm:$0xff]
        %v498 = vld [vmem:[%s392 + $0x250] sm:$0xff]
        %v499 = vld [vmem:[%s392 + $0x258] sm:$0xff]
        %v500 = vld [vmem:[%s392 + $0x260] sm:$0xff]
        %v501 = vld [vmem:[%s392 + $0x268] sm:$0xff]
        %v502 = vld [vmem:[%s392 + $0x270] sm:$0xff]
        %v503 = vld [vmem:[%s392 + $0x278] sm:$0xff]
        %v504 = vld [vmem:[%s392 + $0x280] sm:$0xff]
        %v505 = vld [vmem:[%s392 + $0x288] sm:$0xff]
        %v506 = vld [vmem:[%s392 + $0x290] sm:$0xff]
        %v507 = vld [vmem:[%s392 + $0x298] sm:$0xff]
        %v508 = vld [vmem:[%s392 + $0x2a0] sm:$0xff]
        %v509 = vld [vmem:[%s392 + $0x2a8] sm:$0xff]
        %v510 = vld [vmem:[%s392 + $0x2b0] sm:$0xff]
        %v511 = vld [vmem:[%s392 + $0x2b8] sm:$0xff]
        %v512 = vld [vmem:[%s392 + $0x2c0] sm:$0xff]
        %v513 = vld [vmem:[%s392 + $0x2c8] sm:$0xff]
        %v514 = vld [vmem:[%s392 + $0x2d0] sm:$0xff]
        %v515 = vld [vmem:[%s392 + $0x2d8] sm:$0xff]
        %v516 = vld [vmem:[%s392 + $0x2e0] sm:$0xff]
        %v517 = vld [vmem:[%s392 + $0x2e8] sm:$0xff]
        %v518 = vld [vmem:[%s392 + $0x2f0] sm:$0xff]
        %v519 = vld [vmem:[%s392 + $0x2f8] sm:$0xff]
        %v520 = vld [vmem:[%s392 + $0x300] sm:$0xff]
        %v521 = vld [vmem:[%s392 + $0x308] sm:$0xff]
        %v522 = vld [vmem:[%s392 + $0x310] sm:$0xff]
        %v523 = vld [vmem:[%s392 + $0x318] sm:$0xff]
        %v524 = vld [vmem:[%s392 + $0x320] sm:$0xff]
        %v525 = vld [vmem:[%s392 + $0x328] sm:$0xff]
        %v526 = vld [vmem:[%s392 + $0x330] sm:$0xff]
        %v527 = vld [vmem:[%s392 + $0x338] sm:$0xff]
        %v528 = vld [vmem:[%s392 + $0x340] sm:$0xff]
        %v529 = vld [vmem:[%s392 + $0x348] sm:$0xff]
        %v530 = vld [vmem:[%s392 + $0x350] sm:$0xff]
        %v531 = vld [vmem:[%s392 + $0x358] sm:$0xff]
        %v532 = vld [vmem:[%s392 + $0x360] sm:$0xff]
        %v533 = vld [vmem:[%s392 + $0x368] sm:$0xff]
        %v534 = vld [vmem:[%s392 + $0x370] sm:$0xff]
        %v535 = vld [vmem:[%s392 + $0x378] sm:$0xff]
        %v536 = vld [vmem:[%s392 + $0x380] sm:$0xff]
        %v537 = vld [vmem:[%s392 + $0x388] sm:$0xff]
        %v538 = vld [vmem:[%s392 + $0x390] sm:$0xff]
        %v539 = vld [vmem:[%s392 + $0x398] sm:$0xff]
        %v540 = vld [vmem:[%s392 + $0x3a0] sm:$0xff]
        %v541 = vld [vmem:[%s392 + $0x3a8] sm:$0xff]
        %v542 = vld [vmem:[%s392 + $0x3b0] sm:$0xff]
        %v543 = vld [vmem:[%s392 + $0x3b8] sm:$0xff]
        %v544 = vld [vmem:[%s392 + $0x3c0] sm:$0xff]
        %v545 = vld [vmem:[%s392 + $0x3c8] sm:$0xff]
        %v546 = vld [vmem:[%s392 + $0x3d0] sm:$0xff]
        %v547 = vld [vmem:[%s392 + $0x3d8] sm:$0xff]
        %v548 = vld [vmem:[%s392 + $0x3e0] sm:$0xff]
        %v549 = vld [vmem:[%s392 + $0x3e8] sm:$0xff]
        %v550 = vld [vmem:[%s392 + $0x3f0] sm:$0xff]
        %v551 = vld [vmem:[%s392 + $0x3f8] sm:$0xff]
        %v552 = vld [vmem:[%s392 + $0x400] sm:$0xff]
        %v553 = vld [vmem:[%s392 + $0x408] sm:$0xff]
        %v554 = vld [vmem:[%s392 + $0x410] sm:$0xff]
        %v555 = vld [vmem:[%s392 + $0x418] sm:$0xff]
        %v556 = vld [vmem:[%s392 + $0x420] sm:$0xff]
        %v557 = vld [vmem:[%s392 + $0x428] sm:$0xff]
        %v558 = vld [vmem:[%s392 + $0x430] sm:$0xff]
        %v559 = vld [vmem:[%s392 + $0x438] sm:$0xff]
        %v560 = vld [vmem:[%s392 + $0x440] sm:$0xff]
        %v561 = vld [vmem:[%s392 + $0x448] sm:$0xff]
        %v562 = vld [vmem:[%s392 + $0x450] sm:$0xff]
        %v563 = vld [vmem:[%s392 + $0x458] sm:$0xff]
        %v564 = vld [vmem:[%s392 + $0x460] sm:$0xff]
        %v565 = vld [vmem:[%s392 + $0x468] sm:$0xff]
        %v566 = vld [vmem:[%s392 + $0x470] sm:$0xff]
        %v567 = vld [vmem:[%s392 + $0x478] sm:$0xff]
        %v568 = vld [vmem:[%s392 + $0x480] sm:$0xff]
        %v569 = vld [vmem:[%s392 + $0x488] sm:$0xff]
        %v570 = vld [vmem:[%s392 + $0x490] sm:$0xff]
        %v571 = vld [vmem:[%s392 + $0x498] sm:$0xff]
        %v572 = vld [vmem:[%s392 + $0x4a0] sm:$0xff]
        %v573 = vld [vmem:[%s392 + $0x4a8] sm:$0xff]
        %v574 = vld [vmem:[%s392 + $0x4b0] sm:$0xff]
        %v575 = vld [vmem:[%s392 + $0x4b8] sm:$0xff]
        %v576 = vld [vmem:[%s392 + $0x4c0] sm:$0xff]
        %v577 = vld [vmem:[%s392 + $0x4c8] sm:$0xff]
        %v578 = vld [vmem:[%s392 + $0x4d0] sm:$0xff]
        %v579 = vld [vmem:[%s392 + $0x4d8] sm:$0xff]
        %v580 = vld [vmem:[%s392 + $0x4e0] sm:$0xff]
        %v581 = vld [vmem:[%s392 + $0x4e8] sm:$0xff]
        %v582 = vld [vmem:[%s392 + $0x4f0] sm:$0xff]
        %v583 = vld [vmem:[%s392 + $0x4f8] sm:$0xff]
        %v584 = vld [vmem:[%s392 + $0x500] sm:$0xff]
        %v585 = vld [vmem:[%s392 + $0x508] sm:$0xff]
        %v586 = vld [vmem:[%s392 + $0x510] sm:$0xff]
        %v587 = vld [vmem:[%s392 + $0x518] sm:$0xff]
        %v588 = vld [vmem:[%s392 + $0x520] sm:$0xff]
        %v589 = vld [vmem:[%s392 + $0x528] sm:$0xff]
        %v590 = vld [vmem:[%s392 + $0x530] sm:$0xff]
        %v591 = vld [vmem:[%s392 + $0x538] sm:$0xff]
        %v592 = vld [vmem:[%s392 + $0x540] sm:$0xff]
        %v593 = vld [vmem:[%s392 + $0x548] sm:$0xff]
        %v594 = vld [vmem:[%s392 + $0x550] sm:$0xff]
        %v595 = vld [vmem:[%s392 + $0x558] sm:$0xff]
        %v596 = vld [vmem:[%s392 + $0x560] sm:$0xff]
        %v597 = vld [vmem:[%s392 + $0x568] sm:$0xff]
        %v598 = vld [vmem:[%s392 + $0x570] sm:$0xff]
        %v599 = vld [vmem:[%s392 + $0x578] sm:$0xff]
        %v600 = vld [vmem:[%s392 + $0x580] sm:$0xff]
        %v601 = vld [vmem:[%s392 + $0x588] sm:$0xff]
        %v602 = vld [vmem:[%s392 + $0x590] sm:$0xff]
        %v603 = vld [vmem:[%s392 + $0x598] sm:$0xff]
        %v604 = vld [vmem:[%s392 + $0x5a0] sm:$0xff]
        %v605 = vld [vmem:[%s392 + $0x5a8] sm:$0xff]
        %v606 = vld [vmem:[%s392 + $0x5b0] sm:$0xff]
        %v607 = vld [vmem:[%s392 + $0x5b8] sm:$0xff]
        %v608 = vld [vmem:[%s392 + $0x5c0] sm:$0xff]
        %v609 = vld [vmem:[%s392 + $0x5c8] sm:$0xff]
        %v610 = vld [vmem:[%s392 + $0x5d0] sm:$0xff]
        %v611 = vld [vmem:[%s392 + $0x5d8] sm:$0xff]
        %v612 = vld [vmem:[%s392 + $0x5e0] sm:$0xff]
        %v613 = vld [vmem:[%s392 + $0x5e8] sm:$0xff]
        %v614 = vld [vmem:[%s392 + $0x5f0] sm:$0xff]
        %v615 = vld [vmem:[%s392 + $0x5f8] sm:$0xff]
        %v616 = vld [vmem:[%s392 + $0x600] sm:$0xff]
        %v617 = vld [vmem:[%s392 + $0x608] sm:$0xff]
        %v618 = vld [vmem:[%s392 + $0x610] sm:$0xff]
        %v619 = vld [vmem:[%s392 + $0x618] sm:$0xff]
        %v620 = vld [vmem:[%s392 + $0x620] sm:$0xff]
        %v621 = vld [vmem:[%s392 + $0x628] sm:$0xff]
        %v622 = vld [vmem:[%s392 + $0x630] sm:$0xff]
        %v623 = vld [vmem:[%s392 + $0x638] sm:$0xff]
        %v624 = vld [vmem:[%s392 + $0x640] sm:$0xff]
        %v625 = vld [vmem:[%s392 + $0x648] sm:$0xff]
        %v626 = vld [vmem:[%s392 + $0x650] sm:$0xff]
        %v627 = vld [vmem:[%s392 + $0x658] sm:$0xff]
        %v628 = vld [vmem:[%s392 + $0x660] sm:$0xff]
        %v629 = vld [vmem:[%s392 + $0x668] sm:$0xff]
        %v630 = vld [vmem:[%s392 + $0x670] sm:$0xff]
        %v631 = vld [vmem:[%s392 + $0x678] sm:$0xff]
        %v632 = vld [vmem:[%s392 + $0x680] sm:$0xff]
        %v633 = vld [vmem:[%s392 + $0x688] sm:$0xff]
        %v634 = vld [vmem:[%s392 + $0x690] sm:$0xff]
        %v635 = vld [vmem:[%s392 + $0x698] sm:$0xff]
        %v636 = vld [vmem:[%s392 + $0x6a0] sm:$0xff]
        %v637 = vld [vmem:[%s392 + $0x6a8] sm:$0xff]
        %v638 = vld [vmem:[%s392 + $0x6b0] sm:$0xff]
        %v639 = vld [vmem:[%s392 + $0x6b8] sm:$0xff]
        %v640 = vld [vmem:[%s392 + $0x6c0] sm:$0xff]
        %v641 = vld [vmem:[%s392 + $0x6c8] sm:$0xff]
        %v642 = vld [vmem:[%s392 + $0x6d0] sm:$0xff]
        %v643 = vld [vmem:[%s392 + $0x6d8] sm:$0xff]
        %v644 = vld [vmem:[%s392 + $0x6e0] sm:$0xff]
        %v645 = vld [vmem:[%s392 + $0x6e8] sm:$0xff]
        %v646 = vld [vmem:[%s392 + $0x6f0] sm:$0xff]
        %v647 = vld [vmem:[%s392 + $0x6f8] sm:$0xff]
        %v648 = vld [vmem:[%s392 + $0x700] sm:$0xff]
        %v649 = vld [vmem:[%s392 + $0x708] sm:$0xff]
        %v650 = vld [vmem:[%s392 + $0x710] sm:$0xff]
        %v651 = vld [vmem:[%s392 + $0x718] sm:$0xff]
        %v652 = vld [vmem:[%s392 + $0x720] sm:$0xff]
        %v653 = vld [vmem:[%s392 + $0x728] sm:$0xff]
        %v654 = vld [vmem:[%s392 + $0x730] sm:$0xff]
        %v655 = vld [vmem:[%s392 + $0x738] sm:$0xff]
        %v656 = vld [vmem:[%s392 + $0x740] sm:$0xff]
        %v657 = vld [vmem:[%s392 + $0x748] sm:$0xff]
        %v658 = vld [vmem:[%s392 + $0x750] sm:$0xff]
        %v659 = vld [vmem:[%s392 + $0x758] sm:$0xff]
        %v660 = vld [vmem:[%s392 + $0x760] sm:$0xff]
        %v661 = vld [vmem:[%s392 + $0x768] sm:$0xff]
        %v662 = vld [vmem:[%s392 + $0x770] sm:$0xff]
        %v663 = vld [vmem:[%s392 + $0x778] sm:$0xff]
        %v664 = vld [vmem:[%s392 + $0x780] sm:$0xff]
        %v665 = vld [vmem:[%s392 + $0x788] sm:$0xff]
        %v666 = vld [vmem:[%s392 + $0x790] sm:$0xff]
        %v667 = vld [vmem:[%s392 + $0x798] sm:$0xff]
        %v668 = vld [vmem:[%s392 + $0x7a0] sm:$0xff]
        %v669 = vld [vmem:[%s392 + $0x7a8] sm:$0xff]
        %v670 = vld [vmem:[%s392 + $0x7b0] sm:$0xff]
        %v671 = vld [vmem:[%s392 + $0x7b8] sm:$0xff]
        %v672 = vld [vmem:[%s392 + $0x7c0] sm:$0xff]
        %v673 = vld [vmem:[%s392 + $0x7c8] sm:$0xff]
        %v674 = vld [vmem:[%s392 + $0x7d0] sm:$0xff]
        %v675 = vld [vmem:[%s392 + $0x7d8] sm:$0xff]
        %v676 = vld [vmem:[%s392 + $0x7e0] sm:$0xff]
        %v677 = vld [vmem:[%s392 + $0x7e8] sm:$0xff]
        %v678 = vld [vmem:[%s392 + $0x7f0] sm:$0xff]
        %v679 = vld [vmem:[%s392 + $0x7f8] sm:$0xff]
        %681 = vst [vmem:[#allocation1] ss:$9 sm:$0xff] %v423
        %v682 = vld [vmem:[#allocation1] sm:$0xff]
        %v683 = vld [vmem:[#allocation1 + $0x9] sm:$0xff]
        %v684 = vld [vmem:[#allocation1 + $0x12] sm:$0xff]
        %v685 = vld [vmem:[#allocation1 + $0x1b] sm:$0xff]
        %v946 = vunpack.c.l.b16 %v424
        %v947 = vunpack.c.h.b16 %v424
        %v948 = vunpack.c.l.b16 %v425
        %v949 = vunpack.c.h.b16 %v425
        %v950 = vunpack.c.l.b16 %v426
        %v951 = vunpack.c.h.b16 %v426
        %v952 = vunpack.c.l.b16 %v427
        %v953 = vunpack.c.h.b16 %v427
        %v954 = vunpack.c.l.b16 %v428
        %v955 = vunpack.c.h.b16 %v428
        %v956 = vunpack.c.l.b16 %v429
        %v957 = vunpack.c.h.b16 %v429
        %v958 = vunpack.c.l.b16 %v430
        %v959 = vunpack.c.h.b16 %v430
        %v960 = vunpack.c.l.b16 %v431
        %v961 = vunpack.c.h.b16 %v431
        %v962 = vunpack.c.l.b16 %v432
        %v963 = vunpack.c.h.b16 %v432
        %v964 = vunpack.c.l.b16 %v433
        %v965 = vunpack.c.h.b16 %v433
        %v966 = vunpack.c.l.b16 %v434
        %v967 = vunpack.c.h.b16 %v434
        %v968 = vunpack.c.l.b16 %v435
        %v969 = vunpack.c.h.b16 %v435
        %v970 = vunpack.c.l.b16 %v436
        %v971 = vunpack.c.h.b16 %v436
        %v972 = vunpack.c.l.b16 %v437
        %v973 = vunpack.c.h.b16 %v437
        %v974 = vunpack.c.l.b16 %v438
        %v975 = vunpack.c.h.b16 %v438
        %v976 = vunpack.c.l.b16 %v439
        %v977 = vunpack.c.h.b16 %v439
        %v978 = vunpack.c.l.b16 %v440
        %v979 = vunpack.c.h.b16 %v440
        %v980 = vunpack.c.l.b16 %v441
        %v981 = vunpack.c.h.b16 %v441
        %v982 = vunpack.c.l.b16 %v442
        %v983 = vunpack.c.h.b16 %v442
        %v984 = vunpack.c.l.b16 %v443
        %v985 = vunpack.c.h.b16 %v443
        %v986 = vunpack.c.l.b16 %v444
        %v987 = vunpack.c.h.b16 %v444
        %v988 = vunpack.c.l.b16 %v445
        %v989 = vunpack.c.h.b16 %v445
        %v990 = vunpack.c.l.b16 %v446
        %v991 = vunpack.c.h.b16 %v446
        %v992 = vunpack.c.l.b16 %v447
        %v993 = vunpack.c.h.b16 %v447
        %v994 = vunpack.c.l.b16 %v448
        %v995 = vunpack.c.h.b16 %v448
        %v996 = vunpack.c.l.b16 %v449
        %v997 = vunpack.c.h.b16 %v449
        %v998 = vunpack.c.l.b16 %v450
        %v999 = vunpack.c.h.b16 %v450
        %v1000 = vunpack.c.l.b16 %v451
        %v1001 = vunpack.c.h.b16 %v451
        %v1002 = vunpack.c.l.b16 %v452
        %v1003 = vunpack.c.h.b16 %v452
        %v1004 = vunpack.c.l.b16 %v453
        %v1005 = vunpack.c.h.b16 %v453
        %v1006 = vunpack.c.l.b16 %v454
        %v1007 = vunpack.c.h.b16 %v454
        %v1008 = vunpack.c.l.b16 %v455
        %v1009 = vunpack.c.h.b16 %v455
        %v1010 = vunpack.c.l.b16 %v456
        %v1011 = vunpack.c.h.b16 %v456
        %v1012 = vunpack.c.l.b16 %v457
        %v1013 = vunpack.c.h.b16 %v457
        %v1014 = vunpack.c.l.b16 %v458
        %v1015 = vunpack.c.h.b16 %v458
        %v1016 = vunpack.c.l.b16 %v459
        %v1017 = vunpack.c.h.b16 %v459
        %v1018 = vunpack.c.l.b16 %v460
        %v1019 = vunpack.c.h.b16 %v460
        %v1020 = vunpack.c.l.b16 %v461
        %v1021 = vunpack.c.h.b16 %v461
        %v1022 = vunpack.c.l.b16 %v462
        %v1023 = vunpack.c.h.b16 %v462
        %v1024 = vunpack.c.l.b16 %v463
        %v1025 = vunpack.c.h.b16 %v463
        %v1026 = vunpack.c.l.b16 %v464
        %v1027 = vunpack.c.h.b16 %v464
        %v1028 = vunpack.c.l.b16 %v465
        %v1029 = vunpack.c.h.b16 %v465
        %v1030 = vunpack.c.l.b16 %v466
        %v1031 = vunpack.c.h.b16 %v466
        %v1032 = vunpack.c.l.b16 %v467
        %v1033 = vunpack.c.h.b16 %v467
        %v1034 = vunpack.c.l.b16 %v468
        %v1035 = vunpack.c.h.b16 %v468
        %v1036 = vunpack.c.l.b16 %v469
        %v1037 = vunpack.c.h.b16 %v469
        %v1038 = vunpack.c.l.b16 %v470
        %v1039 = vunpack.c.h.b16 %v470
        %v1040 = vunpack.c.l.b16 %v471
        %v1041 = vunpack.c.h.b16 %v471
        %v1042 = vunpack.c.l.b16 %v472
        %v1043 = vunpack.c.h.b16 %v472
        %v1044 = vunpack.c.l.b16 %v473
        %v1045 = vunpack.c.h.b16 %v473
        %v1046 = vunpack.c.l.b16 %v474
        %v1047 = vunpack.c.h.b16 %v474
        %v1048 = vunpack.c.l.b16 %v475
        %v1049 = vunpack.c.h.b16 %v475
        %v1050 = vunpack.c.l.b16 %v476
        %v1051 = vunpack.c.h.b16 %v476
        %v1052 = vunpack.c.l.b16 %v477
        %v1053 = vunpack.c.h.b16 %v477
        %v1054 = vunpack.c.l.b16 %v478
        %v1055 = vunpack.c.h.b16 %v478
        %v1056 = vunpack.c.l.b16 %v479
        %v1057 = vunpack.c.h.b16 %v479
        %v1058 = vunpack.c.l.b16 %v480
        %v1059 = vunpack.c.h.b16 %v480
        %v1060 = vunpack.c.l.b16 %v481
        %v1061 = vunpack.c.h.b16 %v481
        %v1062 = vunpack.c.l.b16 %v482
        %v1063 = vunpack.c.h.b16 %v482
        %v1064 = vunpack.c.l.b16 %v483
        %v1065 = vunpack.c.h.b16 %v483
        %v1066 = vunpack.c.l.b16 %v484
        %v1067 = vunpack.c.h.b16 %v484
        %v1068 = vunpack.c.l.b16 %v485
        %v1069 = vunpack.c.h.b16 %v485
        %v1070 = vunpack.c.l.b16 %v486
        %v1071 = vunpack.c.h.b16 %v486
        %v1072 = vunpack.c.l.b16 %v487
        %v1073 = vunpack.c.h.b16 %v487
        %v1074 = vunpack.c.l.b16 %v488
        %v1075 = vunpack.c.h.b16 %v488
        %v1076 = vunpack.c.l.b16 %v489
        %v1077 = vunpack.c.h.b16 %v489
        %v1078 = vunpack.c.l.b16 %v490
        %v1079 = vunpack.c.h.b16 %v490
        %v1080 = vunpack.c.l.b16 %v491
        %v1081 = vunpack.c.h.b16 %v491
        %v1082 = vunpack.c.l.b16 %v492
        %v1083 = vunpack.c.h.b16 %v492
        %v1084 = vunpack.c.l.b16 %v493
        %v1085 = vunpack.c.h.b16 %v493
        %v1086 = vunpack.c.l.b16 %v494
        %v1087 = vunpack.c.h.b16 %v494
        %v1088 = vunpack.c.l.b16 %v495
        %v1089 = vunpack.c.h.b16 %v495
        %v1090 = vunpack.c.l.b16 %v496
        %v1091 = vunpack.c.h.b16 %v496
        %v1092 = vunpack.c.l.b16 %v497
        %v1093 = vunpack.c.h.b16 %v497
        %v1094 = vunpack.c.l.b16 %v498
        %v1095 = vunpack.c.h.b16 %v498
        %v1096 = vunpack.c.l.b16 %v499
        %v1097 = vunpack.c.h.b16 %v499
        %v1098 = vunpack.c.l.b16 %v500
        %v1099 = vunpack.c.h.b16 %v500
        %v1100 = vunpack.c.l.b16 %v501
        %v1101 = vunpack.c.h.b16 %v501
        %v1102 = vunpack.c.l.b16 %v502
        %v1103 = vunpack.c.h.b16 %v502
        %v1104 = vunpack.c.l.b16 %v503
        %v1105 = vunpack.c.h.b16 %v503
        %v1106 = vunpack.c.l.b16 %v504
        %v1107 = vunpack.c.h.b16 %v504
        %v1108 = vunpack.c.l.b16 %v505
        %v1109 = vunpack.c.h.b16 %v505
        %v1110 = vunpack.c.l.b16 %v506
        %v1111 = vunpack.c.h.b16 %v506
        %v1112 = vunpack.c.l.b16 %v507
        %v1113 = vunpack.c.h.b16 %v507
        %v1114 = vunpack.c.l.b16 %v508
        %v1115 = vunpack.c.h.b16 %v508
        %v1116 = vunpack.c.l.b16 %v509
        %v1117 = vunpack.c.h.b16 %v509
        %v1118 = vunpack.c.l.b16 %v510
        %v1119 = vunpack.c.h.b16 %v510
        %v1120 = vunpack.c.l.b16 %v511
        %v1121 = vunpack.c.h.b16 %v511
        %v1122 = vunpack.c.l.b16 %v512
        %v1123 = vunpack.c.h.b16 %v512
        %v1124 = vunpack.c.l.b16 %v513
        %v1125 = vunpack.c.h.b16 %v513
        %v1126 = vunpack.c.l.b16 %v514
        %v1127 = vunpack.c.h.b16 %v514
        %v1128 = vunpack.c.l.b16 %v515
        %v1129 = vunpack.c.h.b16 %v515
        %v1130 = vunpack.c.l.b16 %v516
        %v1131 = vunpack.c.h.b16 %v516
        %v1132 = vunpack.c.l.b16 %v517
        %v1133 = vunpack.c.h.b16 %v517
        %v1134 = vunpack.c.l.b16 %v518
        %v1135 = vunpack.c.h.b16 %v518
        %v1136 = vunpack.c.l.b16 %v519
        %v1137 = vunpack.c.h.b16 %v519
        %v1138 = vunpack.c.l.b16 %v520
        %v1139 = vunpack.c.h.b16 %v520
        %v1140 = vunpack.c.l.b16 %v521
        %v1141 = vunpack.c.h.b16 %v521
        %v1142 = vunpack.c.l.b16 %v522
        %v1143 = vunpack.c.h.b16 %v522
        %v1144 = vunpack.c.l.b16 %v523
        %v1145 = vunpack.c.h.b16 %v523
        %v1146 = vunpack.c.l.b16 %v524
        %v1147 = vunpack.c.h.b16 %v524
        %v1148 = vunpack.c.l.b16 %v525
        %v1149 = vunpack.c.h.b16 %v525
        %v1150 = vunpack.c.l.b16 %v526
        %v1151 = vunpack.c.h.b16 %v526
        %v1152 = vunpack.c.l.b16 %v527
        %v1153 = vunpack.c.h.b16 %v527
        %v1154 = vunpack.c.l.b16 %v528
        %v1155 = vunpack.c.h.b16 %v528
        %v1156 = vunpack.c.l.b16 %v529
        %v1157 = vunpack.c.h.b16 %v529
        %v1158 = vunpack.c.l.b16 %v530
        %v1159 = vunpack.c.h.b16 %v530
        %v1160 = vunpack.c.l.b16 %v531
        %v1161 = vunpack.c.h.b16 %v531
        %v1162 = vunpack.c.l.b16 %v532
        %v1163 = vunpack.c.h.b16 %v532
        %v1164 = vunpack.c.l.b16 %v533
        %v1165 = vunpack.c.h.b16 %v533
        %v1166 = vunpack.c.l.b16 %v534
        %v1167 = vunpack.c.h.b16 %v534
        %v1168 = vunpack.c.l.b16 %v535
        %v1169 = vunpack.c.h.b16 %v535
        %v1170 = vunpack.c.l.b16 %v536
        %v1171 = vunpack.c.h.b16 %v536
        %v1172 = vunpack.c.l.b16 %v537
        %v1173 = vunpack.c.h.b16 %v537
        %v1174 = vunpack.c.l.b16 %v538
        %v1175 = vunpack.c.h.b16 %v538
        %v1176 = vunpack.c.l.b16 %v539
        %v1177 = vunpack.c.h.b16 %v539
        %v1178 = vunpack.c.l.b16 %v540
        %v1179 = vunpack.c.h.b16 %v540
        %v1180 = vunpack.c.l.b16 %v541
        %v1181 = vunpack.c.h.b16 %v541
        %v1182 = vunpack.c.l.b16 %v542
        %v1183 = vunpack.c.h.b16 %v542
        %v1184 = vunpack.c.l.b16 %v543
        %v1185 = vunpack.c.h.b16 %v543
        %v1186 = vunpack.c.l.b16 %v544
        %v1187 = vunpack.c.h.b16 %v544
        %v1188 = vunpack.c.l.b16 %v545
        %v1189 = vunpack.c.h.b16 %v545
        %v1190 = vunpack.c.l.b16 %v546
        %v1191 = vunpack.c.h.b16 %v546
        %v1192 = vunpack.c.l.b16 %v547
        %v1193 = vunpack.c.h.b16 %v547
        %v1194 = vunpack.c.l.b16 %v548
        %v1195 = vunpack.c.h.b16 %v548
        %v1196 = vunpack.c.l.b16 %v549
        %v1197 = vunpack.c.h.b16 %v549
        %v1198 = vunpack.c.l.b16 %v550
        %v1199 = vunpack.c.h.b16 %v550
        %v1200 = vunpack.c.l.b16 %v551
        %v1201 = vunpack.c.h.b16 %v551
        %v1202 = vunpack.c.l.b16 %v552
        %v1203 = vunpack.c.h.b16 %v552
        %v1204 = vunpack.c.l.b16 %v553
        %v1205 = vunpack.c.h.b16 %v553
        %v1206 = vunpack.c.l.b16 %v554
        %v1207 = vunpack.c.h.b16 %v554
        %v1208 = vunpack.c.l.b16 %v555
        %v1209 = vunpack.c.h.b16 %v555
        %v1210 = vunpack.c.l.b16 %v556
        %v1211 = vunpack.c.h.b16 %v556
        %v1212 = vunpack.c.l.b16 %v557
        %v1213 = vunpack.c.h.b16 %v557
        %v1214 = vunpack.c.l.b16 %v558
        %v1215 = vunpack.c.h.b16 %v558
        %v1216 = vunpack.c.l.b16 %v559
        %v1217 = vunpack.c.h.b16 %v559
        %v1218 = vunpack.c.l.b16 %v560
        %v1219 = vunpack.c.h.b16 %v560
        %v1220 = vunpack.c.l.b16 %v561
        %v1221 = vunpack.c.h.b16 %v561
        %v1222 = vunpack.c.l.b16 %v562
        %v1223 = vunpack.c.h.b16 %v562
        %v1224 = vunpack.c.l.b16 %v563
        %v1225 = vunpack.c.h.b16 %v563
        %v1226 = vunpack.c.l.b16 %v564
        %v1227 = vunpack.c.h.b16 %v564
        %v1228 = vunpack.c.l.b16 %v565
        %v1229 = vunpack.c.h.b16 %v565
        %v1230 = vunpack.c.l.b16 %v566
        %v1231 = vunpack.c.h.b16 %v566
        %v1232 = vunpack.c.l.b16 %v567
        %v1233 = vunpack.c.h.b16 %v567
        %v1234 = vunpack.c.l.b16 %v568
        %v1235 = vunpack.c.h.b16 %v568
        %v1236 = vunpack.c.l.b16 %v569
        %v1237 = vunpack.c.h.b16 %v569
        %v1238 = vunpack.c.l.b16 %v570
        %v1239 = vunpack.c.h.b16 %v570
        %v1240 = vunpack.c.l.b16 %v571
        %v1241 = vunpack.c.h.b16 %v571
        %v1242 = vunpack.c.l.b16 %v572
        %v1243 = vunpack.c.h.b16 %v572
        %v1244 = vunpack.c.l.b16 %v573
        %v1245 = vunpack.c.h.b16 %v573
        %v1246 = vunpack.c.l.b16 %v574
        %v1247 = vunpack.c.h.b16 %v574
        %v1248 = vunpack.c.l.b16 %v575
        %v1249 = vunpack.c.h.b16 %v575
        %v1250 = vunpack.c.l.b16 %v576
        %v1251 = vunpack.c.h.b16 %v576
        %v1252 = vunpack.c.l.b16 %v577
        %v1253 = vunpack.c.h.b16 %v577
        %v1254 = vunpack.c.l.b16 %v578
        %v1255 = vunpack.c.h.b16 %v578
        %v1256 = vunpack.c.l.b16 %v579
        %v1257 = vunpack.c.h.b16 %v579
        %v1258 = vunpack.c.l.b16 %v580
        %v1259 = vunpack.c.h.b16 %v580
        %v1260 = vunpack.c.l.b16 %v581
        %v1261 = vunpack.c.h.b16 %v581
        %v1262 = vunpack.c.l.b16 %v582
        %v1263 = vunpack.c.h.b16 %v582
        %v1264 = vunpack.c.l.b16 %v583
        %v1265 = vunpack.c.h.b16 %v583
        %v1266 = vunpack.c.l.b16 %v584
        %v1267 = vunpack.c.h.b16 %v584
        %v1268 = vunpack.c.l.b16 %v585
        %v1269 = vunpack.c.h.b16 %v585
        %v1270 = vunpack.c.l.b16 %v586
        %v1271 = vunpack.c.h.b16 %v586
        %v1272 = vunpack.c.l.b16 %v587
        %v1273 = vunpack.c.h.b16 %v587
        %v1274 = vunpack.c.l.b16 %v588
        %v1275 = vunpack.c.h.b16 %v588
        %v1276 = vunpack.c.l.b16 %v589
        %v1277 = vunpack.c.h.b16 %v589
        %v1278 = vunpack.c.l.b16 %v590
        %v1279 = vunpack.c.h.b16 %v590
        %v1280 = vunpack.c.l.b16 %v591
        %v1281 = vunpack.c.h.b16 %v591
        %v1282 = vunpack.c.l.b16 %v592
        %v1283 = vunpack.c.h.b16 %v592
        %v1284 = vunpack.c.l.b16 %v593
        %v1285 = vunpack.c.h.b16 %v593
        %v1286 = vunpack.c.l.b16 %v594
        %v1287 = vunpack.c.h.b16 %v594
        %v1288 = vunpack.c.l.b16 %v595
        %v1289 = vunpack.c.h.b16 %v595
        %v1290 = vunpack.c.l.b16 %v596
        %v1291 = vunpack.c.h.b16 %v596
        %v1292 = vunpack.c.l.b16 %v597
        %v1293 = vunpack.c.h.b16 %v597
        %v1294 = vunpack.c.l.b16 %v598
        %v1295 = vunpack.c.h.b16 %v598
        %v1296 = vunpack.c.l.b16 %v599
        %v1297 = vunpack.c.h.b16 %v599
        %v1298 = vunpack.c.l.b16 %v600
        %v1299 = vunpack.c.h.b16 %v600
        %v1300 = vunpack.c.l.b16 %v601
        %v1301 = vunpack.c.h.b16 %v601
        %v1302 = vunpack.c.l.b16 %v602
        %v1303 = vunpack.c.h.b16 %v602
        %v1304 = vunpack.c.l.b16 %v603
        %v1305 = vunpack.c.h.b16 %v603
        %v1306 = vunpack.c.l.b16 %v604
        %v1307 = vunpack.c.h.b16 %v604
        %v1308 = vunpack.c.l.b16 %v605
        %v1309 = vunpack.c.h.b16 %v605
        %v1310 = vunpack.c.l.b16 %v606
        %v1311 = vunpack.c.h.b16 %v606
        %v1312 = vunpack.c.l.b16 %v607
        %v1313 = vunpack.c.h.b16 %v607
        %v1314 = vunpack.c.l.b16 %v608
        %v1315 = vunpack.c.h.b16 %v608
        %v1316 = vunpack.c.l.b16 %v609
        %v1317 = vunpack.c.h.b16 %v609
        %v1318 = vunpack.c.l.b16 %v610
        %v1319 = vunpack.c.h.b16 %v610
        %v1320 = vunpack.c.l.b16 %v611
        %v1321 = vunpack.c.h.b16 %v611
        %v1322 = vunpack.c.l.b16 %v612
        %v1323 = vunpack.c.h.b16 %v612
        %v1324 = vunpack.c.l.b16 %v613
        %v1325 = vunpack.c.h.b16 %v613
        %v1326 = vunpack.c.l.b16 %v614
        %v1327 = vunpack.c.h.b16 %v614
        %v1328 = vunpack.c.l.b16 %v615
        %v1329 = vunpack.c.h.b16 %v615
        %v1330 = vunpack.c.l.b16 %v616
        %v1331 = vunpack.c.h.b16 %v616
        %v1332 = vunpack.c.l.b16 %v617
        %v1333 = vunpack.c.h.b16 %v617
        %v1334 = vunpack.c.l.b16 %v618
        %v1335 = vunpack.c.h.b16 %v618
        %v1336 = vunpack.c.l.b16 %v619
        %v1337 = vunpack.c.h.b16 %v619
        %v1338 = vunpack.c.l.b16 %v620
        %v1339 = vunpack.c.h.b16 %v620
        %v1340 = vunpack.c.l.b16 %v621
        %v1341 = vunpack.c.h.b16 %v621
        %v1342 = vunpack.c.l.b16 %v622
        %v1343 = vunpack.c.h.b16 %v622
        %v1344 = vunpack.c.l.b16 %v623
        %v1345 = vunpack.c.h.b16 %v623
        %v1346 = vunpack.c.l.b16 %v624
        %v1347 = vunpack.c.h.b16 %v624
        %v1348 = vunpack.c.l.b16 %v625
        %v1349 = vunpack.c.h.b16 %v625
        %v1350 = vunpack.c.l.b16 %v626
        %v1351 = vunpack.c.h.b16 %v626
        %v1352 = vunpack.c.l.b16 %v627
        %v1353 = vunpack.c.h.b16 %v627
        %v1354 = vunpack.c.l.b16 %v628
        %v1355 = vunpack.c.h.b16 %v628
        %v1356 = vunpack.c.l.b16 %v629
        %v1357 = vunpack.c.h.b16 %v629
        %v1358 = vunpack.c.l.b16 %v630
        %v1359 = vunpack.c.h.b16 %v630
        %v1360 = vunpack.c.l.b16 %v631
        %v1361 = vunpack.c.h.b16 %v631
        %v1362 = vunpack.c.l.b16 %v632
        %v1363 = vunpack.c.h.b16 %v632
        %v1364 = vunpack.c.l.b16 %v633
        %v1365 = vunpack.c.h.b16 %v633
        %v1366 = vunpack.c.l.b16 %v634
        %v1367 = vunpack.c.h.b16 %v634
        %v1368 = vunpack.c.l.b16 %v635
        %v1369 = vunpack.c.h.b16 %v635
        %v1370 = vunpack.c.l.b16 %v636
        %v1371 = vunpack.c.h.b16 %v636
        %v1372 = vunpack.c.l.b16 %v637
        %v1373 = vunpack.c.h.b16 %v637
        %v1374 = vunpack.c.l.b16 %v638
        %v1375 = vunpack.c.h.b16 %v638
        %v1376 = vunpack.c.l.b16 %v639
        %v1377 = vunpack.c.h.b16 %v639
        %v1378 = vunpack.c.l.b16 %v640
        %v1379 = vunpack.c.h.b16 %v640
        %v1380 = vunpack.c.l.b16 %v641
        %v1381 = vunpack.c.h.b16 %v641
        %v1382 = vunpack.c.l.b16 %v642
        %v1383 = vunpack.c.h.b16 %v642
        %v1384 = vunpack.c.l.b16 %v643
        %v1385 = vunpack.c.h.b16 %v643
        %v1386 = vunpack.c.l.b16 %v644
        %v1387 = vunpack.c.h.b16 %v644
        %v1388 = vunpack.c.l.b16 %v645
        %v1389 = vunpack.c.h.b16 %v645
        %v1390 = vunpack.c.l.b16 %v646
        %v1391 = vunpack.c.h.b16 %v646
        %v1392 = vunpack.c.l.b16 %v647
        %v1393 = vunpack.c.h.b16 %v647
        %v1394 = vunpack.c.l.b16 %v648
        %v1395 = vunpack.c.h.b16 %v648
        %v1396 = vunpack.c.l.b16 %v649
        %v1397 = vunpack.c.h.b16 %v649
        %v1398 = vunpack.c.l.b16 %v650
        %v1399 = vunpack.c.h.b16 %v650
        %v1400 = vunpack.c.l.b16 %v651
        %v1401 = vunpack.c.h.b16 %v651
        %v1402 = vunpack.c.l.b16 %v652
        %v1403 = vunpack.c.h.b16 %v652
        %v1404 = vunpack.c.l.b16 %v653
        %v1405 = vunpack.c.h.b16 %v653
        %v1406 = vunpack.c.l.b16 %v654
        %v1407 = vunpack.c.h.b16 %v654
        %v1408 = vunpack.c.l.b16 %v655
        %v1409 = vunpack.c.h.b16 %v655
        %v1410 = vunpack.c.l.b16 %v656
        %v1411 = vunpack.c.h.b16 %v656
        %v1412 = vunpack.c.l.b16 %v657
        %v1413 = vunpack.c.h.b16 %v657
        %v1414 = vunpack.c.l.b16 %v658
        %v1415 = vunpack.c.h.b16 %v658
        %v1416 = vunpack.c.l.b16 %v659
        %v1417 = vunpack.c.h.b16 %v659
        %v1418 = vunpack.c.l.b16 %v660
        %v1419 = vunpack.c.h.b16 %v660
        %v1420 = vunpack.c.l.b16 %v661
        %v1421 = vunpack.c.h.b16 %v661
        %v1422 = vunpack.c.l.b16 %v662
        %v1423 = vunpack.c.h.b16 %v662
        %v1424 = vunpack.c.l.b16 %v663
        %v1425 = vunpack.c.h.b16 %v663
        %v1426 = vunpack.c.l.b16 %v664
        %v1427 = vunpack.c.h.b16 %v664
        %v1428 = vunpack.c.l.b16 %v665
        %v1429 = vunpack.c.h.b16 %v665
        %v1430 = vunpack.c.l.b16 %v666
        %v1431 = vunpack.c.h.b16 %v666
        %v1432 = vunpack.c.l.b16 %v667
        %v1433 = vunpack.c.h.b16 %v667
        %v1434 = vunpack.c.l.b16 %v668
        %v1435 = vunpack.c.h.b16 %v668
        %v1436 = vunpack.c.l.b16 %v669
        %v1437 = vunpack.c.h.b16 %v669
        %v1438 = vunpack.c.l.b16 %v670
        %v1439 = vunpack.c.h.b16 %v670
        %v1440 = vunpack.c.l.b16 %v671
        %v1441 = vunpack.c.h.b16 %v671
        %v1442 = vunpack.c.l.b16 %v672
        %v1443 = vunpack.c.h.b16 %v672
        %v1444 = vunpack.c.l.b16 %v673
        %v1445 = vunpack.c.h.b16 %v673
        %v1446 = vunpack.c.l.b16 %v674
        %v1447 = vunpack.c.h.b16 %v674
        %v1448 = vunpack.c.l.b16 %v675
        %v1449 = vunpack.c.h.b16 %v675
        %v1450 = vunpack.c.l.b16 %v676
        %v1451 = vunpack.c.h.b16 %v676
        %v1452 = vunpack.c.l.b16 %v677
        %v1453 = vunpack.c.h.b16 %v677
        %v1454 = vunpack.c.l.b16 %v678
        %v1455 = vunpack.c.h.b16 %v678
        %v1456 = vunpack.c.l.b16 %v679
        %v1457 = vunpack.c.h.b16 %v679
        %v1458 = vpack.c.b16 %v954, %v946
        %v1459 = vpack.c.b16 %v955, %v947
        %v1460 = vpack.c.b16 %v956, %v948
        %v1461 = vpack.c.b16 %v957, %v949
        %v1462 = vpack.c.b16 %v958, %v950
        %v1463 = vpack.c.b16 %v959, %v951
        %v1464 = vpack.c.b16 %v960, %v952
        %v1465 = vpack.c.b16 %v961, %v953
        %v1466 = vpack.c.b16 %v970, %v962
        %v1467 = vpack.c.b16 %v971, %v963
        %v1468 = vpack.c.b16 %v972, %v964
        %v1469 = vpack.c.b16 %v973, %v965
        %v1470 = vpack.c.b16 %v974, %v966
        %v1471 = vpack.c.b16 %v975, %v967
        %v1472 = vpack.c.b16 %v976, %v968
        %v1473 = vpack.c.b16 %v977, %v969
        %v1474 = vpack.c.b16 %v986, %v978
        %v1475 = vpack.c.b16 %v987, %v979
        %v1476 = vpack.c.b16 %v988, %v980
        %v1477 = vpack.c.b16 %v989, %v981
        %v1478 = vpack.c.b16 %v990, %v982
        %v1479 = vpack.c.b16 %v991, %v983
        %v1480 = vpack.c.b16 %v992, %v984
        %v1481 = vpack.c.b16 %v993, %v985
        %v1482 = vpack.c.b16 %v1002, %v994
        %v1483 = vpack.c.b16 %v1003, %v995
        %v1484 = vpack.c.b16 %v1004, %v996
        %v1485 = vpack.c.b16 %v1005, %v997
        %v1486 = vpack.c.b16 %v1006, %v998
        %v1487 = vpack.c.b16 %v1007, %v999
        %v1488 = vpack.c.b16 %v1008, %v1000
        %v1489 = vpack.c.b16 %v1009, %v1001
        %v1490 = vpack.c.b16 %v1018, %v1010
        %v1491 = vpack.c.b16 %v1019, %v1011
        %v1492 = vpack.c.b16 %v1020, %v1012
        %v1493 = vpack.c.b16 %v1021, %v1013
        %v1494 = vpack.c.b16 %v1022, %v1014
        %v1495 = vpack.c.b16 %v1023, %v1015
        %v1496 = vpack.c.b16 %v1024, %v1016
        %v1497 = vpack.c.b16 %v1025, %v1017
        %v1498 = vpack.c.b16 %v1034, %v1026
        %v1499 = vpack.c.b16 %v1035, %v1027
        %v1500 = vpack.c.b16 %v1036, %v1028
        %v1501 = vpack.c.b16 %v1037, %v1029
        %v1502 = vpack.c.b16 %v1038, %v1030
        %v1503 = vpack.c.b16 %v1039, %v1031
        %v1504 = vpack.c.b16 %v1040, %v1032
        %v1505 = vpack.c.b16 %v1041, %v1033
        %v1506 = vpack.c.b16 %v1050, %v1042
        %v1507 = vpack.c.b16 %v1051, %v1043
        %v1508 = vpack.c.b16 %v1052, %v1044
        %v1509 = vpack.c.b16 %v1053, %v1045
        %v1510 = vpack.c.b16 %v1054, %v1046
        %v1511 = vpack.c.b16 %v1055, %v1047
        %v1512 = vpack.c.b16 %v1056, %v1048
        %v1513 = vpack.c.b16 %v1057, %v1049
        %v1514 = vpack.c.b16 %v1066, %v1058
        %v1515 = vpack.c.b16 %v1067, %v1059
        %v1516 = vpack.c.b16 %v1068, %v1060
        %v1517 = vpack.c.b16 %v1069, %v1061
        %v1518 = vpack.c.b16 %v1070, %v1062
        %v1519 = vpack.c.b16 %v1071, %v1063
        %v1520 = vpack.c.b16 %v1072, %v1064
        %v1521 = vpack.c.b16 %v1073, %v1065
        %v1522 = vpack.c.b16 %v1082, %v1074
        %v1523 = vpack.c.b16 %v1083, %v1075
        %v1524 = vpack.c.b16 %v1084, %v1076
        %v1525 = vpack.c.b16 %v1085, %v1077
        %v1526 = vpack.c.b16 %v1086, %v1078
        %v1527 = vpack.c.b16 %v1087, %v1079
        %v1528 = vpack.c.b16 %v1088, %v1080
        %v1529 = vpack.c.b16 %v1089, %v1081
        %v1530 = vpack.c.b16 %v1098, %v1090
        %v1531 = vpack.c.b16 %v1099, %v1091
        %v1532 = vpack.c.b16 %v1100, %v1092
        %v1533 = vpack.c.b16 %v1101, %v1093
        %v1534 = vpack.c.b16 %v1102, %v1094
        %v1535 = vpack.c.b16 %v1103, %v1095
        %v1536 = vpack.c.b16 %v1104, %v1096
        %v1537 = vpack.c.b16 %v1105, %v1097
        %v1538 = vpack.c.b16 %v1114, %v1106
        %v1539 = vpack.c.b16 %v1115, %v1107
        %v1540 = vpack.c.b16 %v1116, %v1108
        %v1541 = vpack.c.b16 %v1117, %v1109
        %v1542 = vpack.c.b16 %v1118, %v1110
        %v1543 = vpack.c.b16 %v1119, %v1111
        %v1544 = vpack.c.b16 %v1120, %v1112
        %v1545 = vpack.c.b16 %v1121, %v1113
        %v1546 = vpack.c.b16 %v1130, %v1122
        %v1547 = vpack.c.b16 %v1131, %v1123
        %v1548 = vpack.c.b16 %v1132, %v1124
        %v1549 = vpack.c.b16 %v1133, %v1125
        %v1550 = vpack.c.b16 %v1134, %v1126
        %v1551 = vpack.c.b16 %v1135, %v1127
        %v1552 = vpack.c.b16 %v1136, %v1128
        %v1553 = vpack.c.b16 %v1137, %v1129
        %v1554 = vpack.c.b16 %v1146, %v1138
        %v1555 = vpack.c.b16 %v1147, %v1139
        %v1556 = vpack.c.b16 %v1148, %v1140
        %v1557 = vpack.c.b16 %v1149, %v1141
        %v1558 = vpack.c.b16 %v1150, %v1142
        %v1559 = vpack.c.b16 %v1151, %v1143
        %v1560 = vpack.c.b16 %v1152, %v1144
        %v1561 = vpack.c.b16 %v1153, %v1145
        %v1562 = vpack.c.b16 %v1162, %v1154
        %v1563 = vpack.c.b16 %v1163, %v1155
        %v1564 = vpack.c.b16 %v1164, %v1156
        %v1565 = vpack.c.b16 %v1165, %v1157
        %v1566 = vpack.c.b16 %v1166, %v1158
        %v1567 = vpack.c.b16 %v1167, %v1159
        %v1568 = vpack.c.b16 %v1168, %v1160
        %v1569 = vpack.c.b16 %v1169, %v1161
        %v1570 = vpack.c.b16 %v1178, %v1170
        %v1571 = vpack.c.b16 %v1179, %v1171
        %v1572 = vpack.c.b16 %v1180, %v1172
        %v1573 = vpack.c.b16 %v1181, %v1173
        %v1574 = vpack.c.b16 %v1182, %v1174
        %v1575 = vpack.c.b16 %v1183, %v1175
        %v1576 = vpack.c.b16 %v1184, %v1176
        %v1577 = vpack.c.b16 %v1185, %v1177
        %v1578 = vpack.c.b16 %v1194, %v1186
        %v1579 = vpack.c.b16 %v1195, %v1187
        %v1580 = vpack.c.b16 %v1196, %v1188
        %v1581 = vpack.c.b16 %v1197, %v1189
        %v1582 = vpack.c.b16 %v1198, %v1190
        %v1583 = vpack.c.b16 %v1199, %v1191
        %v1584 = vpack.c.b16 %v1200, %v1192
        %v1585 = vpack.c.b16 %v1201, %v1193
        %v1586 = vpack.c.b16 %v1210, %v1202
        %v1587 = vpack.c.b16 %v1211, %v1203
        %v1588 = vpack.c.b16 %v1212, %v1204
        %v1589 = vpack.c.b16 %v1213, %v1205
        %v1590 = vpack.c.b16 %v1214, %v1206
        %v1591 = vpack.c.b16 %v1215, %v1207
        %v1592 = vpack.c.b16 %v1216, %v1208
        %v1593 = vpack.c.b16 %v1217, %v1209
        %v1594 = vpack.c.b16 %v1226, %v1218
        %v1595 = vpack.c.b16 %v1227, %v1219
        %v1596 = vpack.c.b16 %v1228, %v1220
        %v1597 = vpack.c.b16 %v1229, %v1221
        %v1598 = vpack.c.b16 %v1230, %v1222
        %v1599 = vpack.c.b16 %v1231, %v1223
        %v1600 = vpack.c.b16 %v1232, %v1224
        %v1601 = vpack.c.b16 %v1233, %v1225
        %v1602 = vpack.c.b16 %v1242, %v1234
        %v1603 = vpack.c.b16 %v1243, %v1235
        %v1604 = vpack.c.b16 %v1244, %v1236
        %v1605 = vpack.c.b16 %v1245, %v1237
        %v1606 = vpack.c.b16 %v1246, %v1238
        %v1607 = vpack.c.b16 %v1247, %v1239
        %v1608 = vpack.c.b16 %v1248, %v1240
        %v1609 = vpack.c.b16 %v1249, %v1241
        %v1610 = vpack.c.b16 %v1258, %v1250
        %v1611 = vpack.c.b16 %v1259, %v1251
        %v1612 = vpack.c.b16 %v1260, %v1252
        %v1613 = vpack.c.b16 %v1261, %v1253
        %v1614 = vpack.c.b16 %v1262, %v1254
        %v1615 = vpack.c.b16 %v1263, %v1255
        %v1616 = vpack.c.b16 %v1264, %v1256
        %v1617 = vpack.c.b16 %v1265, %v1257
        %v1618 = vpack.c.b16 %v1274, %v1266
        %v1619 = vpack.c.b16 %v1275, %v1267
        %v1620 = vpack.c.b16 %v1276, %v1268
        %v1621 = vpack.c.b16 %v1277, %v1269
        %v1622 = vpack.c.b16 %v1278, %v1270
        %v1623 = vpack.c.b16 %v1279, %v1271
        %v1624 = vpack.c.b16 %v1280, %v1272
        %v1625 = vpack.c.b16 %v1281, %v1273
        %v1626 = vpack.c.b16 %v1290, %v1282
        %v1627 = vpack.c.b16 %v1291, %v1283
        %v1628 = vpack.c.b16 %v1292, %v1284
        %v1629 = vpack.c.b16 %v1293, %v1285
        %v1630 = vpack.c.b16 %v1294, %v1286
        %v1631 = vpack.c.b16 %v1295, %v1287
        %v1632 = vpack.c.b16 %v1296, %v1288
        %v1633 = vpack.c.b16 %v1297, %v1289
        %v1634 = vpack.c.b16 %v1306, %v1298
        %v1635 = vpack.c.b16 %v1307, %v1299
        %v1636 = vpack.c.b16 %v1308, %v1300
        %v1637 = vpack.c.b16 %v1309, %v1301
        %v1638 = vpack.c.b16 %v1310, %v1302
        %v1639 = vpack.c.b16 %v1311, %v1303
        %v1640 = vpack.c.b16 %v1312, %v1304
        %v1641 = vpack.c.b16 %v1313, %v1305
        %v1642 = vpack.c.b16 %v1322, %v1314
        %v1643 = vpack.c.b16 %v1323, %v1315
        %v1644 = vpack.c.b16 %v1324, %v1316
        %v1645 = vpack.c.b16 %v1325, %v1317
        %v1646 = vpack.c.b16 %v1326, %v1318
        %v1647 = vpack.c.b16 %v1327, %v1319
        %v1648 = vpack.c.b16 %v1328, %v1320
        %v1649 = vpack.c.b16 %v1329, %v1321
        %v1650 = vpack.c.b16 %v1338, %v1330
        %v1651 = vpack.c.b16 %v1339, %v1331
        %v1652 = vpack.c.b16 %v1340, %v1332
        %v1653 = vpack.c.b16 %v1341, %v1333
        %v1654 = vpack.c.b16 %v1342, %v1334
        %v1655 = vpack.c.b16 %v1343, %v1335
        %v1656 = vpack.c.b16 %v1344, %v1336
        %v1657 = vpack.c.b16 %v1345, %v1337
        %v1658 = vpack.c.b16 %v1354, %v1346
        %v1659 = vpack.c.b16 %v1355, %v1347
        %v1660 = vpack.c.b16 %v1356, %v1348
        %v1661 = vpack.c.b16 %v1357, %v1349
        %v1662 = vpack.c.b16 %v1358, %v1350
        %v1663 = vpack.c.b16 %v1359, %v1351
        %v1664 = vpack.c.b16 %v1360, %v1352
        %v1665 = vpack.c.b16 %v1361, %v1353
        %v1666 = vpack.c.b16 %v1370, %v1362
        %v1667 = vpack.c.b16 %v1371, %v1363
        %v1668 = vpack.c.b16 %v1372, %v1364
        %v1669 = vpack.c.b16 %v1373, %v1365
        %v1670 = vpack.c.b16 %v1374, %v1366
        %v1671 = vpack.c.b16 %v1375, %v1367
        %v1672 = vpack.c.b16 %v1376, %v1368
        %v1673 = vpack.c.b16 %v1377, %v1369
        %v1674 = vpack.c.b16 %v1386, %v1378
        %v1675 = vpack.c.b16 %v1387, %v1379
        %v1676 = vpack.c.b16 %v1388, %v1380
        %v1677 = vpack.c.b16 %v1389, %v1381
        %v1678 = vpack.c.b16 %v1390, %v1382
        %v1679 = vpack.c.b16 %v1391, %v1383
        %v1680 = vpack.c.b16 %v1392, %v1384
        %v1681 = vpack.c.b16 %v1393, %v1385
        %v1682 = vpack.c.b16 %v1402, %v1394
        %v1683 = vpack.c.b16 %v1403, %v1395
        %v1684 = vpack.c.b16 %v1404, %v1396
        %v1685 = vpack.c.b16 %v1405, %v1397
        %v1686 = vpack.c.b16 %v1406, %v1398
        %v1687 = vpack.c.b16 %v1407, %v1399
        %v1688 = vpack.c.b16 %v1408, %v1400
        %v1689 = vpack.c.b16 %v1409, %v1401
        %v1690 = vpack.c.b16 %v1418, %v1410
        %v1691 = vpack.c.b16 %v1419, %v1411
        %v1692 = vpack.c.b16 %v1420, %v1412
        %v1693 = vpack.c.b16 %v1421, %v1413
        %v1694 = vpack.c.b16 %v1422, %v1414
        %v1695 = vpack.c.b16 %v1423, %v1415
        %v1696 = vpack.c.b16 %v1424, %v1416
        %v1697 = vpack.c.b16 %v1425, %v1417
        %v1698 = vpack.c.b16 %v1434, %v1426
        %v1699 = vpack.c.b16 %v1435, %v1427
        %v1700 = vpack.c.b16 %v1436, %v1428
        %v1701 = vpack.c.b16 %v1437, %v1429
        %v1702 = vpack.c.b16 %v1438, %v1430
        %v1703 = vpack.c.b16 %v1439, %v1431
        %v1704 = vpack.c.b16 %v1440, %v1432
        %v1705 = vpack.c.b16 %v1441, %v1433
        %v1706 = vpack.c.b16 %v1450, %v1442
        %v1707 = vpack.c.b16 %v1451, %v1443
        %v1708 = vpack.c.b16 %v1452, %v1444
        %v1709 = vpack.c.b16 %v1453, %v1445
        %v1710 = vpack.c.b16 %v1454, %v1446
        %v1711 = vpack.c.b16 %v1455, %v1447
        %v1712 = vpack.c.b16 %v1456, %v1448
        %v1713 = vpack.c.b16 %v1457, %v1449
        %1970 = vmatpush.bf16.msra.mxu0 %v1514
        %1971 = vmatpush.bf16.msra.mxu0 %v1506
        %1972 = vmatpush.bf16.msra.mxu0 %v1498
        %1973 = vmatpush.bf16.msra.mxu0 %v1490
        %1974 = vmatpush.bf16.msra.mxu0 %v1482
        %1975 = vmatpush.bf16.msra.mxu0 %v1474
        %1976 = vmatpush.bf16.msra.mxu0 %v1466
        %1977 = vmatpush.bf16.msra.mxu0 %v1458
        %1978 = vmatmul.bf16.gmra.mxu0 %v682
        %v1979 = vpop.f32.mrf.mxu0
        %v1980 = vadd.f32 0.0, %v1979
        %v1981 = vpop.f32.mrf.mxu0
        %1982 = vdwg.mxu0
        %1983 = vmatpush.bf16.msra.mxu0 %v1578
        %1984 = vmatpush.bf16.msra.mxu0 %v1570
        %1985 = vmatpush.bf16.msra.mxu0 %v1562
        %1986 = vmatpush.bf16.msra.mxu0 %v1554
        %1987 = vmatpush.bf16.msra.mxu0 %v1546
        %1988 = vmatpush.bf16.msra.mxu0 %v1538
        %1989 = vmatpush.bf16.msra.mxu0 %v1530
        %1990 = vmatpush.bf16.msra.mxu0 %v1522
        %1991 = vmatmul.bf16.gmra.mxu0 %v683
        %v1992 = vpop.f32.mrf.mxu0
        %v1993 = vadd.f32 %v1980, %v1992
        %v1994 = vpop.f32.mrf.mxu0
        %1995 = vdwg.mxu0
        %1996 = vmatpush.bf16.msra.mxu0 %v1642
        %1997 = vmatpush.bf16.msra.mxu0 %v1634
        %1998 = vmatpush.bf16.msra.mxu0 %v1626
        %1999 = vmatpush.bf16.msra.mxu0 %v1618
        %2000 = vmatpush.bf16.msra.mxu0 %v1610
        %2001 = vmatpush.bf16.msra.mxu0 %v1602
        %2002 = vmatpush.bf16.msra.mxu0 %v1594
        %2003 = vmatpush.bf16.msra.mxu0 %v1586
        %2004 = vmatmul.bf16.gmra.mxu0 %v684
        %v2005 = vpop.f32.mrf.mxu0
        %v2006 = vadd.f32 %v1993, %v2005
        %v2007 = vpop.f32.mrf.mxu0
        %2008 = vdwg.mxu0
        %2009 = vmatpush.bf16.msra.mxu0 %v1706
        %2010 = vmatpush.bf16.msra.mxu0 %v1698
        %2011 = vmatpush.bf16.msra.mxu0 %v1690
        %2012 = vmatpush.bf16.msra.mxu0 %v1682
        %2013 = vmatpush.bf16.msra.mxu0 %v1674
        %2014 = vmatpush.bf16.msra.mxu0 %v1666
        %2015 = vmatpush.bf16.msra.mxu0 %v1658
        %2016 = vmatpush.bf16.msra.mxu0 %v1650
        %2017 = vmatmul.bf16.gmra.mxu0 %v685
        %v2018 = vpop.f32.mrf.mxu0
        %v2019 = vadd.f32 %v2006, %v2018
        %v2020 = vpop.f32.mrf.mxu0
        %2021 = vdwg.mxu0
        %2022 = vmatpush.bf16.msra.mxu0 %v1515
        %2023 = vmatpush.bf16.msra.mxu0 %v1507
        %2024 = vmatpush.bf16.msra.mxu0 %v1499
        %2025 = vmatpush.bf16.msra.mxu0 %v1491
        %2026 = vmatpush.bf16.msra.mxu0 %v1483
        %2027 = vmatpush.bf16.msra.mxu0 %v1475
        %2028 = vmatpush.bf16.msra.mxu0 %v1467
        %2029 = vmatpush.bf16.msra.mxu0 %v1459
        %2030 = vmatmul.bf16.gmra.mxu0 %v682
        %v2031 = vpop.f32.mrf.mxu0
        %v2032 = vadd.f32 0.0, %v2031
        %v2033 = vpop.f32.mrf.mxu0
        %2034 = vdwg.mxu0
        %2035 = vmatpush.bf16.msra.mxu0 %v1579
        %2036 = vmatpush.bf16.msra.mxu0 %v1571
        %2037 = vmatpush.bf16.msra.mxu0 %v1563
        %2038 = vmatpush.bf16.msra.mxu0 %v1555
        %2039 = vmatpush.bf16.msra.mxu0 %v1547
        %2040 = vmatpush.bf16.msra.mxu0 %v1539
        %2041 = vmatpush.bf16.msra.mxu0 %v1531
        %2042 = vmatpush.bf16.msra.mxu0 %v1523
        %2043 = vmatmul.bf16.gmra.mxu0 %v683
        %v2044 = vpop.f32.mrf.mxu0
        %v2045 = vadd.f32 %v2032, %v2044
        %v2046 = vpop.f32.mrf.mxu0
        %2047 = vdwg.mxu0
        %2048 = vmatpush.bf16.msra.mxu0 %v1643
        %2049 = vmatpush.bf16.msra.mxu0 %v1635
        %2050 = vmatpush.bf16.msra.mxu0 %v1627
        %2051 = vmatpush.bf16.msra.mxu0 %v1619
        %2052 = vmatpush.bf16.msra.mxu0 %v1611
        %2053 = vmatpush.bf16.msra.mxu0 %v1603
        %2054 = vmatpush.bf16.msra.mxu0 %v1595
        %2055 = vmatpush.bf16.msra.mxu0 %v1587
        %2056 = vmatmul.bf16.gmra.mxu0 %v684
        %v2057 = vpop.f32.mrf.mxu0
        %v2058 = vadd.f32 %v2045, %v2057
        %v2059 = vpop.f32.mrf.mxu0
        %2060 = vdwg.mxu0
        %2061 = vmatpush.bf16.msra.mxu0 %v1707
        %2062 = vmatpush.bf16.msra.mxu0 %v1699
        %2063 = vmatpush.bf16.msra.mxu0 %v1691
        %2064 = vmatpush.bf16.msra.mxu0 %v1683
        %2065 = vmatpush.bf16.msra.mxu0 %v1675
        %2066 = vmatpush.bf16.msra.mxu0 %v1667
        %2067 = vmatpush.bf16.msra.mxu0 %v1659
        %2068 = vmatpush.bf16.msra.mxu0 %v1651
        %2069 = vmatmul.bf16.gmra.mxu0 %v685
        %v2070 = vpop.f32.mrf.mxu0
        %v2071 = vadd.f32 %v2058, %v2070
        %v2072 = vpop.f32.mrf.mxu0
        %2073 = vdwg.mxu0
        %2074 = vmatpush.bf16.msra.mxu0 %v1516
        %2075 = vmatpush.bf16.msra.mxu0 %v1508
        %2076 = vmatpush.bf16.msra.mxu0 %v1500
        %2077 = vmatpush.bf16.msra.mxu0 %v1492
        %2078 = vmatpush.bf16.msra.mxu0 %v1484
        %2079 = vmatpush.bf16.msra.mxu0 %v1476
        %2080 = vmatpush.bf16.msra.mxu0 %v1468
        %2081 = vmatpush.bf16.msra.mxu0 %v1460
        %2082 = vmatmul.bf16.gmra.mxu0 %v682
        %v2083 = vpop.f32.mrf.mxu0
        %v2084 = vadd.f32 0.0, %v2083
        %v2085 = vpop.f32.mrf.mxu0
        %2086 = vdwg.mxu0
        %2087 = vmatpush.bf16.msra.mxu0 %v1580
        %2088 = vmatpush.bf16.msra.mxu0 %v1572
        %2089 = vmatpush.bf16.msra.mxu0 %v1564
        %2090 = vmatpush.bf16.msra.mxu0 %v1556
        %2091 = vmatpush.bf16.msra.mxu0 %v1548
        %2092 = vmatpush.bf16.msra.mxu0 %v1540
        %2093 = vmatpush.bf16.msra.mxu0 %v1532
        %2094 = vmatpush.bf16.msra.mxu0 %v1524
        %2095 = vmatmul.bf16.gmra.mxu0 %v683
        %v2096 = vpop.f32.mrf.mxu0
        %v2097 = vadd.f32 %v2084, %v2096
        %v2098 = vpop.f32.mrf.mxu0
        %2099 = vdwg.mxu0
        %2100 = vmatpush.bf16.msra.mxu0 %v1644
        %2101 = vmatpush.bf16.msra.mxu0 %v1636
        %2102 = vmatpush.bf16.msra.mxu0 %v1628
        %2103 = vmatpush.bf16.msra.mxu0 %v1620
        %2104 = vmatpush.bf16.msra.mxu0 %v1612
        %2105 = vmatpush.bf16.msra.mxu0 %v1604
        %2106 = vmatpush.bf16.msra.mxu0 %v1596
        %2107 = vmatpush.bf16.msra.mxu0 %v1588
        %2108 = vmatmul.bf16.gmra.mxu0 %v684
        %v2109 = vpop.f32.mrf.mxu0
        %v2110 = vadd.f32 %v2097, %v2109
        %v2111 = vpop.f32.mrf.mxu0
        %2112 = vdwg.mxu0
        %2113 = vmatpush.bf16.msra.mxu0 %v1708
        %2114 = vmatpush.bf16.msra.mxu0 %v1700
        %2115 = vmatpush.bf16.msra.mxu0 %v1692
        %2116 = vmatpush.bf16.msra.mxu0 %v1684
        %2117 = vmatpush.bf16.msra.mxu0 %v1676
        %2118 = vmatpush.bf16.msra.mxu0 %v1668
        %2119 = vmatpush.bf16.msra.mxu0 %v1660
        %2120 = vmatpush.bf16.msra.mxu0 %v1652
        %2121 = vmatmul.bf16.gmra.mxu0 %v685
        %v2122 = vpop.f32.mrf.mxu0
        %v2123 = vadd.f32 %v2110, %v2122
        %v2124 = vpop.f32.mrf.mxu0
        %2125 = vdwg.mxu0
        %2126 = vmatpush.bf16.msra.mxu0 %v1517
        %2127 = vmatpush.bf16.msra.mxu0 %v1509
        %2128 = vmatpush.bf16.msra.mxu0 %v1501
        %2129 = vmatpush.bf16.msra.mxu0 %v1493
        %2130 = vmatpush.bf16.msra.mxu0 %v1485
        %2131 = vmatpush.bf16.msra.mxu0 %v1477
        %2132 = vmatpush.bf16.msra.mxu0 %v1469
        %2133 = vmatpush.bf16.msra.mxu0 %v1461
        %2134 = vmatmul.bf16.gmra.mxu0 %v682
        %v2135 = vpop.f32.mrf.mxu0
        %v2136 = vadd.f32 0.0, %v2135
        %v2137 = vpop.f32.mrf.mxu0
        %2138 = vdwg.mxu0
        %2139 = vmatpush.bf16.msra.mxu0 %v1581
        %2140 = vmatpush.bf16.msra.mxu0 %v1573
        %2141 = vmatpush.bf16.msra.mxu0 %v1565
        %2142 = vmatpush.bf16.msra.mxu0 %v1557
        %2143 = vmatpush.bf16.msra.mxu0 %v1549
        %2144 = vmatpush.bf16.msra.mxu0 %v1541
        %2145 = vmatpush.bf16.msra.mxu0 %v1533
        %2146 = vmatpush.bf16.msra.mxu0 %v1525
        %2147 = vmatmul.bf16.gmra.mxu0 %v683
        %v2148 = vpop.f32.mrf.mxu0
        %v2149 = vadd.f32 %v2136, %v2148
        %v2150 = vpop.f32.mrf.mxu0
        %2151 = vdwg.mxu0
        %2152 = vmatpush.bf16.msra.mxu0 %v1645
        %2153 = vmatpush.bf16.msra.mxu0 %v1637
        %2154 = vmatpush.bf16.msra.mxu0 %v1629
        %2155 = vmatpush.bf16.msra.mxu0 %v1621
        %2156 = vmatpush.bf16.msra.mxu0 %v1613
        %2157 = vmatpush.bf16.msra.mxu0 %v1605
        %2158 = vmatpush.bf16.msra.mxu0 %v1597
        %2159 = vmatpush.bf16.msra.mxu0 %v1589
        %2160 = vmatmul.bf16.gmra.mxu0 %v684
        %v2161 = vpop.f32.mrf.mxu0
        %v2162 = vadd.f32 %v2149, %v2161
        %v2163 = vpop.f32.mrf.mxu0
        %2164 = vdwg.mxu0
        %2165 = vmatpush.bf16.msra.mxu0 %v1709
        %2166 = vmatpush.bf16.msra.mxu0 %v1701
        %2167 = vmatpush.bf16.msra.mxu0 %v1693
        %2168 = vmatpush.bf16.msra.mxu0 %v1685
        %2169 = vmatpush.bf16.msra.mxu0 %v1677
        %2170 = vmatpush.bf16.msra.mxu0 %v1669
        %2171 = vmatpush.bf16.msra.mxu0 %v1661
        %2172 = vmatpush.bf16.msra.mxu0 %v1653
        %2173 = vmatmul.bf16.gmra.mxu0 %v685
        %v2174 = vpop.f32.mrf.mxu0
        %v2175 = vadd.f32 %v2162, %v2174
        %v2176 = vpop.f32.mrf.mxu0
        %2177 = vdwg.mxu0
        %2178 = vmatpush.bf16.msra.mxu0 %v1518
        %2179 = vmatpush.bf16.msra.mxu0 %v1510
        %2180 = vmatpush.bf16.msra.mxu0 %v1502
        %2181 = vmatpush.bf16.msra.mxu0 %v1494
        %2182 = vmatpush.bf16.msra.mxu0 %v1486
        %2183 = vmatpush.bf16.msra.mxu0 %v1478
        %2184 = vmatpush.bf16.msra.mxu0 %v1470
        %2185 = vmatpush.bf16.msra.mxu0 %v1462
        %2186 = vmatmul.bf16.gmra.mxu0 %v682
        %v2187 = vpop.f32.mrf.mxu0
        %v2188 = vadd.f32 0.0, %v2187
        %v2189 = vpop.f32.mrf.mxu0
        %2190 = vdwg.mxu0
        %2191 = vmatpush.bf16.msra.mxu0 %v1582
        %2192 = vmatpush.bf16.msra.mxu0 %v1574
        %2193 = vmatpush.bf16.msra.mxu0 %v1566
        %2194 = vmatpush.bf16.msra.mxu0 %v1558
        %2195 = vmatpush.bf16.msra.mxu0 %v1550
        %2196 = vmatpush.bf16.msra.mxu0 %v1542
        %2197 = vmatpush.bf16.msra.mxu0 %v1534
        %2198 = vmatpush.bf16.msra.mxu0 %v1526
        %2199 = vmatmul.bf16.gmra.mxu0 %v683
        %v2200 = vpop.f32.mrf.mxu0
        %v2201 = vadd.f32 %v2188, %v2200
        %v2202 = vpop.f32.mrf.mxu0
        %2203 = vdwg.mxu0
        %2204 = vmatpush.bf16.msra.mxu0 %v1646
        %2205 = vmatpush.bf16.msra.mxu0 %v1638
        %2206 = vmatpush.bf16.msra.mxu0 %v1630
        %2207 = vmatpush.bf16.msra.mxu0 %v1622
        %2208 = vmatpush.bf16.msra.mxu0 %v1614
        %2209 = vmatpush.bf16.msra.mxu0 %v1606
        %2210 = vmatpush.bf16.msra.mxu0 %v1598
        %2211 = vmatpush.bf16.msra.mxu0 %v1590
        %2212 = vmatmul.bf16.gmra.mxu0 %v684
        %v2213 = vpop.f32.mrf.mxu0
        %v2214 = vadd.f32 %v2201, %v2213
        %v2215 = vpop.f32.mrf.mxu0
        %2216 = vdwg.mxu0
        %2217 = vmatpush.bf16.msra.mxu0 %v1710
        %2218 = vmatpush.bf16.msra.mxu0 %v1702
        %2219 = vmatpush.bf16.msra.mxu0 %v1694
        %2220 = vmatpush.bf16.msra.mxu0 %v1686
        %2221 = vmatpush.bf16.msra.mxu0 %v1678
        %2222 = vmatpush.bf16.msra.mxu0 %v1670
        %2223 = vmatpush.bf16.msra.mxu0 %v1662
        %2224 = vmatpush.bf16.msra.mxu0 %v1654
        %2225 = vmatmul.bf16.gmra.mxu0 %v685
        %v2226 = vpop.f32.mrf.mxu0
        %v2227 = vadd.f32 %v2214, %v2226
        %v2228 = vpop.f32.mrf.mxu0
        %2229 = vdwg.mxu0
        %2230 = vmatpush.bf16.msra.mxu0 %v1519
        %2231 = vmatpush.bf16.msra.mxu0 %v1511
        %2232 = vmatpush.bf16.msra.mxu0 %v1503
        %2233 = vmatpush.bf16.msra.mxu0 %v1495
        %2234 = vmatpush.bf16.msra.mxu0 %v1487
        %2235 = vmatpush.bf16.msra.mxu0 %v1479
        %2236 = vmatpush.bf16.msra.mxu0 %v1471
        %2237 = vmatpush.bf16.msra.mxu0 %v1463
        %2238 = vmatmul.bf16.gmra.mxu0 %v682
        %v2239 = vpop.f32.mrf.mxu0
        %v2240 = vadd.f32 0.0, %v2239
        %v2241 = vpop.f32.mrf.mxu0
        %2242 = vdwg.mxu0
        %2243 = vmatpush.bf16.msra.mxu0 %v1583
        %2244 = vmatpush.bf16.msra.mxu0 %v1575
        %2245 = vmatpush.bf16.msra.mxu0 %v1567
        %2246 = vmatpush.bf16.msra.mxu0 %v1559
        %2247 = vmatpush.bf16.msra.mxu0 %v1551
        %2248 = vmatpush.bf16.msra.mxu0 %v1543
        %2249 = vmatpush.bf16.msra.mxu0 %v1535
        %2250 = vmatpush.bf16.msra.mxu0 %v1527
        %2251 = vmatmul.bf16.gmra.mxu0 %v683
        %v2252 = vpop.f32.mrf.mxu0
        %v2253 = vadd.f32 %v2240, %v2252
        %v2254 = vpop.f32.mrf.mxu0
        %2255 = vdwg.mxu0
        %2256 = vmatpush.bf16.msra.mxu0 %v1647
        %2257 = vmatpush.bf16.msra.mxu0 %v1639
        %2258 = vmatpush.bf16.msra.mxu0 %v1631
        %2259 = vmatpush.bf16.msra.mxu0 %v1623
        %2260 = vmatpush.bf16.msra.mxu0 %v1615
        %2261 = vmatpush.bf16.msra.mxu0 %v1607
        %2262 = vmatpush.bf16.msra.mxu0 %v1599
        %2263 = vmatpush.bf16.msra.mxu0 %v1591
        %2264 = vmatmul.bf16.gmra.mxu0 %v684
        %v2265 = vpop.f32.mrf.mxu0
        %v2266 = vadd.f32 %v2253, %v2265
        %v2267 = vpop.f32.mrf.mxu0
        %2268 = vdwg.mxu0
        %2269 = vmatpush.bf16.msra.mxu0 %v1711
        %2270 = vmatpush.bf16.msra.mxu0 %v1703
        %2271 = vmatpush.bf16.msra.mxu0 %v1695
        %2272 = vmatpush.bf16.msra.mxu0 %v1687
        %2273 = vmatpush.bf16.msra.mxu0 %v1679
        %2274 = vmatpush.bf16.msra.mxu0 %v1671
        %2275 = vmatpush.bf16.msra.mxu0 %v1663
        %2276 = vmatpush.bf16.msra.mxu0 %v1655
        %2277 = vmatmul.bf16.gmra.mxu0 %v685
        %v2278 = vpop.f32.mrf.mxu0
        %v2279 = vadd.f32 %v2266, %v2278
        %v2280 = vpop.f32.mrf.mxu0
        %2281 = vdwg.mxu0
        %2282 = vmatpush.bf16.msra.mxu0 %v1520
        %2283 = vmatpush.bf16.msra.mxu0 %v1512
        %2284 = vmatpush.bf16.msra.mxu0 %v1504
        %2285 = vmatpush.bf16.msra.mxu0 %v1496
        %2286 = vmatpush.bf16.msra.mxu0 %v1488
        %2287 = vmatpush.bf16.msra.mxu0 %v1480
        %2288 = vmatpush.bf16.msra.mxu0 %v1472
        %2289 = vmatpush.bf16.msra.mxu0 %v1464
        %2290 = vmatmul.bf16.gmra.mxu0 %v682
        %v2291 = vpop.f32.mrf.mxu0
        %v2292 = vadd.f32 0.0, %v2291
        %v2293 = vpop.f32.mrf.mxu0
        %2294 = vdwg.mxu0
        %2295 = vmatpush.bf16.msra.mxu0 %v1584
        %2296 = vmatpush.bf16.msra.mxu0 %v1576
        %2297 = vmatpush.bf16.msra.mxu0 %v1568
        %2298 = vmatpush.bf16.msra.mxu0 %v1560
        %2299 = vmatpush.bf16.msra.mxu0 %v1552
        %2300 = vmatpush.bf16.msra.mxu0 %v1544
        %2301 = vmatpush.bf16.msra.mxu0 %v1536
        %2302 = vmatpush.bf16.msra.mxu0 %v1528
        %2303 = vmatmul.bf16.gmra.mxu0 %v683
        %v2304 = vpop.f32.mrf.mxu0
        %v2305 = vadd.f32 %v2292, %v2304
        %v2306 = vpop.f32.mrf.mxu0
        %2307 = vdwg.mxu0
        %2308 = vmatpush.bf16.msra.mxu0 %v1648
        %2309 = vmatpush.bf16.msra.mxu0 %v1640
        %2310 = vmatpush.bf16.msra.mxu0 %v1632
        %2311 = vmatpush.bf16.msra.mxu0 %v1624
        %2312 = vmatpush.bf16.msra.mxu0 %v1616
        %2313 = vmatpush.bf16.msra.mxu0 %v1608
        %2314 = vmatpush.bf16.msra.mxu0 %v1600
        %2315 = vmatpush.bf16.msra.mxu0 %v1592
        %2316 = vmatmul.bf16.gmra.mxu0 %v684
        %v2317 = vpop.f32.mrf.mxu0
        %v2318 = vadd.f32 %v2305, %v2317
        %v2319 = vpop.f32.mrf.mxu0
        %2320 = vdwg.mxu0
        %2321 = vmatpush.bf16.msra.mxu0 %v1712
        %2322 = vmatpush.bf16.msra.mxu0 %v1704
        %2323 = vmatpush.bf16.msra.mxu0 %v1696
        %2324 = vmatpush.bf16.msra.mxu0 %v1688
        %2325 = vmatpush.bf16.msra.mxu0 %v1680
        %2326 = vmatpush.bf16.msra.mxu0 %v1672
        %2327 = vmatpush.bf16.msra.mxu0 %v1664
        %2328 = vmatpush.bf16.msra.mxu0 %v1656
        %2329 = vmatmul.bf16.gmra.mxu0 %v685
        %v2330 = vpop.f32.mrf.mxu0
        %v2331 = vadd.f32 %v2318, %v2330
        %v2332 = vpop.f32.mrf.mxu0
        %2333 = vdwg.mxu0
        %2334 = vmatpush.bf16.msra.mxu0 %v1521
        %2335 = vmatpush.bf16.msra.mxu0 %v1513
        %2336 = vmatpush.bf16.msra.mxu0 %v1505
        %2337 = vmatpush.bf16.msra.mxu0 %v1497
        %2338 = vmatpush.bf16.msra.mxu0 %v1489
        %2339 = vmatpush.bf16.msra.mxu0 %v1481
        %2340 = vmatpush.bf16.msra.mxu0 %v1473
        %2341 = vmatpush.bf16.msra.mxu0 %v1465
        %2342 = vmatmul.bf16.gmra.mxu0 %v682
        %v2343 = vpop.f32.mrf.mxu0
        %v2344 = vadd.f32 0.0, %v2343
        %v2345 = vpop.f32.mrf.mxu0
        %2346 = vdwg.mxu0
        %2347 = vmatpush.bf16.msra.mxu0 %v1585
        %2348 = vmatpush.bf16.msra.mxu0 %v1577
        %2349 = vmatpush.bf16.msra.mxu0 %v1569
        %2350 = vmatpush.bf16.msra.mxu0 %v1561
        %2351 = vmatpush.bf16.msra.mxu0 %v1553
        %2352 = vmatpush.bf16.msra.mxu0 %v1545
        %2353 = vmatpush.bf16.msra.mxu0 %v1537
        %2354 = vmatpush.bf16.msra.mxu0 %v1529
        %2355 = vmatmul.bf16.gmra.mxu0 %v683
        %v2356 = vpop.f32.mrf.mxu0
        %v2357 = vadd.f32 %v2344, %v2356
        %v2358 = vpop.f32.mrf.mxu0
        %2359 = vdwg.mxu0
        %2360 = vmatpush.bf16.msra.mxu0 %v1649
        %2361 = vmatpush.bf16.msra.mxu0 %v1641
        %2362 = vmatpush.bf16.msra.mxu0 %v1633
        %2363 = vmatpush.bf16.msra.mxu0 %v1625
        %2364 = vmatpush.bf16.msra.mxu0 %v1617
        %2365 = vmatpush.bf16.msra.mxu0 %v1609
        %2366 = vmatpush.bf16.msra.mxu0 %v1601
        %2367 = vmatpush.bf16.msra.mxu0 %v1593
        %2368 = vmatmul.bf16.gmra.mxu0 %v684
        %v2369 = vpop.f32.mrf.mxu0
        %v2370 = vadd.f32 %v2357, %v2369
        %v2371 = vpop.f32.mrf.mxu0
        %2372 = vdwg.mxu0
        %2373 = vmatpush.bf16.msra.mxu0 %v1713
        %2374 = vmatpush.bf16.msra.mxu0 %v1705
        %2375 = vmatpush.bf16.msra.mxu0 %v1697
        %2376 = vmatpush.bf16.msra.mxu0 %v1689
        %2377 = vmatpush.bf16.msra.mxu0 %v1681
        %2378 = vmatpush.bf16.msra.mxu0 %v1673
        %2379 = vmatpush.bf16.msra.mxu0 %v1665
        %2380 = vmatpush.bf16.msra.mxu0 %v1657
        %2381 = vmatmul.bf16.gmra.mxu0 %v685
        %v2382 = vpop.f32.mrf.mxu0
        %v2383 = vadd.f32 %v2370, %v2382
        %v2384 = vpop.f32.mrf.mxu0
        %2385 = vdwg.mxu0
        %v2394 = vrot.slane %v2071, 6
        %v2395 = vrot.slane %v2123, 4
        %v2396 = vrot.slane %v2175, 2
        %v2397 = vrot.slane %v2279, 6
        %v2398 = vrot.slane %v2331, 4
        %v2399 = vrot.slane %v2383, 2
        %vm2400 = vcmask 1041408
        %v2401 = vsel %vm2400, %v2019, %v2394
        %vm2402 = vcmask 1045508
        %v2403 = vsel %vm2402, %v2395, %v2396
        %vm2404 = vcmask 1043456
        %v2405 = vsel %vm2404, %v2401, %v2403
        %v2406 = vsel %vm2400, %v2227, %v2397
        %v2407 = vsel %vm2402, %v2398, %v2399
        %v2408 = vsel %vm2404, %v2406, %v2407
        %v2411 = vadd.f32 %v421, %v2405
        %v2412 = vadd.f32 %v422, %v2408
        %2413 = vst [vmem:[#allocation2] sm:$0xff] %v2411
        %2414 = vst [vmem:[#allocation2 + $0x8] sm:$0xff] %v2412
        %p2415 = scmp.eq.s32.totalorder %s26, 3
        // Predicated region
        $region53: #{inception_v3_multitask_forward.3} parent=47 // pred_check
          %p2416 = pneg %p2415
        $region54: #{inception_v3_multitask_forward.3} parent=47 // pred_check_branch
          %2418 = sbr.rel (%p2416) target = $region56
        $region55: #{inception_v3_multitask_forward.3} parent=47 // pred_region
          %v2419 = vld [vmem:[#allocation2] sm:$0xff]
          %v2420 = vld [vmem:[#allocation2 + $0x8] sm:$0xff]
          %v2421 = vld [vmem:[%s397] sm:$0xff]
          %v2423 = vperm.slane %v2421, 0
          %v2424 = vperm.slane %v2421, 1
          %v2425 = vperm.slane %v2421, 2
          %v2426 = vperm.slane %v2421, 3
          %v2427 = vperm.slane %v2421, 4
          %v2428 = vperm.slane %v2421, 5
          %v2429 = vperm.slane %v2421, 6
          %v2430 = vperm.slane %v2421, 7
          %v2431 = vrot.slane %v2424, 6
          %v2432 = vrot.slane %v2425, 4
          %v2433 = vrot.slane %v2426, 2
          %v2434 = vrot.slane %v2428, 6
          %v2435 = vrot.slane %v2429, 4
          %v2436 = vrot.slane %v2430, 2
          %v2437 = vsel %vm2400, %v2423, %v2431
          %v2438 = vsel %vm2402, %v2432, %v2433
          %v2439 = vsel %vm2404, %v2437, %v2438
          %v2440 = vsel %vm2400, %v2427, %v2434
          %v2441 = vsel %vm2402, %v2435, %v2436
          %v2442 = vsel %vm2404, %v2440, %v2441
          %v2445 = vadd.f32 %v2419, %v2439
          %v2446 = vadd.f32 %v2420, %v2442
          %v2447 = vmax.f32 %v2445, 0.0
          %v2448 = vmax.f32 %v2446, 0.0
          %2451 = vst [vmem:[#allocation1] ss:$4 sm:$0xff] %v2447
          %s2452 = scalar_lea.vmem [#allocation1], 32
          %2453 = vst [vmem:[%s2452] ss:$4 sm:$0xff] %v2448
          %v2454 = vld.sshfl [vmem:[#allocation1] sm:$0xff pattern:$0x73625140]
          %v2455 = vld.sshfl [vmem:[#allocation1 + $0x8] sm:$0xff pattern:$0x73625140]
          %v2456 = vld.sshfl [vmem:[#allocation1 + $0x10] sm:$0xff pattern:$0x73625140]
          %v2457 = vld.sshfl [vmem:[#allocation1 + $0x18] sm:$0xff pattern:$0x73625140]
          %v2458 = vld.sshfl [vmem:[#allocation1 + $0x20] sm:$0xff pattern:$0x73625140]
          %v2459 = vld.sshfl [vmem:[#allocation1 + $0x28] sm:$0xff pattern:$0x73625140]
          %v2460 = vld.sshfl [vmem:[#allocation1 + $0x30] sm:$0xff pattern:$0x73625140]
          %v2461 = vld.sshfl [vmem:[#allocation1 + $0x38] sm:$0xff pattern:$0x73625140]
          %v2470 = vpack.c.bf16 %v2454, %v2454
          %v2471 = vpack.c.bf16 %v2455, %v2455
          %v2472 = vpack.c.bf16 %v2456, %v2456
          %v2473 = vpack.c.bf16 %v2457, %v2457
          %v2474 = vpack.c.bf16 %v2458, %v2458
          %v2475 = vpack.c.bf16 %v2459, %v2459
          %v2476 = vpack.c.bf16 %v2460, %v2460
          %v2477 = vpack.c.bf16 %v2461, %v2461
          %v2478 = vld [vmem:[%s402] sm:$0xff]
          %v2479 = vld [vmem:[%s402 + $0x8] sm:$0xff]
          %v2480 = vld [vmem:[%s402 + $0x10] sm:$0xff]
          %v2481 = vld [vmem:[%s402 + $0x18] sm:$0xff]
          %v2482 = vld [vmem:[%s402 + $0x20] sm:$0xff]
          %v2483 = vld [vmem:[%s402 + $0x28] sm:$0xff]
          %v2484 = vld [vmem:[%s402 + $0x30] sm:$0xff]
          %v2485 = vld [vmem:[%s402 + $0x38] sm:$0xff]
          %v2486 = vld [vmem:[%s402 + $0x40] sm:$0xff]
          %v2487 = vld [vmem:[%s402 + $0x48] sm:$0xff]
          %v2488 = vld [vmem:[%s402 + $0x50] sm:$0xff]
          %v2489 = vld [vmem:[%s402 + $0x58] sm:$0xff]
          %v2490 = vld [vmem:[%s402 + $0x60] sm:$0xff]
          %v2491 = vld [vmem:[%s402 + $0x68] sm:$0xff]
          %v2492 = vld [vmem:[%s402 + $0x70] sm:$0xff]
          %v2493 = vld [vmem:[%s402 + $0x78] sm:$0xff]
          %v2494 = vld [vmem:[%s402 + $0x80] sm:$0xff]
          %v2495 = vld [vmem:[%s402 + $0x88] sm:$0xff]
          %v2496 = vld [vmem:[%s402 + $0x90] sm:$0xff]
          %v2497 = vld [vmem:[%s402 + $0x98] sm:$0xff]
          %v2498 = vld [vmem:[%s402 + $0xa0] sm:$0xff]
          %v2499 = vld [vmem:[%s402 + $0xa8] sm:$0xff]
          %v2500 = vld [vmem:[%s402 + $0xb0] sm:$0xff]
          %v2501 = vld [vmem:[%s402 + $0xb8] sm:$0xff]
          %v2502 = vld [vmem:[%s402 + $0xc0] sm:$0xff]
          %v2503 = vld [vmem:[%s402 + $0xc8] sm:$0xff]
          %v2504 = vld [vmem:[%s402 + $0xd0] sm:$0xff]
          %v2505 = vld [vmem:[%s402 + $0xd8] sm:$0xff]
          %v2506 = vld [vmem:[%s402 + $0xe0] sm:$0xff]
          %v2507 = vld [vmem:[%s402 + $0xe8] sm:$0xff]
          %v2508 = vld [vmem:[%s402 + $0xf0] sm:$0xff]
          %v2509 = vld [vmem:[%s402 + $0xf8] sm:$0xff]
          %v2510 = vld [vmem:[%s402 + $0x100] sm:$0xff]
          %v2511 = vld [vmem:[%s402 + $0x108] sm:$0xff]
          %v2512 = vld [vmem:[%s402 + $0x110] sm:$0xff]
          %v2513 = vld [vmem:[%s402 + $0x118] sm:$0xff]
          %v2514 = vld [vmem:[%s402 + $0x120] sm:$0xff]
          %v2515 = vld [vmem:[%s402 + $0x128] sm:$0xff]
          %v2516 = vld [vmem:[%s402 + $0x130] sm:$0xff]
          %v2517 = vld [vmem:[%s402 + $0x138] sm:$0xff]
          %v2518 = vld [vmem:[%s402 + $0x140] sm:$0xff]
          %v2519 = vld [vmem:[%s402 + $0x148] sm:$0xff]
          %v2520 = vld [vmem:[%s402 + $0x150] sm:$0xff]
          %v2521 = vld [vmem:[%s402 + $0x158] sm:$0xff]
          %v2522 = vld [vmem:[%s402 + $0x160] sm:$0xff]
          %v2523 = vld [vmem:[%s402 + $0x168] sm:$0xff]
          %v2524 = vld [vmem:[%s402 + $0x170] sm:$0xff]
          %v2525 = vld [vmem:[%s402 + $0x178] sm:$0xff]
          %v2526 = vld [vmem:[%s402 + $0x180] sm:$0xff]
          %v2527 = vld [vmem:[%s402 + $0x188] sm:$0xff]
          %v2528 = vld [vmem:[%s402 + $0x190] sm:$0xff]
          %v2529 = vld [vmem:[%s402 + $0x198] sm:$0xff]
          %v2530 = vld [vmem:[%s402 + $0x1a0] sm:$0xff]
          %v2531 = vld [vmem:[%s402 + $0x1a8] sm:$0xff]
          %v2532 = vld [vmem:[%s402 + $0x1b0] sm:$0xff]
          %v2533 = vld [vmem:[%s402 + $0x1b8] sm:$0xff]
          %v2534 = vld [vmem:[%s402 + $0x1c0] sm:$0xff]
          %v2535 = vld [vmem:[%s402 + $0x1c8] sm:$0xff]
          %v2536 = vld [vmem:[%s402 + $0x1d0] sm:$0xff]
          %v2537 = vld [vmem:[%s402 + $0x1d8] sm:$0xff]
          %v2538 = vld [vmem:[%s402 + $0x1e0] sm:$0xff]
          %v2539 = vld [vmem:[%s402 + $0x1e8] sm:$0xff]
          %v2540 = vld [vmem:[%s402 + $0x1f0] sm:$0xff]
          %v2541 = vld [vmem:[%s402 + $0x1f8] sm:$0xff]
          %v2542 = vld [vmem:[%s402 + $0x200] sm:$0xff]
          %v2543 = vld [vmem:[%s402 + $0x208] sm:$0xff]
          %v2544 = vld [vmem:[%s402 + $0x210] sm:$0xff]
          %v2545 = vld [vmem:[%s402 + $0x218] sm:$0xff]
          %v2546 = vld [vmem:[%s402 + $0x220] sm:$0xff]
          %v2547 = vld [vmem:[%s402 + $0x228] sm:$0xff]
          %v2548 = vld [vmem:[%s402 + $0x230] sm:$0xff]
          %v2549 = vld [vmem:[%s402 + $0x238] sm:$0xff]
          %v2550 = vld [vmem:[%s402 + $0x240] sm:$0xff]
          %v2551 = vld [vmem:[%s402 + $0x248] sm:$0xff]
          %v2552 = vld [vmem:[%s402 + $0x250] sm:$0xff]
          %v2553 = vld [vmem:[%s402 + $0x258] sm:$0xff]
          %v2554 = vld [vmem:[%s402 + $0x260] sm:$0xff]
          %v2555 = vld [vmem:[%s402 + $0x268] sm:$0xff]
          %v2556 = vld [vmem:[%s402 + $0x270] sm:$0xff]
          %v2557 = vld [vmem:[%s402 + $0x278] sm:$0xff]
          %v2558 = vld [vmem:[%s402 + $0x280] sm:$0xff]
          %v2559 = vld [vmem:[%s402 + $0x288] sm:$0xff]
          %v2560 = vld [vmem:[%s402 + $0x290] sm:$0xff]
          %v2561 = vld [vmem:[%s402 + $0x298] sm:$0xff]
          %v2562 = vld [vmem:[%s402 + $0x2a0] sm:$0xff]
          %v2563 = vld [vmem:[%s402 + $0x2a8] sm:$0xff]
          %v2564 = vld [vmem:[%s402 + $0x2b0] sm:$0xff]
          %v2565 = vld [vmem:[%s402 + $0x2b8] sm:$0xff]
          %v2566 = vld [vmem:[%s402 + $0x2c0] sm:$0xff]
          %v2567 = vld [vmem:[%s402 + $0x2c8] sm:$0xff]
          %v2568 = vld [vmem:[%s402 + $0x2d0] sm:$0xff]
          %v2569 = vld [vmem:[%s402 + $0x2d8] sm:$0xff]
          %v2570 = vld [vmem:[%s402 + $0x2e0] sm:$0xff]
          %v2571 = vld [vmem:[%s402 + $0x2e8] sm:$0xff]
          %v2572 = vld [vmem:[%s402 + $0x2f0] sm:$0xff]
          %v2573 = vld [vmem:[%s402 + $0x2f8] sm:$0xff]
          %v2574 = vld [vmem:[%s402 + $0x300] sm:$0xff]
          %v2575 = vld [vmem:[%s402 + $0x308] sm:$0xff]
          %v2576 = vld [vmem:[%s402 + $0x310] sm:$0xff]
          %v2577 = vld [vmem:[%s402 + $0x318] sm:$0xff]
          %v2578 = vld [vmem:[%s402 + $0x320] sm:$0xff]
          %v2579 = vld [vmem:[%s402 + $0x328] sm:$0xff]
          %v2580 = vld [vmem:[%s402 + $0x330] sm:$0xff]
          %v2581 = vld [vmem:[%s402 + $0x338] sm:$0xff]
          %v2582 = vld [vmem:[%s402 + $0x340] sm:$0xff]
          %v2583 = vld [vmem:[%s402 + $0x348] sm:$0xff]
          %v2584 = vld [vmem:[%s402 + $0x350] sm:$0xff]
          %v2585 = vld [vmem:[%s402 + $0x358] sm:$0xff]
          %v2586 = vld [vmem:[%s402 + $0x360] sm:$0xff]
          %v2587 = vld [vmem:[%s402 + $0x368] sm:$0xff]
          %v2588 = vld [vmem:[%s402 + $0x370] sm:$0xff]
          %v2589 = vld [vmem:[%s402 + $0x378] sm:$0xff]
          %v2590 = vld [vmem:[%s402 + $0x380] sm:$0xff]
          %v2591 = vld [vmem:[%s402 + $0x388] sm:$0xff]
          %v2592 = vld [vmem:[%s402 + $0x390] sm:$0xff]
          %v2593 = vld [vmem:[%s402 + $0x398] sm:$0xff]
          %v2594 = vld [vmem:[%s402 + $0x3a0] sm:$0xff]
          %v2595 = vld [vmem:[%s402 + $0x3a8] sm:$0xff]
          %v2596 = vld [vmem:[%s402 + $0x3b0] sm:$0xff]
          %v2597 = vld [vmem:[%s402 + $0x3b8] sm:$0xff]
          %v2598 = vld [vmem:[%s402 + $0x3c0] sm:$0xff]
          %v2599 = vld [vmem:[%s402 + $0x3c8] sm:$0xff]
          %v2600 = vld [vmem:[%s402 + $0x3d0] sm:$0xff]
          %v2601 = vld [vmem:[%s402 + $0x3d8] sm:$0xff]
          %v2602 = vld [vmem:[%s402 + $0x3e0] sm:$0xff]
          %v2603 = vld [vmem:[%s402 + $0x3e8] sm:$0xff]
          %v2604 = vld [vmem:[%s402 + $0x3f0] sm:$0xff]
          %v2605 = vld [vmem:[%s402 + $0x3f8] sm:$0xff]
          %v2606 = vld [vmem:[%s402 + $0x400] sm:$0xff]
          %v2607 = vld [vmem:[%s402 + $0x408] sm:$0xff]
          %v2608 = vld [vmem:[%s402 + $0x410] sm:$0xff]
          %v2609 = vld [vmem:[%s402 + $0x418] sm:$0xff]
          %v2610 = vld [vmem:[%s402 + $0x420] sm:$0xff]
          %v2611 = vld [vmem:[%s402 + $0x428] sm:$0xff]
          %v2612 = vld [vmem:[%s402 + $0x430] sm:$0xff]
          %v2613 = vld [vmem:[%s402 + $0x438] sm:$0xff]
          %v2614 = vld [vmem:[%s402 + $0x440] sm:$0xff]
          %v2615 = vld [vmem:[%s402 + $0x448] sm:$0xff]
          %v2616 = vld [vmem:[%s402 + $0x450] sm:$0xff]
          %v2617 = vld [vmem:[%s402 + $0x458] sm:$0xff]
          %v2618 = vld [vmem:[%s402 + $0x460] sm:$0xff]
          %v2619 = vld [vmem:[%s402 + $0x468] sm:$0xff]
          %v2620 = vld [vmem:[%s402 + $0x470] sm:$0xff]
          %v2621 = vld [vmem:[%s402 + $0x478] sm:$0xff]
          %v2622 = vld [vmem:[%s402 + $0x480] sm:$0xff]
          %v2623 = vld [vmem:[%s402 + $0x488] sm:$0xff]
          %v2624 = vld [vmem:[%s402 + $0x490] sm:$0xff]
          %v2625 = vld [vmem:[%s402 + $0x498] sm:$0xff]
          %v2626 = vld [vmem:[%s402 + $0x4a0] sm:$0xff]
          %v2627 = vld [vmem:[%s402 + $0x4a8] sm:$0xff]
          %v2628 = vld [vmem:[%s402 + $0x4b0] sm:$0xff]
          %v2629 = vld [vmem:[%s402 + $0x4b8] sm:$0xff]
          %v2630 = vld [vmem:[%s402 + $0x4c0] sm:$0xff]
          %v2631 = vld [vmem:[%s402 + $0x4c8] sm:$0xff]
          %v2632 = vld [vmem:[%s402 + $0x4d0] sm:$0xff]
          %v2633 = vld [vmem:[%s402 + $0x4d8] sm:$0xff]
          %v2634 = vld [vmem:[%s402 + $0x4e0] sm:$0xff]
          %v2635 = vld [vmem:[%s402 + $0x4e8] sm:$0xff]
          %v2636 = vld [vmem:[%s402 + $0x4f0] sm:$0xff]
          %v2637 = vld [vmem:[%s402 + $0x4f8] sm:$0xff]
          %v2638 = vld [vmem:[%s402 + $0x500] sm:$0xff]
          %v2639 = vld [vmem:[%s402 + $0x508] sm:$0xff]
          %v2640 = vld [vmem:[%s402 + $0x510] sm:$0xff]
          %v2641 = vld [vmem:[%s402 + $0x518] sm:$0xff]
          %v2642 = vld [vmem:[%s402 + $0x520] sm:$0xff]
          %v2643 = vld [vmem:[%s402 + $0x528] sm:$0xff]
          %v2644 = vld [vmem:[%s402 + $0x530] sm:$0xff]
          %v2645 = vld [vmem:[%s402 + $0x538] sm:$0xff]
          %v2646 = vld [vmem:[%s402 + $0x540] sm:$0xff]
          %v2647 = vld [vmem:[%s402 + $0x548] sm:$0xff]
          %v2648 = vld [vmem:[%s402 + $0x550] sm:$0xff]
          %v2649 = vld [vmem:[%s402 + $0x558] sm:$0xff]
          %v2650 = vld [vmem:[%s402 + $0x560] sm:$0xff]
          %v2651 = vld [vmem:[%s402 + $0x568] sm:$0xff]
          %v2652 = vld [vmem:[%s402 + $0x570] sm:$0xff]
          %v2653 = vld [vmem:[%s402 + $0x578] sm:$0xff]
          %v2654 = vld [vmem:[%s402 + $0x580] sm:$0xff]
          %v2655 = vld [vmem:[%s402 + $0x588] sm:$0xff]
          %v2656 = vld [vmem:[%s402 + $0x590] sm:$0xff]
          %v2657 = vld [vmem:[%s402 + $0x598] sm:$0xff]
          %v2658 = vld [vmem:[%s402 + $0x5a0] sm:$0xff]
          %v2659 = vld [vmem:[%s402 + $0x5a8] sm:$0xff]
          %v2660 = vld [vmem:[%s402 + $0x5b0] sm:$0xff]
          %v2661 = vld [vmem:[%s402 + $0x5b8] sm:$0xff]
          %v2662 = vld [vmem:[%s402 + $0x5c0] sm:$0xff]
          %v2663 = vld [vmem:[%s402 + $0x5c8] sm:$0xff]
          %v2664 = vld [vmem:[%s402 + $0x5d0] sm:$0xff]
          %v2665 = vld [vmem:[%s402 + $0x5d8] sm:$0xff]
          %v2666 = vld [vmem:[%s402 + $0x5e0] sm:$0xff]
          %v2667 = vld [vmem:[%s402 + $0x5e8] sm:$0xff]
          %v2668 = vld [vmem:[%s402 + $0x5f0] sm:$0xff]
          %v2669 = vld [vmem:[%s402 + $0x5f8] sm:$0xff]
          %v2670 = vld [vmem:[%s402 + $0x600] sm:$0xff]
          %v2671 = vld [vmem:[%s402 + $0x608] sm:$0xff]
          %v2672 = vld [vmem:[%s402 + $0x610] sm:$0xff]
          %v2673 = vld [vmem:[%s402 + $0x618] sm:$0xff]
          %v2674 = vld [vmem:[%s402 + $0x620] sm:$0xff]
          %v2675 = vld [vmem:[%s402 + $0x628] sm:$0xff]
          %v2676 = vld [vmem:[%s402 + $0x630] sm:$0xff]
          %v2677 = vld [vmem:[%s402 + $0x638] sm:$0xff]
          %v2678 = vld [vmem:[%s402 + $0x640] sm:$0xff]
          %v2679 = vld [vmem:[%s402 + $0x648] sm:$0xff]
          %v2680 = vld [vmem:[%s402 + $0x650] sm:$0xff]
          %v2681 = vld [vmem:[%s402 + $0x658] sm:$0xff]
          %v2682 = vld [vmem:[%s402 + $0x660] sm:$0xff]
          %v2683 = vld [vmem:[%s402 + $0x668] sm:$0xff]
          %v2684 = vld [vmem:[%s402 + $0x670] sm:$0xff]
          %v2685 = vld [vmem:[%s402 + $0x678] sm:$0xff]
          %v2686 = vld [vmem:[%s402 + $0x680] sm:$0xff]
          %v2687 = vld [vmem:[%s402 + $0x688] sm:$0xff]
          %v2688 = vld [vmem:[%s402 + $0x690] sm:$0xff]
          %v2689 = vld [vmem:[%s402 + $0x698] sm:$0xff]
          %v2690 = vld [vmem:[%s402 + $0x6a0] sm:$0xff]
          %v2691 = vld [vmem:[%s402 + $0x6a8] sm:$0xff]
          %v2692 = vld [vmem:[%s402 + $0x6b0] sm:$0xff]
          %v2693 = vld [vmem:[%s402 + $0x6b8] sm:$0xff]
          %v2694 = vld [vmem:[%s402 + $0x6c0] sm:$0xff]
          %v2695 = vld [vmem:[%s402 + $0x6c8] sm:$0xff]
          %v2696 = vld [vmem:[%s402 + $0x6d0] sm:$0xff]
          %v2697 = vld [vmem:[%s402 + $0x6d8] sm:$0xff]
          %v2698 = vld [vmem:[%s402 + $0x6e0] sm:$0xff]
          %v2699 = vld [vmem:[%s402 + $0x6e8] sm:$0xff]
          %v2700 = vld [vmem:[%s402 + $0x6f0] sm:$0xff]
          %v2701 = vld [vmem:[%s402 + $0x6f8] sm:$0xff]
          %v2702 = vld [vmem:[%s402 + $0x700] sm:$0xff]
          %v2703 = vld [vmem:[%s402 + $0x708] sm:$0xff]
          %v2704 = vld [vmem:[%s402 + $0x710] sm:$0xff]
          %v2705 = vld [vmem:[%s402 + $0x718] sm:$0xff]
          %v2706 = vld [vmem:[%s402 + $0x720] sm:$0xff]
          %v2707 = vld [vmem:[%s402 + $0x728] sm:$0xff]
          %v2708 = vld [vmem:[%s402 + $0x730] sm:$0xff]
          %v2709 = vld [vmem:[%s402 + $0x738] sm:$0xff]
          %v2710 = vld [vmem:[%s402 + $0x740] sm:$0xff]
          %v2711 = vld [vmem:[%s402 + $0x748] sm:$0xff]
          %v2712 = vld [vmem:[%s402 + $0x750] sm:$0xff]
          %v2713 = vld [vmem:[%s402 + $0x758] sm:$0xff]
          %v2714 = vld [vmem:[%s402 + $0x760] sm:$0xff]
          %v2715 = vld [vmem:[%s402 + $0x768] sm:$0xff]
          %v2716 = vld [vmem:[%s402 + $0x770] sm:$0xff]
          %v2717 = vld [vmem:[%s402 + $0x778] sm:$0xff]
          %v2718 = vld [vmem:[%s402 + $0x780] sm:$0xff]
          %v2719 = vld [vmem:[%s402 + $0x788] sm:$0xff]
          %v2720 = vld [vmem:[%s402 + $0x790] sm:$0xff]
          %v2721 = vld [vmem:[%s402 + $0x798] sm:$0xff]
          %v2722 = vld [vmem:[%s402 + $0x7a0] sm:$0xff]
          %v2723 = vld [vmem:[%s402 + $0x7a8] sm:$0xff]
          %v2724 = vld [vmem:[%s402 + $0x7b0] sm:$0xff]
          %v2725 = vld [vmem:[%s402 + $0x7b8] sm:$0xff]
          %v2726 = vld [vmem:[%s402 + $0x7c0] sm:$0xff]
          %v2727 = vld [vmem:[%s402 + $0x7c8] sm:$0xff]
          %v2728 = vld [vmem:[%s402 + $0x7d0] sm:$0xff]
          %v2729 = vld [vmem:[%s402 + $0x7d8] sm:$0xff]
          %v2730 = vld [vmem:[%s402 + $0x7e0] sm:$0xff]
          %v2731 = vld [vmem:[%s402 + $0x7e8] sm:$0xff]
          %v2732 = vld [vmem:[%s402 + $0x7f0] sm:$0xff]
          %v2733 = vld [vmem:[%s402 + $0x7f8] sm:$0xff]
          %v2734 = vld [vmem:[%s406] sm:$0xf]
          %v2736 = vperm.slane %v2734, 0
          %v2737 = vperm.slane %v2734, 1
          %v2738 = vperm.slane %v2734, 2
          %v2739 = vperm.slane %v2734, 3
          %v3000 = vunpack.c.l.b16 %v2478
          %v3001 = vunpack.c.h.b16 %v2478
          %v3002 = vunpack.c.l.b16 %v2479
          %v3003 = vunpack.c.h.b16 %v2479
          %v3004 = vunpack.c.l.b16 %v2480
          %v3005 = vunpack.c.h.b16 %v2480
          %v3006 = vunpack.c.l.b16 %v2481
          %v3007 = vunpack.c.h.b16 %v2481
          %v3008 = vunpack.c.l.b16 %v2482
          %v3009 = vunpack.c.h.b16 %v2482
          %v3010 = vunpack.c.l.b16 %v2483
          %v3011 = vunpack.c.h.b16 %v2483
          %v3012 = vunpack.c.l.b16 %v2484
          %v3013 = vunpack.c.h.b16 %v2484
          %v3014 = vunpack.c.l.b16 %v2485
          %v3015 = vunpack.c.h.b16 %v2485
          %v3016 = vunpack.c.l.b16 %v2486
          %v3017 = vunpack.c.h.b16 %v2486
          %v3018 = vunpack.c.l.b16 %v2487
          %v3019 = vunpack.c.h.b16 %v2487
          %v3020 = vunpack.c.l.b16 %v2488
          %v3021 = vunpack.c.h.b16 %v2488
          %v3022 = vunpack.c.l.b16 %v2489
          %v3023 = vunpack.c.h.b16 %v2489
          %v3024 = vunpack.c.l.b16 %v2490
          %v3025 = vunpack.c.h.b16 %v2490
          %v3026 = vunpack.c.l.b16 %v2491
          %v3027 = vunpack.c.h.b16 %v2491
          %v3028 = vunpack.c.l.b16 %v2492
          %v3029 = vunpack.c.h.b16 %v2492
          %v3030 = vunpack.c.l.b16 %v2493
          %v3031 = vunpack.c.h.b16 %v2493
          %v3032 = vunpack.c.l.b16 %v2494
          %v3033 = vunpack.c.h.b16 %v2494
          %v3034 = vunpack.c.l.b16 %v2495
          %v3035 = vunpack.c.h.b16 %v2495
          %v3036 = vunpack.c.l.b16 %v2496
          %v3037 = vunpack.c.h.b16 %v2496
          %v3038 = vunpack.c.l.b16 %v2497
          %v3039 = vunpack.c.h.b16 %v2497
          %v3040 = vunpack.c.l.b16 %v2498
          %v3041 = vunpack.c.h.b16 %v2498
          %v3042 = vunpack.c.l.b16 %v2499
          %v3043 = vunpack.c.h.b16 %v2499
          %v3044 = vunpack.c.l.b16 %v2500
          %v3045 = vunpack.c.h.b16 %v2500
          %v3046 = vunpack.c.l.b16 %v2501
          %v3047 = vunpack.c.h.b16 %v2501
          %v3048 = vunpack.c.l.b16 %v2502
          %v3049 = vunpack.c.h.b16 %v2502
          %v3050 = vunpack.c.l.b16 %v2503
          %v3051 = vunpack.c.h.b16 %v2503
          %v3052 = vunpack.c.l.b16 %v2504
          %v3053 = vunpack.c.h.b16 %v2504
          %v3054 = vunpack.c.l.b16 %v2505
          %v3055 = vunpack.c.h.b16 %v2505
          %v3056 = vunpack.c.l.b16 %v2506
          %v3057 = vunpack.c.h.b16 %v2506
          %v3058 = vunpack.c.l.b16 %v2507
          %v3059 = vunpack.c.h.b16 %v2507
          %v3060 = vunpack.c.l.b16 %v2508
          %v3061 = vunpack.c.h.b16 %v2508
          %v3062 = vunpack.c.l.b16 %v2509
          %v3063 = vunpack.c.h.b16 %v2509
          %v3064 = vunpack.c.l.b16 %v2510
          %v3065 = vunpack.c.h.b16 %v2510
          %v3066 = vunpack.c.l.b16 %v2511
          %v3067 = vunpack.c.h.b16 %v2511
          %v3068 = vunpack.c.l.b16 %v2512
          %v3069 = vunpack.c.h.b16 %v2512
          %v3070 = vunpack.c.l.b16 %v2513
          %v3071 = vunpack.c.h.b16 %v2513
          %v3072 = vunpack.c.l.b16 %v2514
          %v3073 = vunpack.c.h.b16 %v2514
          %v3074 = vunpack.c.l.b16 %v2515
          %v3075 = vunpack.c.h.b16 %v2515
          %v3076 = vunpack.c.l.b16 %v2516
          %v3077 = vunpack.c.h.b16 %v2516
          %v3078 = vunpack.c.l.b16 %v2517
          %v3079 = vunpack.c.h.b16 %v2517
          %v3080 = vunpack.c.l.b16 %v2518
          %v3081 = vunpack.c.h.b16 %v2518
          %v3082 = vunpack.c.l.b16 %v2519
          %v3083 = vunpack.c.h.b16 %v2519
          %v3084 = vunpack.c.l.b16 %v2520
          %v3085 = vunpack.c.h.b16 %v2520
          %v3086 = vunpack.c.l.b16 %v2521
          %v3087 = vunpack.c.h.b16 %v2521
          %v3088 = vunpack.c.l.b16 %v2522
          %v3089 = vunpack.c.h.b16 %v2522
          %v3090 = vunpack.c.l.b16 %v2523
          %v3091 = vunpack.c.h.b16 %v2523
          %v3092 = vunpack.c.l.b16 %v2524
          %v3093 = vunpack.c.h.b16 %v2524
          %v3094 = vunpack.c.l.b16 %v2525
          %v3095 = vunpack.c.h.b16 %v2525
          %v3096 = vunpack.c.l.b16 %v2526
          %v3097 = vunpack.c.h.b16 %v2526
          %v3098 = vunpack.c.l.b16 %v2527
          %v3099 = vunpack.c.h.b16 %v2527
          %v3100 = vunpack.c.l.b16 %v2528
          %v3101 = vunpack.c.h.b16 %v2528
          %v3102 = vunpack.c.l.b16 %v2529
          %v3103 = vunpack.c.h.b16 %v2529
          %v3104 = vunpack.c.l.b16 %v2530
          %v3105 = vunpack.c.h.b16 %v2530
          %v3106 = vunpack.c.l.b16 %v2531
          %v3107 = vunpack.c.h.b16 %v2531
          %v3108 = vunpack.c.l.b16 %v2532
          %v3109 = vunpack.c.h.b16 %v2532
          %v3110 = vunpack.c.l.b16 %v2533
          %v3111 = vunpack.c.h.b16 %v2533
          %v3112 = vunpack.c.l.b16 %v2534
          %v3113 = vunpack.c.h.b16 %v2534
          %v3114 = vunpack.c.l.b16 %v2535
          %v3115 = vunpack.c.h.b16 %v2535
          %v3116 = vunpack.c.l.b16 %v2536
          %v3117 = vunpack.c.h.b16 %v2536
          %v3118 = vunpack.c.l.b16 %v2537
          %v3119 = vunpack.c.h.b16 %v2537
          %v3120 = vunpack.c.l.b16 %v2538
          %v3121 = vunpack.c.h.b16 %v2538
          %v3122 = vunpack.c.l.b16 %v2539
          %v3123 = vunpack.c.h.b16 %v2539
          %v3124 = vunpack.c.l.b16 %v2540
          %v3125 = vunpack.c.h.b16 %v2540
          %v3126 = vunpack.c.l.b16 %v2541
          %v3127 = vunpack.c.h.b16 %v2541
          %v3128 = vunpack.c.l.b16 %v2542
          %v3129 = vunpack.c.h.b16 %v2542
          %v3130 = vunpack.c.l.b16 %v2543
          %v3131 = vunpack.c.h.b16 %v2543
          %v3132 = vunpack.c.l.b16 %v2544
          %v3133 = vunpack.c.h.b16 %v2544
          %v3134 = vunpack.c.l.b16 %v2545
          %v3135 = vunpack.c.h.b16 %v2545
          %v3136 = vunpack.c.l.b16 %v2546
          %v3137 = vunpack.c.h.b16 %v2546
          %v3138 = vunpack.c.l.b16 %v2547
          %v3139 = vunpack.c.h.b16 %v2547
          %v3140 = vunpack.c.l.b16 %v2548
          %v3141 = vunpack.c.h.b16 %v2548
          %v3142 = vunpack.c.l.b16 %v2549
          %v3143 = vunpack.c.h.b16 %v2549
          %v3144 = vunpack.c.l.b16 %v2550
          %v3145 = vunpack.c.h.b16 %v2550
          %v3146 = vunpack.c.l.b16 %v2551
          %v3147 = vunpack.c.h.b16 %v2551
          %v3148 = vunpack.c.l.b16 %v2552
          %v3149 = vunpack.c.h.b16 %v2552
          %v3150 = vunpack.c.l.b16 %v2553
          %v3151 = vunpack.c.h.b16 %v2553
          %v3152 = vunpack.c.l.b16 %v2554
          %v3153 = vunpack.c.h.b16 %v2554
          %v3154 = vunpack.c.l.b16 %v2555
          %v3155 = vunpack.c.h.b16 %v2555
          %v3156 = vunpack.c.l.b16 %v2556
          %v3157 = vunpack.c.h.b16 %v2556
          %v3158 = vunpack.c.l.b16 %v2557
          %v3159 = vunpack.c.h.b16 %v2557
          %v3160 = vunpack.c.l.b16 %v2558
          %v3161 = vunpack.c.h.b16 %v2558
          %v3162 = vunpack.c.l.b16 %v2559
          %v3163 = vunpack.c.h.b16 %v2559
          %v3164 = vunpack.c.l.b16 %v2560
          %v3165 = vunpack.c.h.b16 %v2560
          %v3166 = vunpack.c.l.b16 %v2561
          %v3167 = vunpack.c.h.b16 %v2561
          %v3168 = vunpack.c.l.b16 %v2562
          %v3169 = vunpack.c.h.b16 %v2562
          %v3170 = vunpack.c.l.b16 %v2563
          %v3171 = vunpack.c.h.b16 %v2563
          %v3172 = vunpack.c.l.b16 %v2564
          %v3173 = vunpack.c.h.b16 %v2564
          %v3174 = vunpack.c.l.b16 %v2565
          %v3175 = vunpack.c.h.b16 %v2565
          %v3176 = vunpack.c.l.b16 %v2566
          %v3177 = vunpack.c.h.b16 %v2566
          %v3178 = vunpack.c.l.b16 %v2567
          %v3179 = vunpack.c.h.b16 %v2567
          %v3180 = vunpack.c.l.b16 %v2568
          %v3181 = vunpack.c.h.b16 %v2568
          %v3182 = vunpack.c.l.b16 %v2569
          %v3183 = vunpack.c.h.b16 %v2569
          %v3184 = vunpack.c.l.b16 %v2570
          %v3185 = vunpack.c.h.b16 %v2570
          %v3186 = vunpack.c.l.b16 %v2571
          %v3187 = vunpack.c.h.b16 %v2571
          %v3188 = vunpack.c.l.b16 %v2572
          %v3189 = vunpack.c.h.b16 %v2572
          %v3190 = vunpack.c.l.b16 %v2573
          %v3191 = vunpack.c.h.b16 %v2573
          %v3192 = vunpack.c.l.b16 %v2574
          %v3193 = vunpack.c.h.b16 %v2574
          %v3194 = vunpack.c.l.b16 %v2575
          %v3195 = vunpack.c.h.b16 %v2575
          %v3196 = vunpack.c.l.b16 %v2576
          %v3197 = vunpack.c.h.b16 %v2576
          %v3198 = vunpack.c.l.b16 %v2577
          %v3199 = vunpack.c.h.b16 %v2577
          %v3200 = vunpack.c.l.b16 %v2578
          %v3201 = vunpack.c.h.b16 %v2578
          %v3202 = vunpack.c.l.b16 %v2579
          %v3203 = vunpack.c.h.b16 %v2579
          %v3204 = vunpack.c.l.b16 %v2580
          %v3205 = vunpack.c.h.b16 %v2580
          %v3206 = vunpack.c.l.b16 %v2581
          %v3207 = vunpack.c.h.b16 %v2581
          %v3208 = vunpack.c.l.b16 %v2582
          %v3209 = vunpack.c.h.b16 %v2582
          %v3210 = vunpack.c.l.b16 %v2583
          %v3211 = vunpack.c.h.b16 %v2583
          %v3212 = vunpack.c.l.b16 %v2584
          %v3213 = vunpack.c.h.b16 %v2584
          %v3214 = vunpack.c.l.b16 %v2585
          %v3215 = vunpack.c.h.b16 %v2585
          %v3216 = vunpack.c.l.b16 %v2586
          %v3217 = vunpack.c.h.b16 %v2586
          %v3218 = vunpack.c.l.b16 %v2587
          %v3219 = vunpack.c.h.b16 %v2587
          %v3220 = vunpack.c.l.b16 %v2588
          %v3221 = vunpack.c.h.b16 %v2588
          %v3222 = vunpack.c.l.b16 %v2589
          %v3223 = vunpack.c.h.b16 %v2589
          %v3224 = vunpack.c.l.b16 %v2590
          %v3225 = vunpack.c.h.b16 %v2590
          %v3226 = vunpack.c.l.b16 %v2591
          %v3227 = vunpack.c.h.b16 %v2591
          %v3228 = vunpack.c.l.b16 %v2592
          %v3229 = vunpack.c.h.b16 %v2592
          %v3230 = vunpack.c.l.b16 %v2593
          %v3231 = vunpack.c.h.b16 %v2593
          %v3232 = vunpack.c.l.b16 %v2594
          %v3233 = vunpack.c.h.b16 %v2594
          %v3234 = vunpack.c.l.b16 %v2595
          %v3235 = vunpack.c.h.b16 %v2595
          %v3236 = vunpack.c.l.b16 %v2596
          %v3237 = vunpack.c.h.b16 %v2596
          %v3238 = vunpack.c.l.b16 %v2597
          %v3239 = vunpack.c.h.b16 %v2597
          %v3240 = vunpack.c.l.b16 %v2598
          %v3241 = vunpack.c.h.b16 %v2598
          %v3242 = vunpack.c.l.b16 %v2599
          %v3243 = vunpack.c.h.b16 %v2599
          %v3244 = vunpack.c.l.b16 %v2600
          %v3245 = vunpack.c.h.b16 %v2600
          %v3246 = vunpack.c.l.b16 %v2601
          %v3247 = vunpack.c.h.b16 %v2601
          %v3248 = vunpack.c.l.b16 %v2602
          %v3249 = vunpack.c.h.b16 %v2602
          %v3250 = vunpack.c.l.b16 %v2603
          %v3251 = vunpack.c.h.b16 %v2603
          %v3252 = vunpack.c.l.b16 %v2604
          %v3253 = vunpack.c.h.b16 %v2604
          %v3254 = vunpack.c.l.b16 %v2605
          %v3255 = vunpack.c.h.b16 %v2605
          %v3256 = vunpack.c.l.b16 %v2606
          %v3257 = vunpack.c.h.b16 %v2606
          %v3258 = vunpack.c.l.b16 %v2607
          %v3259 = vunpack.c.h.b16 %v2607
          %v3260 = vunpack.c.l.b16 %v2608
          %v3261 = vunpack.c.h.b16 %v2608
          %v3262 = vunpack.c.l.b16 %v2609
          %v3263 = vunpack.c.h.b16 %v2609
          %v3264 = vunpack.c.l.b16 %v2610
          %v3265 = vunpack.c.h.b16 %v2610
          %v3266 = vunpack.c.l.b16 %v2611
          %v3267 = vunpack.c.h.b16 %v2611
          %v3268 = vunpack.c.l.b16 %v2612
          %v3269 = vunpack.c.h.b16 %v2612
          %v3270 = vunpack.c.l.b16 %v2613
          %v3271 = vunpack.c.h.b16 %v2613
          %v3272 = vunpack.c.l.b16 %v2614
          %v3273 = vunpack.c.h.b16 %v2614
          %v3274 = vunpack.c.l.b16 %v2615
          %v3275 = vunpack.c.h.b16 %v2615
          %v3276 = vunpack.c.l.b16 %v2616
          %v3277 = vunpack.c.h.b16 %v2616
          %v3278 = vunpack.c.l.b16 %v2617
          %v3279 = vunpack.c.h.b16 %v2617
          %v3280 = vunpack.c.l.b16 %v2618
          %v3281 = vunpack.c.h.b16 %v2618
          %v3282 = vunpack.c.l.b16 %v2619
          %v3283 = vunpack.c.h.b16 %v2619
          %v3284 = vunpack.c.l.b16 %v2620
          %v3285 = vunpack.c.h.b16 %v2620
          %v3286 = vunpack.c.l.b16 %v2621
          %v3287 = vunpack.c.h.b16 %v2621
          %v3288 = vunpack.c.l.b16 %v2622
          %v3289 = vunpack.c.h.b16 %v2622
          %v3290 = vunpack.c.l.b16 %v2623
          %v3291 = vunpack.c.h.b16 %v2623
          %v3292 = vunpack.c.l.b16 %v2624
          %v3293 = vunpack.c.h.b16 %v2624
          %v3294 = vunpack.c.l.b16 %v2625
          %v3295 = vunpack.c.h.b16 %v2625
          %v3296 = vunpack.c.l.b16 %v2626
          %v3297 = vunpack.c.h.b16 %v2626
          %v3298 = vunpack.c.l.b16 %v2627
          %v3299 = vunpack.c.h.b16 %v2627
          %v3300 = vunpack.c.l.b16 %v2628
          %v3301 = vunpack.c.h.b16 %v2628
          %v3302 = vunpack.c.l.b16 %v2629
          %v3303 = vunpack.c.h.b16 %v2629
          %v3304 = vunpack.c.l.b16 %v2630
          %v3305 = vunpack.c.h.b16 %v2630
          %v3306 = vunpack.c.l.b16 %v2631
          %v3307 = vunpack.c.h.b16 %v2631
          %v3308 = vunpack.c.l.b16 %v2632
          %v3309 = vunpack.c.h.b16 %v2632
          %v3310 = vunpack.c.l.b16 %v2633
          %v3311 = vunpack.c.h.b16 %v2633
          %v3312 = vunpack.c.l.b16 %v2634
          %v3313 = vunpack.c.h.b16 %v2634
          %v3314 = vunpack.c.l.b16 %v2635
          %v3315 = vunpack.c.h.b16 %v2635
          %v3316 = vunpack.c.l.b16 %v2636
          %v3317 = vunpack.c.h.b16 %v2636
          %v3318 = vunpack.c.l.b16 %v2637
          %v3319 = vunpack.c.h.b16 %v2637
          %v3320 = vunpack.c.l.b16 %v2638
          %v3321 = vunpack.c.h.b16 %v2638
          %v3322 = vunpack.c.l.b16 %v2639
          %v3323 = vunpack.c.h.b16 %v2639
          %v3324 = vunpack.c.l.b16 %v2640
          %v3325 = vunpack.c.h.b16 %v2640
          %v3326 = vunpack.c.l.b16 %v2641
          %v3327 = vunpack.c.h.b16 %v2641
          %v3328 = vunpack.c.l.b16 %v2642
          %v3329 = vunpack.c.h.b16 %v2642
          %v3330 = vunpack.c.l.b16 %v2643
          %v3331 = vunpack.c.h.b16 %v2643
          %v3332 = vunpack.c.l.b16 %v2644
          %v3333 = vunpack.c.h.b16 %v2644
          %v3334 = vunpack.c.l.b16 %v2645
          %v3335 = vunpack.c.h.b16 %v2645
          %v3336 = vunpack.c.l.b16 %v2646
          %v3337 = vunpack.c.h.b16 %v2646
          %v3338 = vunpack.c.l.b16 %v2647
          %v3339 = vunpack.c.h.b16 %v2647
          %v3340 = vunpack.c.l.b16 %v2648
          %v3341 = vunpack.c.h.b16 %v2648
          %v3342 = vunpack.c.l.b16 %v2649
          %v3343 = vunpack.c.h.b16 %v2649
          %v3344 = vunpack.c.l.b16 %v2650
          %v3345 = vunpack.c.h.b16 %v2650
          %v3346 = vunpack.c.l.b16 %v2651
          %v3347 = vunpack.c.h.b16 %v2651
          %v3348 = vunpack.c.l.b16 %v2652
          %v3349 = vunpack.c.h.b16 %v2652
          %v3350 = vunpack.c.l.b16 %v2653
          %v3351 = vunpack.c.h.b16 %v2653
          %v3352 = vunpack.c.l.b16 %v2654
          %v3353 = vunpack.c.h.b16 %v2654
          %v3354 = vunpack.c.l.b16 %v2655
          %v3355 = vunpack.c.h.b16 %v2655
          %v3356 = vunpack.c.l.b16 %v2656
          %v3357 = vunpack.c.h.b16 %v2656
          %v3358 = vunpack.c.l.b16 %v2657
          %v3359 = vunpack.c.h.b16 %v2657
          %v3360 = vunpack.c.l.b16 %v2658
          %v3361 = vunpack.c.h.b16 %v2658
          %v3362 = vunpack.c.l.b16 %v2659
          %v3363 = vunpack.c.h.b16 %v2659
          %v3364 = vunpack.c.l.b16 %v2660
          %v3365 = vunpack.c.h.b16 %v2660
          %v3366 = vunpack.c.l.b16 %v2661
          %v3367 = vunpack.c.h.b16 %v2661
          %v3368 = vunpack.c.l.b16 %v2662
          %v3369 = vunpack.c.h.b16 %v2662
          %v3370 = vunpack.c.l.b16 %v2663
          %v3371 = vunpack.c.h.b16 %v2663
          %v3372 = vunpack.c.l.b16 %v2664
          %v3373 = vunpack.c.h.b16 %v2664
          %v3374 = vunpack.c.l.b16 %v2665
          %v3375 = vunpack.c.h.b16 %v2665
          %v3376 = vunpack.c.l.b16 %v2666
          %v3377 = vunpack.c.h.b16 %v2666
          %v3378 = vunpack.c.l.b16 %v2667
          %v3379 = vunpack.c.h.b16 %v2667
          %v3380 = vunpack.c.l.b16 %v2668
          %v3381 = vunpack.c.h.b16 %v2668
          %v3382 = vunpack.c.l.b16 %v2669
          %v3383 = vunpack.c.h.b16 %v2669
          %v3384 = vunpack.c.l.b16 %v2670
          %v3385 = vunpack.c.h.b16 %v2670
          %v3386 = vunpack.c.l.b16 %v2671
          %v3387 = vunpack.c.h.b16 %v2671
          %v3388 = vunpack.c.l.b16 %v2672
          %v3389 = vunpack.c.h.b16 %v2672
          %v3390 = vunpack.c.l.b16 %v2673
          %v3391 = vunpack.c.h.b16 %v2673
          %v3392 = vunpack.c.l.b16 %v2674
          %v3393 = vunpack.c.h.b16 %v2674
          %v3394 = vunpack.c.l.b16 %v2675
          %v3395 = vunpack.c.h.b16 %v2675
          %v3396 = vunpack.c.l.b16 %v2676
          %v3397 = vunpack.c.h.b16 %v2676
          %v3398 = vunpack.c.l.b16 %v2677
          %v3399 = vunpack.c.h.b16 %v2677
          %v3400 = vunpack.c.l.b16 %v2678
          %v3401 = vunpack.c.h.b16 %v2678
          %v3402 = vunpack.c.l.b16 %v2679
          %v3403 = vunpack.c.h.b16 %v2679
          %v3404 = vunpack.c.l.b16 %v2680
          %v3405 = vunpack.c.h.b16 %v2680
          %v3406 = vunpack.c.l.b16 %v2681
          %v3407 = vunpack.c.h.b16 %v2681
          %v3408 = vunpack.c.l.b16 %v2682
          %v3409 = vunpack.c.h.b16 %v2682
          %v3410 = vunpack.c.l.b16 %v2683
          %v3411 = vunpack.c.h.b16 %v2683
          %v3412 = vunpack.c.l.b16 %v2684
          %v3413 = vunpack.c.h.b16 %v2684
          %v3414 = vunpack.c.l.b16 %v2685
          %v3415 = vunpack.c.h.b16 %v2685
          %v3416 = vunpack.c.l.b16 %v2686
          %v3417 = vunpack.c.h.b16 %v2686
          %v3418 = vunpack.c.l.b16 %v2687
          %v3419 = vunpack.c.h.b16 %v2687
          %v3420 = vunpack.c.l.b16 %v2688
          %v3421 = vunpack.c.h.b16 %v2688
          %v3422 = vunpack.c.l.b16 %v2689
          %v3423 = vunpack.c.h.b16 %v2689
          %v3424 = vunpack.c.l.b16 %v2690
          %v3425 = vunpack.c.h.b16 %v2690
          %v3426 = vunpack.c.l.b16 %v2691
          %v3427 = vunpack.c.h.b16 %v2691
          %v3428 = vunpack.c.l.b16 %v2692
          %v3429 = vunpack.c.h.b16 %v2692
          %v3430 = vunpack.c.l.b16 %v2693
          %v3431 = vunpack.c.h.b16 %v2693
          %v3432 = vunpack.c.l.b16 %v2694
          %v3433 = vunpack.c.h.b16 %v2694
          %v3434 = vunpack.c.l.b16 %v2695
          %v3435 = vunpack.c.h.b16 %v2695
          %v3436 = vunpack.c.l.b16 %v2696
          %v3437 = vunpack.c.h.b16 %v2696
          %v3438 = vunpack.c.l.b16 %v2697
          %v3439 = vunpack.c.h.b16 %v2697
          %v3440 = vunpack.c.l.b16 %v2698
          %v3441 = vunpack.c.h.b16 %v2698
          %v3442 = vunpack.c.l.b16 %v2699
          %v3443 = vunpack.c.h.b16 %v2699
          %v3444 = vunpack.c.l.b16 %v2700
          %v3445 = vunpack.c.h.b16 %v2700
          %v3446 = vunpack.c.l.b16 %v2701
          %v3447 = vunpack.c.h.b16 %v2701
          %v3448 = vunpack.c.l.b16 %v2702
          %v3449 = vunpack.c.h.b16 %v2702
          %v3450 = vunpack.c.l.b16 %v2703
          %v3451 = vunpack.c.h.b16 %v2703
          %v3452 = vunpack.c.l.b16 %v2704
          %v3453 = vunpack.c.h.b16 %v2704
          %v3454 = vunpack.c.l.b16 %v2705
          %v3455 = vunpack.c.h.b16 %v2705
          %v3456 = vunpack.c.l.b16 %v2706
          %v3457 = vunpack.c.h.b16 %v2706
          %v3458 = vunpack.c.l.b16 %v2707
          %v3459 = vunpack.c.h.b16 %v2707
          %v3460 = vunpack.c.l.b16 %v2708
          %v3461 = vunpack.c.h.b16 %v2708
          %v3462 = vunpack.c.l.b16 %v2709
          %v3463 = vunpack.c.h.b16 %v2709
          %v3464 = vunpack.c.l.b16 %v2710
          %v3465 = vunpack.c.h.b16 %v2710
          %v3466 = vunpack.c.l.b16 %v2711
          %v3467 = vunpack.c.h.b16 %v2711
          %v3468 = vunpack.c.l.b16 %v2712
          %v3469 = vunpack.c.h.b16 %v2712
          %v3470 = vunpack.c.l.b16 %v2713
          %v3471 = vunpack.c.h.b16 %v2713
          %v3472 = vunpack.c.l.b16 %v2714
          %v3473 = vunpack.c.h.b16 %v2714
          %v3474 = vunpack.c.l.b16 %v2715
          %v3475 = vunpack.c.h.b16 %v2715
          %v3476 = vunpack.c.l.b16 %v2716
          %v3477 = vunpack.c.h.b16 %v2716
          %v3478 = vunpack.c.l.b16 %v2717
          %v3479 = vunpack.c.h.b16 %v2717
          %v3480 = vunpack.c.l.b16 %v2718
          %v3481 = vunpack.c.h.b16 %v2718
          %v3482 = vunpack.c.l.b16 %v2719
          %v3483 = vunpack.c.h.b16 %v2719
          %v3484 = vunpack.c.l.b16 %v2720
          %v3485 = vunpack.c.h.b16 %v2720
          %v3486 = vunpack.c.l.b16 %v2721
          %v3487 = vunpack.c.h.b16 %v2721
          %v3488 = vunpack.c.l.b16 %v2722
          %v3489 = vunpack.c.h.b16 %v2722
          %v3490 = vunpack.c.l.b16 %v2723
          %v3491 = vunpack.c.h.b16 %v2723
          %v3492 = vunpack.c.l.b16 %v2724
          %v3493 = vunpack.c.h.b16 %v2724
          %v3494 = vunpack.c.l.b16 %v2725
          %v3495 = vunpack.c.h.b16 %v2725
          %v3496 = vunpack.c.l.b16 %v2726
          %v3497 = vunpack.c.h.b16 %v2726
          %v3498 = vunpack.c.l.b16 %v2727
          %v3499 = vunpack.c.h.b16 %v2727
          %v3500 = vunpack.c.l.b16 %v2728
          %v3501 = vunpack.c.h.b16 %v2728
          %v3502 = vunpack.c.l.b16 %v2729
          %v3503 = vunpack.c.h.b16 %v2729
          %v3504 = vunpack.c.l.b16 %v2730
          %v3505 = vunpack.c.h.b16 %v2730
          %v3506 = vunpack.c.l.b16 %v2731
          %v3507 = vunpack.c.h.b16 %v2731
          %v3508 = vunpack.c.l.b16 %v2732
          %v3509 = vunpack.c.h.b16 %v2732
          %v3510 = vunpack.c.l.b16 %v2733
          %v3511 = vunpack.c.h.b16 %v2733
          %v3512 = vpack.c.b16 %v3004, %v3000
          %v3513 = vpack.c.b16 %v3005, %v3001
          %v3514 = vpack.c.b16 %v3006, %v3002
          %v3515 = vpack.c.b16 %v3007, %v3003
          %v3516 = vpack.c.b16 %v3012, %v3008
          %v3517 = vpack.c.b16 %v3013, %v3009
          %v3518 = vpack.c.b16 %v3014, %v3010
          %v3519 = vpack.c.b16 %v3015, %v3011
          %v3520 = vpack.c.b16 %v3020, %v3016
          %v3521 = vpack.c.b16 %v3021, %v3017
          %v3522 = vpack.c.b16 %v3022, %v3018
          %v3523 = vpack.c.b16 %v3023, %v3019
          %v3524 = vpack.c.b16 %v3028, %v3024
          %v3525 = vpack.c.b16 %v3029, %v3025
          %v3526 = vpack.c.b16 %v3030, %v3026
          %v3527 = vpack.c.b16 %v3031, %v3027
          %v3528 = vpack.c.b16 %v3036, %v3032
          %v3529 = vpack.c.b16 %v3037, %v3033
          %v3530 = vpack.c.b16 %v3038, %v3034
          %v3531 = vpack.c.b16 %v3039, %v3035
          %v3532 = vpack.c.b16 %v3044, %v3040
          %v3533 = vpack.c.b16 %v3045, %v3041
          %v3534 = vpack.c.b16 %v3046, %v3042
          %v3535 = vpack.c.b16 %v3047, %v3043
          %v3536 = vpack.c.b16 %v3052, %v3048
          %v3537 = vpack.c.b16 %v3053, %v3049
          %v3538 = vpack.c.b16 %v3054, %v3050
          %v3539 = vpack.c.b16 %v3055, %v3051
          %v3540 = vpack.c.b16 %v3060, %v3056
          %v3541 = vpack.c.b16 %v3061, %v3057
          %v3542 = vpack.c.b16 %v3062, %v3058
          %v3543 = vpack.c.b16 %v3063, %v3059
          %v3544 = vpack.c.b16 %v3068, %v3064
          %v3545 = vpack.c.b16 %v3069, %v3065
          %v3546 = vpack.c.b16 %v3070, %v3066
          %v3547 = vpack.c.b16 %v3071, %v3067
          %v3548 = vpack.c.b16 %v3076, %v3072
          %v3549 = vpack.c.b16 %v3077, %v3073
          %v3550 = vpack.c.b16 %v3078, %v3074
          %v3551 = vpack.c.b16 %v3079, %v3075
          %v3552 = vpack.c.b16 %v3084, %v3080
          %v3553 = vpack.c.b16 %v3085, %v3081
          %v3554 = vpack.c.b16 %v3086, %v3082
          %v3555 = vpack.c.b16 %v3087, %v3083
          %v3556 = vpack.c.b16 %v3092, %v3088
          %v3557 = vpack.c.b16 %v3093, %v3089
          %v3558 = vpack.c.b16 %v3094, %v3090
          %v3559 = vpack.c.b16 %v3095, %v3091
          %v3560 = vpack.c.b16 %v3100, %v3096
          %v3561 = vpack.c.b16 %v3101, %v3097
          %v3562 = vpack.c.b16 %v3102, %v3098
          %v3563 = vpack.c.b16 %v3103, %v3099
          %v3564 = vpack.c.b16 %v3108, %v3104
          %v3565 = vpack.c.b16 %v3109, %v3105
          %v3566 = vpack.c.b16 %v3110, %v3106
          %v3567 = vpack.c.b16 %v3111, %v3107
          %v3568 = vpack.c.b16 %v3116, %v3112
          %v3569 = vpack.c.b16 %v3117, %v3113
          %v3570 = vpack.c.b16 %v3118, %v3114
          %v3571 = vpack.c.b16 %v3119, %v3115
          %v3572 = vpack.c.b16 %v3124, %v3120
          %v3573 = vpack.c.b16 %v3125, %v3121
          %v3574 = vpack.c.b16 %v3126, %v3122
          %v3575 = vpack.c.b16 %v3127, %v3123
          %v3576 = vpack.c.b16 %v3132, %v3128
          %v3577 = vpack.c.b16 %v3133, %v3129
          %v3578 = vpack.c.b16 %v3134, %v3130
          %v3579 = vpack.c.b16 %v3135, %v3131
          %v3580 = vpack.c.b16 %v3140, %v3136
          %v3581 = vpack.c.b16 %v3141, %v3137
          %v3582 = vpack.c.b16 %v3142, %v3138
          %v3583 = vpack.c.b16 %v3143, %v3139
          %v3584 = vpack.c.b16 %v3148, %v3144
          %v3585 = vpack.c.b16 %v3149, %v3145
          %v3586 = vpack.c.b16 %v3150, %v3146
          %v3587 = vpack.c.b16 %v3151, %v3147
          %v3588 = vpack.c.b16 %v3156, %v3152
          %v3589 = vpack.c.b16 %v3157, %v3153
          %v3590 = vpack.c.b16 %v3158, %v3154
          %v3591 = vpack.c.b16 %v3159, %v3155
          %v3592 = vpack.c.b16 %v3164, %v3160
          %v3593 = vpack.c.b16 %v3165, %v3161
          %v3594 = vpack.c.b16 %v3166, %v3162
          %v3595 = vpack.c.b16 %v3167, %v3163
          %v3596 = vpack.c.b16 %v3172, %v3168
          %v3597 = vpack.c.b16 %v3173, %v3169
          %v3598 = vpack.c.b16 %v3174, %v3170
          %v3599 = vpack.c.b16 %v3175, %v3171
          %v3600 = vpack.c.b16 %v3180, %v3176
          %v3601 = vpack.c.b16 %v3181, %v3177
          %v3602 = vpack.c.b16 %v3182, %v3178
          %v3603 = vpack.c.b16 %v3183, %v3179
          %v3604 = vpack.c.b16 %v3188, %v3184
          %v3605 = vpack.c.b16 %v3189, %v3185
          %v3606 = vpack.c.b16 %v3190, %v3186
          %v3607 = vpack.c.b16 %v3191, %v3187
          %v3608 = vpack.c.b16 %v3196, %v3192
          %v3609 = vpack.c.b16 %v3197, %v3193
          %v3610 = vpack.c.b16 %v3198, %v3194
          %v3611 = vpack.c.b16 %v3199, %v3195
          %v3612 = vpack.c.b16 %v3204, %v3200
          %v3613 = vpack.c.b16 %v3205, %v3201
          %v3614 = vpack.c.b16 %v3206, %v3202
          %v3615 = vpack.c.b16 %v3207, %v3203
          %v3616 = vpack.c.b16 %v3212, %v3208
          %v3617 = vpack.c.b16 %v3213, %v3209
          %v3618 = vpack.c.b16 %v3214, %v3210
          %v3619 = vpack.c.b16 %v3215, %v3211
          %v3620 = vpack.c.b16 %v3220, %v3216
          %v3621 = vpack.c.b16 %v3221, %v3217
          %v3622 = vpack.c.b16 %v3222, %v3218
          %v3623 = vpack.c.b16 %v3223, %v3219
          %v3624 = vpack.c.b16 %v3228, %v3224
          %v3625 = vpack.c.b16 %v3229, %v3225
          %v3626 = vpack.c.b16 %v3230, %v3226
          %v3627 = vpack.c.b16 %v3231, %v3227
          %v3628 = vpack.c.b16 %v3236, %v3232
          %v3629 = vpack.c.b16 %v3237, %v3233
          %v3630 = vpack.c.b16 %v3238, %v3234
          %v3631 = vpack.c.b16 %v3239, %v3235
          %v3632 = vpack.c.b16 %v3244, %v3240
          %v3633 = vpack.c.b16 %v3245, %v3241
          %v3634 = vpack.c.b16 %v3246, %v3242
          %v3635 = vpack.c.b16 %v3247, %v3243
          %v3636 = vpack.c.b16 %v3252, %v3248
          %v3637 = vpack.c.b16 %v3253, %v3249
          %v3638 = vpack.c.b16 %v3254, %v3250
          %v3639 = vpack.c.b16 %v3255, %v3251
          %v3640 = vpack.c.b16 %v3260, %v3256
          %v3641 = vpack.c.b16 %v3261, %v3257
          %v3642 = vpack.c.b16 %v3262, %v3258
          %v3643 = vpack.c.b16 %v3263, %v3259
          %v3644 = vpack.c.b16 %v3268, %v3264
          %v3645 = vpack.c.b16 %v3269, %v3265
          %v3646 = vpack.c.b16 %v3270, %v3266
          %v3647 = vpack.c.b16 %v3271, %v3267
          %v3648 = vpack.c.b16 %v3276, %v3272
          %v3649 = vpack.c.b16 %v3277, %v3273
          %v3650 = vpack.c.b16 %v3278, %v3274
          %v3651 = vpack.c.b16 %v3279, %v3275
          %v3652 = vpack.c.b16 %v3284, %v3280
          %v3653 = vpack.c.b16 %v3285, %v3281
          %v3654 = vpack.c.b16 %v3286, %v3282
          %v3655 = vpack.c.b16 %v3287, %v3283
          %v3656 = vpack.c.b16 %v3292, %v3288
          %v3657 = vpack.c.b16 %v3293, %v3289
          %v3658 = vpack.c.b16 %v3294, %v3290
          %v3659 = vpack.c.b16 %v3295, %v3291
          %v3660 = vpack.c.b16 %v3300, %v3296
          %v3661 = vpack.c.b16 %v3301, %v3297
          %v3662 = vpack.c.b16 %v3302, %v3298
          %v3663 = vpack.c.b16 %v3303, %v3299
          %v3664 = vpack.c.b16 %v3308, %v3304
          %v3665 = vpack.c.b16 %v3309, %v3305
          %v3666 = vpack.c.b16 %v3310, %v3306
          %v3667 = vpack.c.b16 %v3311, %v3307
          %v3668 = vpack.c.b16 %v3316, %v3312
          %v3669 = vpack.c.b16 %v3317, %v3313
          %v3670 = vpack.c.b16 %v3318, %v3314
          %v3671 = vpack.c.b16 %v3319, %v3315
          %v3672 = vpack.c.b16 %v3324, %v3320
          %v3673 = vpack.c.b16 %v3325, %v3321
          %v3674 = vpack.c.b16 %v3326, %v3322
          %v3675 = vpack.c.b16 %v3327, %v3323
          %v3676 = vpack.c.b16 %v3332, %v3328
          %v3677 = vpack.c.b16 %v3333, %v3329
          %v3678 = vpack.c.b16 %v3334, %v3330
          %v3679 = vpack.c.b16 %v3335, %v3331
          %v3680 = vpack.c.b16 %v3340, %v3336
          %v3681 = vpack.c.b16 %v3341, %v3337
          %v3682 = vpack.c.b16 %v3342, %v3338
          %v3683 = vpack.c.b16 %v3343, %v3339
          %v3684 = vpack.c.b16 %v3348, %v3344
          %v3685 = vpack.c.b16 %v3349, %v3345
          %v3686 = vpack.c.b16 %v3350, %v3346
          %v3687 = vpack.c.b16 %v3351, %v3347
          %v3688 = vpack.c.b16 %v3356, %v3352
          %v3689 = vpack.c.b16 %v3357, %v3353
          %v3690 = vpack.c.b16 %v3358, %v3354
          %v3691 = vpack.c.b16 %v3359, %v3355
          %v3692 = vpack.c.b16 %v3364, %v3360
          %v3693 = vpack.c.b16 %v3365, %v3361
          %v3694 = vpack.c.b16 %v3366, %v3362
          %v3695 = vpack.c.b16 %v3367, %v3363
          %v3696 = vpack.c.b16 %v3372, %v3368
          %v3697 = vpack.c.b16 %v3373, %v3369
          %v3698 = vpack.c.b16 %v3374, %v3370
          %v3699 = vpack.c.b16 %v3375, %v3371
          %v3700 = vpack.c.b16 %v3380, %v3376
          %v3701 = vpack.c.b16 %v3381, %v3377
          %v3702 = vpack.c.b16 %v3382, %v3378
          %v3703 = vpack.c.b16 %v3383, %v3379
          %v3704 = vpack.c.b16 %v3388, %v3384
          %v3705 = vpack.c.b16 %v3389, %v3385
          %v3706 = vpack.c.b16 %v3390, %v3386
          %v3707 = vpack.c.b16 %v3391, %v3387
          %v3708 = vpack.c.b16 %v3396, %v3392
          %v3709 = vpack.c.b16 %v3397, %v3393
          %v3710 = vpack.c.b16 %v3398, %v3394
          %v3711 = vpack.c.b16 %v3399, %v3395
          %v3712 = vpack.c.b16 %v3404, %v3400
          %v3713 = vpack.c.b16 %v3405, %v3401
          %v3714 = vpack.c.b16 %v3406, %v3402
          %v3715 = vpack.c.b16 %v3407, %v3403
          %v3716 = vpack.c.b16 %v3412, %v3408
          %v3717 = vpack.c.b16 %v3413, %v3409
          %v3718 = vpack.c.b16 %v3414, %v3410
          %v3719 = vpack.c.b16 %v3415, %v3411
          %v3720 = vpack.c.b16 %v3420, %v3416
          %v3721 = vpack.c.b16 %v3421, %v3417
          %v3722 = vpack.c.b16 %v3422, %v3418
          %v3723 = vpack.c.b16 %v3423, %v3419
          %v3724 = vpack.c.b16 %v3428, %v3424
          %v3725 = vpack.c.b16 %v3429, %v3425
          %v3726 = vpack.c.b16 %v3430, %v3426
          %v3727 = vpack.c.b16 %v3431, %v3427
          %v3728 = vpack.c.b16 %v3436, %v3432
          %v3729 = vpack.c.b16 %v3437, %v3433
          %v3730 = vpack.c.b16 %v3438, %v3434
          %v3731 = vpack.c.b16 %v3439, %v3435
          %v3732 = vpack.c.b16 %v3444, %v3440
          %v3733 = vpack.c.b16 %v3445, %v3441
          %v3734 = vpack.c.b16 %v3446, %v3442
          %v3735 = vpack.c.b16 %v3447, %v3443
          %v3736 = vpack.c.b16 %v3452, %v3448
          %v3737 = vpack.c.b16 %v3453, %v3449
          %v3738 = vpack.c.b16 %v3454, %v3450
          %v3739 = vpack.c.b16 %v3455, %v3451
          %v3740 = vpack.c.b16 %v3460, %v3456
          %v3741 = vpack.c.b16 %v3461, %v3457
          %v3742 = vpack.c.b16 %v3462, %v3458
          %v3743 = vpack.c.b16 %v3463, %v3459
          %v3744 = vpack.c.b16 %v3468, %v3464
          %v3745 = vpack.c.b16 %v3469, %v3465
          %v3746 = vpack.c.b16 %v3470, %v3466
          %v3747 = vpack.c.b16 %v3471, %v3467
          %v3748 = vpack.c.b16 %v3476, %v3472
          %v3749 = vpack.c.b16 %v3477, %v3473
          %v3750 = vpack.c.b16 %v3478, %v3474
          %v3751 = vpack.c.b16 %v3479, %v3475
          %v3752 = vpack.c.b16 %v3484, %v3480
          %v3753 = vpack.c.b16 %v3485, %v3481
          %v3754 = vpack.c.b16 %v3486, %v3482
          %v3755 = vpack.c.b16 %v3487, %v3483
          %v3756 = vpack.c.b16 %v3492, %v3488
          %v3757 = vpack.c.b16 %v3493, %v3489
          %v3758 = vpack.c.b16 %v3494, %v3490
          %v3759 = vpack.c.b16 %v3495, %v3491
          %v3760 = vpack.c.b16 %v3500, %v3496
          %v3761 = vpack.c.b16 %v3501, %v3497
          %v3762 = vpack.c.b16 %v3502, %v3498
          %v3763 = vpack.c.b16 %v3503, %v3499
          %v3764 = vpack.c.b16 %v3508, %v3504
          %v3765 = vpack.c.b16 %v3509, %v3505
          %v3766 = vpack.c.b16 %v3510, %v3506
          %v3767 = vpack.c.b16 %v3511, %v3507
          %4024 = vmatpush.bf16.msra.mxu0 %v3540
          %4025 = vmatpush.bf16.msra.mxu0 %v3536
          %4026 = vmatpush.bf16.msra.mxu0 %v3532
          %4027 = vmatpush.bf16.msra.mxu0 %v3528
          %4028 = vmatpush.bf16.msra.mxu0 %v3524
          %4029 = vmatpush.bf16.msra.mxu0 %v3520
          %4030 = vmatpush.bf16.msra.mxu0 %v3516
          %4031 = vmatpush.bf16.msra.mxu0 %v3512
          %4032 = vmatmul.bf16.gmra.mxu0 %v2470
          %v4033 = vpop.f32.mrf.mxu0
          %v4034 = vadd.f32 %v2736, %v4033
          %v4035 = vpop.f32.mrf.mxu0
          %4036 = vdwg.mxu0
          %4037 = vmatpush.bf16.msra.mxu0 %v3572
          %4038 = vmatpush.bf16.msra.mxu0 %v3568
          %4039 = vmatpush.bf16.msra.mxu0 %v3564
          %4040 = vmatpush.bf16.msra.mxu0 %v3560
          %4041 = vmatpush.bf16.msra.mxu0 %v3556
          %4042 = vmatpush.bf16.msra.mxu0 %v3552
          %4043 = vmatpush.bf16.msra.mxu0 %v3548
          %4044 = vmatpush.bf16.msra.mxu0 %v3544
          %4045 = vmatmul.bf16.gmra.mxu0 %v2471
          %v4046 = vpop.f32.mrf.mxu0
          %v4047 = vadd.f32 %v4034, %v4046
          %v4048 = vpop.f32.mrf.mxu0
          %4049 = vdwg.mxu0
          %4050 = vmatpush.bf16.msra.mxu0 %v3604
          %4051 = vmatpush.bf16.msra.mxu0 %v3600
          %4052 = vmatpush.bf16.msra.mxu0 %v3596
          %4053 = vmatpush.bf16.msra.mxu0 %v3592
          %4054 = vmatpush.bf16.msra.mxu0 %v3588
          %4055 = vmatpush.bf16.msra.mxu0 %v3584
          %4056 = vmatpush.bf16.msra.mxu0 %v3580
          %4057 = vmatpush.bf16.msra.mxu0 %v3576
          %4058 = vmatmul.bf16.gmra.mxu0 %v2472
          %v4059 = vpop.f32.mrf.mxu0
          %v4060 = vadd.f32 %v4047, %v4059
          %v4061 = vpop.f32.mrf.mxu0
          %4062 = vdwg.mxu0
          %4063 = vmatpush.bf16.msra.mxu0 %v3636
          %4064 = vmatpush.bf16.msra.mxu0 %v3632
          %4065 = vmatpush.bf16.msra.mxu0 %v3628
          %4066 = vmatpush.bf16.msra.mxu0 %v3624
          %4067 = vmatpush.bf16.msra.mxu0 %v3620
          %4068 = vmatpush.bf16.msra.mxu0 %v3616
          %4069 = vmatpush.bf16.msra.mxu0 %v3612
          %4070 = vmatpush.bf16.msra.mxu0 %v3608
          %4071 = vmatmul.bf16.gmra.mxu0 %v2473
          %v4072 = vpop.f32.mrf.mxu0
          %v4073 = vadd.f32 %v4060, %v4072
          %v4074 = vpop.f32.mrf.mxu0
          %4075 = vdwg.mxu0
          %4076 = vmatpush.bf16.msra.mxu0 %v3668
          %4077 = vmatpush.bf16.msra.mxu0 %v3664
          %4078 = vmatpush.bf16.msra.mxu0 %v3660
          %4079 = vmatpush.bf16.msra.mxu0 %v3656
          %4080 = vmatpush.bf16.msra.mxu0 %v3652
          %4081 = vmatpush.bf16.msra.mxu0 %v3648
          %4082 = vmatpush.bf16.msra.mxu0 %v3644
          %4083 = vmatpush.bf16.msra.mxu0 %v3640
          %4084 = vmatmul.bf16.gmra.mxu0 %v2474
          %v4085 = vpop.f32.mrf.mxu0
          %v4086 = vadd.f32 %v4073, %v4085
          %v4087 = vpop.f32.mrf.mxu0
          %4088 = vdwg.mxu0
          %4089 = vmatpush.bf16.msra.mxu0 %v3700
          %4090 = vmatpush.bf16.msra.mxu0 %v3696
          %4091 = vmatpush.bf16.msra.mxu0 %v3692
          %4092 = vmatpush.bf16.msra.mxu0 %v3688
          %4093 = vmatpush.bf16.msra.mxu0 %v3684
          %4094 = vmatpush.bf16.msra.mxu0 %v3680
          %4095 = vmatpush.bf16.msra.mxu0 %v3676
          %4096 = vmatpush.bf16.msra.mxu0 %v3672
          %4097 = vmatmul.bf16.gmra.mxu0 %v2475
          %v4098 = vpop.f32.mrf.mxu0
          %v4099 = vadd.f32 %v4086, %v4098
          %v4100 = vpop.f32.mrf.mxu0
          %4101 = vdwg.mxu0
          %4102 = vmatpush.bf16.msra.mxu0 %v3732
          %4103 = vmatpush.bf16.msra.mxu0 %v3728
          %4104 = vmatpush.bf16.msra.mxu0 %v3724
          %4105 = vmatpush.bf16.msra.mxu0 %v3720
          %4106 = vmatpush.bf16.msra.mxu0 %v3716
          %4107 = vmatpush.bf16.msra.mxu0 %v3712
          %4108 = vmatpush.bf16.msra.mxu0 %v3708
          %4109 = vmatpush.bf16.msra.mxu0 %v3704
          %4110 = vmatmul.bf16.gmra.mxu0 %v2476
          %v4111 = vpop.f32.mrf.mxu0
          %v4112 = vadd.f32 %v4099, %v4111
          %v4113 = vpop.f32.mrf.mxu0
          %4114 = vdwg.mxu0
          %4115 = vmatpush.bf16.msra.mxu0 %v3764
          %4116 = vmatpush.bf16.msra.mxu0 %v3760
          %4117 = vmatpush.bf16.msra.mxu0 %v3756
          %4118 = vmatpush.bf16.msra.mxu0 %v3752
          %4119 = vmatpush.bf16.msra.mxu0 %v3748
          %4120 = vmatpush.bf16.msra.mxu0 %v3744
          %4121 = vmatpush.bf16.msra.mxu0 %v3740
          %4122 = vmatpush.bf16.msra.mxu0 %v3736
          %4123 = vmatmul.bf16.gmra.mxu0 %v2477
          %v4124 = vpop.f32.mrf.mxu0
          %v4125 = vadd.f32 %v4112, %v4124
          %v4126 = vpop.f32.mrf.mxu0
          %4127 = vdwg.mxu0
          %4128 = vmatpush.bf16.msra.mxu0 %v3541
          %4129 = vmatpush.bf16.msra.mxu0 %v3537
          %4130 = vmatpush.bf16.msra.mxu0 %v3533
          %4131 = vmatpush.bf16.msra.mxu0 %v3529
          %4132 = vmatpush.bf16.msra.mxu0 %v3525
          %4133 = vmatpush.bf16.msra.mxu0 %v3521
          %4134 = vmatpush.bf16.msra.mxu0 %v3517
          %4135 = vmatpush.bf16.msra.mxu0 %v3513
          %4136 = vmatmul.bf16.gmra.mxu0 %v2470
          %v4137 = vpop.f32.mrf.mxu0
          %v4138 = vadd.f32 %v2737, %v4137
          %v4139 = vpop.f32.mrf.mxu0
          %4140 = vdwg.mxu0
          %4141 = vmatpush.bf16.msra.mxu0 %v3573
          %4142 = vmatpush.bf16.msra.mxu0 %v3569
          %4143 = vmatpush.bf16.msra.mxu0 %v3565
          %4144 = vmatpush.bf16.msra.mxu0 %v3561
          %4145 = vmatpush.bf16.msra.mxu0 %v3557
          %4146 = vmatpush.bf16.msra.mxu0 %v3553
          %4147 = vmatpush.bf16.msra.mxu0 %v3549
          %4148 = vmatpush.bf16.msra.mxu0 %v3545
          %4149 = vmatmul.bf16.gmra.mxu0 %v2471
          %v4150 = vpop.f32.mrf.mxu0
          %v4151 = vadd.f32 %v4138, %v4150
          %v4152 = vpop.f32.mrf.mxu0
          %4153 = vdwg.mxu0
          %4154 = vmatpush.bf16.msra.mxu0 %v3605
          %4155 = vmatpush.bf16.msra.mxu0 %v3601
          %4156 = vmatpush.bf16.msra.mxu0 %v3597
          %4157 = vmatpush.bf16.msra.mxu0 %v3593
          %4158 = vmatpush.bf16.msra.mxu0 %v3589
          %4159 = vmatpush.bf16.msra.mxu0 %v3585
          %4160 = vmatpush.bf16.msra.mxu0 %v3581
          %4161 = vmatpush.bf16.msra.mxu0 %v3577
          %4162 = vmatmul.bf16.gmra.mxu0 %v2472
          %v4163 = vpop.f32.mrf.mxu0
          %v4164 = vadd.f32 %v4151, %v4163
          %v4165 = vpop.f32.mrf.mxu0
          %4166 = vdwg.mxu0
          %4167 = vmatpush.bf16.msra.mxu0 %v3637
          %4168 = vmatpush.bf16.msra.mxu0 %v3633
          %4169 = vmatpush.bf16.msra.mxu0 %v3629
          %4170 = vmatpush.bf16.msra.mxu0 %v3625
          %4171 = vmatpush.bf16.msra.mxu0 %v3621
          %4172 = vmatpush.bf16.msra.mxu0 %v3617
          %4173 = vmatpush.bf16.msra.mxu0 %v3613
          %4174 = vmatpush.bf16.msra.mxu0 %v3609
          %4175 = vmatmul.bf16.gmra.mxu0 %v2473
          %v4176 = vpop.f32.mrf.mxu0
          %v4177 = vadd.f32 %v4164, %v4176
          %v4178 = vpop.f32.mrf.mxu0
          %4179 = vdwg.mxu0
          %4180 = vmatpush.bf16.msra.mxu0 %v3669
          %4181 = vmatpush.bf16.msra.mxu0 %v3665
          %4182 = vmatpush.bf16.msra.mxu0 %v3661
          %4183 = vmatpush.bf16.msra.mxu0 %v3657
          %4184 = vmatpush.bf16.msra.mxu0 %v3653
          %4185 = vmatpush.bf16.msra.mxu0 %v3649
          %4186 = vmatpush.bf16.msra.mxu0 %v3645
          %4187 = vmatpush.bf16.msra.mxu0 %v3641
          %4188 = vmatmul.bf16.gmra.mxu0 %v2474
          %v4189 = vpop.f32.mrf.mxu0
          %v4190 = vadd.f32 %v4177, %v4189
          %v4191 = vpop.f32.mrf.mxu0
          %4192 = vdwg.mxu0
          %4193 = vmatpush.bf16.msra.mxu0 %v3701
          %4194 = vmatpush.bf16.msra.mxu0 %v3697
          %4195 = vmatpush.bf16.msra.mxu0 %v3693
          %4196 = vmatpush.bf16.msra.mxu0 %v3689
          %4197 = vmatpush.bf16.msra.mxu0 %v3685
          %4198 = vmatpush.bf16.msra.mxu0 %v3681
          %4199 = vmatpush.bf16.msra.mxu0 %v3677
          %4200 = vmatpush.bf16.msra.mxu0 %v3673
          %4201 = vmatmul.bf16.gmra.mxu0 %v2475
          %v4202 = vpop.f32.mrf.mxu0
          %v4203 = vadd.f32 %v4190, %v4202
          %v4204 = vpop.f32.mrf.mxu0
          %4205 = vdwg.mxu0
          %4206 = vmatpush.bf16.msra.mxu0 %v3733
          %4207 = vmatpush.bf16.msra.mxu0 %v3729
          %4208 = vmatpush.bf16.msra.mxu0 %v3725
          %4209 = vmatpush.bf16.msra.mxu0 %v3721
          %4210 = vmatpush.bf16.msra.mxu0 %v3717
          %4211 = vmatpush.bf16.msra.mxu0 %v3713
          %4212 = vmatpush.bf16.msra.mxu0 %v3709
          %4213 = vmatpush.bf16.msra.mxu0 %v3705
          %4214 = vmatmul.bf16.gmra.mxu0 %v2476
          %v4215 = vpop.f32.mrf.mxu0
          %v4216 = vadd.f32 %v4203, %v4215
          %v4217 = vpop.f32.mrf.mxu0
          %4218 = vdwg.mxu0
          %4219 = vmatpush.bf16.msra.mxu0 %v3765
          %4220 = vmatpush.bf16.msra.mxu0 %v3761
          %4221 = vmatpush.bf16.msra.mxu0 %v3757
          %4222 = vmatpush.bf16.msra.mxu0 %v3753
          %4223 = vmatpush.bf16.msra.mxu0 %v3749
          %4224 = vmatpush.bf16.msra.mxu0 %v3745
          %4225 = vmatpush.bf16.msra.mxu0 %v3741
          %4226 = vmatpush.bf16.msra.mxu0 %v3737
          %4227 = vmatmul.bf16.gmra.mxu0 %v2477
          %v4228 = vpop.f32.mrf.mxu0
          %v4229 = vadd.f32 %v4216, %v4228
          %v4230 = vpop.f32.mrf.mxu0
          %4231 = vdwg.mxu0
          %4232 = vmatpush.bf16.msra.mxu0 %v3542
          %4233 = vmatpush.bf16.msra.mxu0 %v3538
          %4234 = vmatpush.bf16.msra.mxu0 %v3534
          %4235 = vmatpush.bf16.msra.mxu0 %v3530
          %4236 = vmatpush.bf16.msra.mxu0 %v3526
          %4237 = vmatpush.bf16.msra.mxu0 %v3522
          %4238 = vmatpush.bf16.msra.mxu0 %v3518
          %4239 = vmatpush.bf16.msra.mxu0 %v3514
          %4240 = vmatmul.bf16.gmra.mxu0 %v2470
          %v4241 = vpop.f32.mrf.mxu0
          %v4242 = vadd.f32 %v2738, %v4241
          %v4243 = vpop.f32.mrf.mxu0
          %4244 = vdwg.mxu0
          %4245 = vmatpush.bf16.msra.mxu0 %v3574
          %4246 = vmatpush.bf16.msra.mxu0 %v3570
          %4247 = vmatpush.bf16.msra.mxu0 %v3566
          %4248 = vmatpush.bf16.msra.mxu0 %v3562
          %4249 = vmatpush.bf16.msra.mxu0 %v3558
          %4250 = vmatpush.bf16.msra.mxu0 %v3554
          %4251 = vmatpush.bf16.msra.mxu0 %v3550
          %4252 = vmatpush.bf16.msra.mxu0 %v3546
          %4253 = vmatmul.bf16.gmra.mxu0 %v2471
          %v4254 = vpop.f32.mrf.mxu0
          %v4255 = vadd.f32 %v4242, %v4254
          %v4256 = vpop.f32.mrf.mxu0
          %4257 = vdwg.mxu0
          %4258 = vmatpush.bf16.msra.mxu0 %v3606
          %4259 = vmatpush.bf16.msra.mxu0 %v3602
          %4260 = vmatpush.bf16.msra.mxu0 %v3598
          %4261 = vmatpush.bf16.msra.mxu0 %v3594
          %4262 = vmatpush.bf16.msra.mxu0 %v3590
          %4263 = vmatpush.bf16.msra.mxu0 %v3586
          %4264 = vmatpush.bf16.msra.mxu0 %v3582
          %4265 = vmatpush.bf16.msra.mxu0 %v3578
          %4266 = vmatmul.bf16.gmra.mxu0 %v2472
          %v4267 = vpop.f32.mrf.mxu0
          %v4268 = vadd.f32 %v4255, %v4267
          %v4269 = vpop.f32.mrf.mxu0
          %4270 = vdwg.mxu0
          %4271 = vmatpush.bf16.msra.mxu0 %v3638
          %4272 = vmatpush.bf16.msra.mxu0 %v3634
          %4273 = vmatpush.bf16.msra.mxu0 %v3630
          %4274 = vmatpush.bf16.msra.mxu0 %v3626
          %4275 = vmatpush.bf16.msra.mxu0 %v3622
          %4276 = vmatpush.bf16.msra.mxu0 %v3618
          %4277 = vmatpush.bf16.msra.mxu0 %v3614
          %4278 = vmatpush.bf16.msra.mxu0 %v3610
          %4279 = vmatmul.bf16.gmra.mxu0 %v2473
          %v4280 = vpop.f32.mrf.mxu0
          %v4281 = vadd.f32 %v4268, %v4280
          %v4282 = vpop.f32.mrf.mxu0
          %4283 = vdwg.mxu0
          %4284 = vmatpush.bf16.msra.mxu0 %v3670
          %4285 = vmatpush.bf16.msra.mxu0 %v3666
          %4286 = vmatpush.bf16.msra.mxu0 %v3662
          %4287 = vmatpush.bf16.msra.mxu0 %v3658
          %4288 = vmatpush.bf16.msra.mxu0 %v3654
          %4289 = vmatpush.bf16.msra.mxu0 %v3650
          %4290 = vmatpush.bf16.msra.mxu0 %v3646
          %4291 = vmatpush.bf16.msra.mxu0 %v3642
          %4292 = vmatmul.bf16.gmra.mxu0 %v2474
          %v4293 = vpop.f32.mrf.mxu0
          %v4294 = vadd.f32 %v4281, %v4293
          %v4295 = vpop.f32.mrf.mxu0
          %4296 = vdwg.mxu0
          %4297 = vmatpush.bf16.msra.mxu0 %v3702
          %4298 = vmatpush.bf16.msra.mxu0 %v3698
          %4299 = vmatpush.bf16.msra.mxu0 %v3694
          %4300 = vmatpush.bf16.msra.mxu0 %v3690
          %4301 = vmatpush.bf16.msra.mxu0 %v3686
          %4302 = vmatpush.bf16.msra.mxu0 %v3682
          %4303 = vmatpush.bf16.msra.mxu0 %v3678
          %4304 = vmatpush.bf16.msra.mxu0 %v3674
          %4305 = vmatmul.bf16.gmra.mxu0 %v2475
          %v4306 = vpop.f32.mrf.mxu0
          %v4307 = vadd.f32 %v4294, %v4306
          %v4308 = vpop.f32.mrf.mxu0
          %4309 = vdwg.mxu0
          %4310 = vmatpush.bf16.msra.mxu0 %v3734
          %4311 = vmatpush.bf16.msra.mxu0 %v3730
          %4312 = vmatpush.bf16.msra.mxu0 %v3726
          %4313 = vmatpush.bf16.msra.mxu0 %v3722
          %4314 = vmatpush.bf16.msra.mxu0 %v3718
          %4315 = vmatpush.bf16.msra.mxu0 %v3714
          %4316 = vmatpush.bf16.msra.mxu0 %v3710
          %4317 = vmatpush.bf16.msra.mxu0 %v3706
          %4318 = vmatmul.bf16.gmra.mxu0 %v2476
          %v4319 = vpop.f32.mrf.mxu0
          %v4320 = vadd.f32 %v4307, %v4319
          %v4321 = vpop.f32.mrf.mxu0
          %4322 = vdwg.mxu0
          %4323 = vmatpush.bf16.msra.mxu0 %v3766
          %4324 = vmatpush.bf16.msra.mxu0 %v3762
          %4325 = vmatpush.bf16.msra.mxu0 %v3758
          %4326 = vmatpush.bf16.msra.mxu0 %v3754
          %4327 = vmatpush.bf16.msra.mxu0 %v3750
          %4328 = vmatpush.bf16.msra.mxu0 %v3746
          %4329 = vmatpush.bf16.msra.mxu0 %v3742
          %4330 = vmatpush.bf16.msra.mxu0 %v3738
          %4331 = vmatmul.bf16.gmra.mxu0 %v2477
          %v4332 = vpop.f32.mrf.mxu0
          %v4333 = vadd.f32 %v4320, %v4332
          %v4334 = vpop.f32.mrf.mxu0
          %4335 = vdwg.mxu0
          %4336 = vmatpush.bf16.msra.mxu0 %v3543
          %4337 = vmatpush.bf16.msra.mxu0 %v3539
          %4338 = vmatpush.bf16.msra.mxu0 %v3535
          %4339 = vmatpush.bf16.msra.mxu0 %v3531
          %4340 = vmatpush.bf16.msra.mxu0 %v3527
          %4341 = vmatpush.bf16.msra.mxu0 %v3523
          %4342 = vmatpush.bf16.msra.mxu0 %v3519
          %4343 = vmatpush.bf16.msra.mxu0 %v3515
          %4344 = vmatmul.bf16.gmra.mxu0 %v2470
          %v4345 = vpop.f32.mrf.mxu0
          %v4346 = vadd.f32 %v2739, %v4345
          %v4347 = vpop.f32.mrf.mxu0
          %4348 = vdwg.mxu0
          %4349 = vmatpush.bf16.msra.mxu0 %v3575
          %4350 = vmatpush.bf16.msra.mxu0 %v3571
          %4351 = vmatpush.bf16.msra.mxu0 %v3567
          %4352 = vmatpush.bf16.msra.mxu0 %v3563
          %4353 = vmatpush.bf16.msra.mxu0 %v3559
          %4354 = vmatpush.bf16.msra.mxu0 %v3555
          %4355 = vmatpush.bf16.msra.mxu0 %v3551
          %4356 = vmatpush.bf16.msra.mxu0 %v3547
          %4357 = vmatmul.bf16.gmra.mxu0 %v2471
          %v4358 = vpop.f32.mrf.mxu0
          %v4359 = vadd.f32 %v4346, %v4358
          %v4360 = vpop.f32.mrf.mxu0
          %4361 = vdwg.mxu0
          %4362 = vmatpush.bf16.msra.mxu0 %v3607
          %4363 = vmatpush.bf16.msra.mxu0 %v3603
          %4364 = vmatpush.bf16.msra.mxu0 %v3599
          %4365 = vmatpush.bf16.msra.mxu0 %v3595
          %4366 = vmatpush.bf16.msra.mxu0 %v3591
          %4367 = vmatpush.bf16.msra.mxu0 %v3587
          %4368 = vmatpush.bf16.msra.mxu0 %v3583
          %4369 = vmatpush.bf16.msra.mxu0 %v3579
          %4370 = vmatmul.bf16.gmra.mxu0 %v2472
          %v4371 = vpop.f32.mrf.mxu0
          %v4372 = vadd.f32 %v4359, %v4371
          %v4373 = vpop.f32.mrf.mxu0
          %4374 = vdwg.mxu0
          %4375 = vmatpush.bf16.msra.mxu0 %v3639
          %4376 = vmatpush.bf16.msra.mxu0 %v3635
          %4377 = vmatpush.bf16.msra.mxu0 %v3631
          %4378 = vmatpush.bf16.msra.mxu0 %v3627
          %4379 = vmatpush.bf16.msra.mxu0 %v3623
          %4380 = vmatpush.bf16.msra.mxu0 %v3619
          %4381 = vmatpush.bf16.msra.mxu0 %v3615
          %4382 = vmatpush.bf16.msra.mxu0 %v3611
          %4383 = vmatmul.bf16.gmra.mxu0 %v2473
          %v4384 = vpop.f32.mrf.mxu0
          %v4385 = vadd.f32 %v4372, %v4384
          %v4386 = vpop.f32.mrf.mxu0
          %4387 = vdwg.mxu0
          %4388 = vmatpush.bf16.msra.mxu0 %v3671
          %4389 = vmatpush.bf16.msra.mxu0 %v3667
          %4390 = vmatpush.bf16.msra.mxu0 %v3663
          %4391 = vmatpush.bf16.msra.mxu0 %v3659
          %4392 = vmatpush.bf16.msra.mxu0 %v3655
          %4393 = vmatpush.bf16.msra.mxu0 %v3651
          %4394 = vmatpush.bf16.msra.mxu0 %v3647
          %4395 = vmatpush.bf16.msra.mxu0 %v3643
          %4396 = vmatmul.bf16.gmra.mxu0 %v2474
          %v4397 = vpop.f32.mrf.mxu0
          %v4398 = vadd.f32 %v4385, %v4397
          %v4399 = vpop.f32.mrf.mxu0
          %4400 = vdwg.mxu0
          %4401 = vmatpush.bf16.msra.mxu0 %v3703
          %4402 = vmatpush.bf16.msra.mxu0 %v3699
          %4403 = vmatpush.bf16.msra.mxu0 %v3695
          %4404 = vmatpush.bf16.msra.mxu0 %v3691
          %4405 = vmatpush.bf16.msra.mxu0 %v3687
          %4406 = vmatpush.bf16.msra.mxu0 %v3683
          %4407 = vmatpush.bf16.msra.mxu0 %v3679
          %4408 = vmatpush.bf16.msra.mxu0 %v3675
          %4409 = vmatmul.bf16.gmra.mxu0 %v2475
          %v4410 = vpop.f32.mrf.mxu0
          %v4411 = vadd.f32 %v4398, %v4410
          %v4412 = vpop.f32.mrf.mxu0
          %4413 = vdwg.mxu0
          %4414 = vmatpush.bf16.msra.mxu0 %v3735
          %4415 = vmatpush.bf16.msra.mxu0 %v3731
          %4416 = vmatpush.bf16.msra.mxu0 %v3727
          %4417 = vmatpush.bf16.msra.mxu0 %v3723
          %4418 = vmatpush.bf16.msra.mxu0 %v3719
          %4419 = vmatpush.bf16.msra.mxu0 %v3715
          %4420 = vmatpush.bf16.msra.mxu0 %v3711
          %4421 = vmatpush.bf16.msra.mxu0 %v3707
          %4422 = vmatmul.bf16.gmra.mxu0 %v2476
          %v4423 = vpop.f32.mrf.mxu0
          %v4424 = vadd.f32 %v4411, %v4423
          %v4425 = vpop.f32.mrf.mxu0
          %4426 = vdwg.mxu0
          %4427 = vmatpush.bf16.msra.mxu0 %v3767
          %4428 = vmatpush.bf16.msra.mxu0 %v3763
          %4429 = vmatpush.bf16.msra.mxu0 %v3759
          %4430 = vmatpush.bf16.msra.mxu0 %v3755
          %4431 = vmatpush.bf16.msra.mxu0 %v3751
          %4432 = vmatpush.bf16.msra.mxu0 %v3747
          %4433 = vmatpush.bf16.msra.mxu0 %v3743
          %4434 = vmatpush.bf16.msra.mxu0 %v3739
          %4435 = vmatmul.bf16.gmra.mxu0 %v2477
          %v4436 = vpop.f32.mrf.mxu0
          %v4437 = vadd.f32 %v4424, %v4436
          %v4438 = vpop.f32.mrf.mxu0
          %4439 = vdwg.mxu0
          %v4440 = vmax.f32 %v4125, 0.0
          %v4441 = vmax.f32 %v4229, 0.0
          %v4442 = vmax.f32 %v4333, 0.0
          %v4443 = vmax.f32 %v4437, 0.0
          %v4444 = vpack.c.bf16 %v4440, %v4440
          %v4445 = vpack.c.bf16 %v4441, %v4441
          %v4446 = vpack.c.bf16 %v4442, %v4442
          %v4447 = vpack.c.bf16 %v4443, %v4443
          %v4448 = vld [vmem:[%s411] sm:$0xf]
          %v4449 = vld [vmem:[%s411 + $0x4] sm:$0xf]
          %v4450 = vld [vmem:[%s411 + $0x8] sm:$0xf]
          %v4451 = vld [vmem:[%s411 + $0xc] sm:$0xf]
          %v4452 = vld [vmem:[%s411 + $0x10] sm:$0xf]
          %v4453 = vld [vmem:[%s411 + $0x14] sm:$0xf]
          %v4454 = vld [vmem:[%s411 + $0x18] sm:$0xf]
          %v4455 = vld [vmem:[%s411 + $0x1c] sm:$0xf]
          %v4456 = vld [vmem:[%s411 + $0x20] sm:$0xf]
          %v4457 = vld [vmem:[%s411 + $0x24] sm:$0xf]
          %v4458 = vld [vmem:[%s411 + $0x28] sm:$0xf]
          %v4459 = vld [vmem:[%s411 + $0x2c] sm:$0xf]
          %v4460 = vld [vmem:[%s411 + $0x30] sm:$0xf]
          %v4461 = vld [vmem:[%s411 + $0x34] sm:$0xf]
          %v4462 = vld [vmem:[%s411 + $0x38] sm:$0xf]
          %v4463 = vld [vmem:[%s411 + $0x3c] sm:$0xf]
          %v4464 = vld [vmem:[%s411 + $0x40] sm:$0xf]
          %v4465 = vld [vmem:[%s411 + $0x44] sm:$0xf]
          %v4466 = vld [vmem:[%s411 + $0x48] sm:$0xf]
          %v4467 = vld [vmem:[%s411 + $0x4c] sm:$0xf]
          %v4468 = vld [vmem:[%s411 + $0x50] sm:$0xf]
          %v4469 = vld [vmem:[%s411 + $0x54] sm:$0xf]
          %v4470 = vld [vmem:[%s411 + $0x58] sm:$0xf]
          %v4471 = vld [vmem:[%s411 + $0x5c] sm:$0xf]
          %v4472 = vld [vmem:[%s411 + $0x60] sm:$0xf]
          %v4473 = vld [vmem:[%s411 + $0x64] sm:$0xf]
          %v4474 = vld [vmem:[%s411 + $0x68] sm:$0xf]
          %v4475 = vld [vmem:[%s411 + $0x6c] sm:$0xf]
          %v4476 = vld [vmem:[%s411 + $0x70] sm:$0xf]
          %v4477 = vld [vmem:[%s411 + $0x74] sm:$0xf]
          %v4478 = vld [vmem:[%s411 + $0x78] sm:$0xf]
          %v4479 = vld [vmem:[%s411 + $0x7c] sm:$0xf]
          %v4480 = vld [vmem:[%s411 + $0x80] sm:$0xf]
          %v4481 = vld [vmem:[%s411 + $0x84] sm:$0xf]
          %v4482 = vld [vmem:[%s411 + $0x88] sm:$0xf]
          %v4483 = vld [vmem:[%s411 + $0x8c] sm:$0xf]
          %v4484 = vld [vmem:[%s411 + $0x90] sm:$0xf]
          %v4485 = vld [vmem:[%s411 + $0x94] sm:$0xf]
          %v4486 = vld [vmem:[%s411 + $0x98] sm:$0xf]
          %v4487 = vld [vmem:[%s411 + $0x9c] sm:$0xf]
          %v4488 = vld [vmem:[%s411 + $0xa0] sm:$0xf]
          %v4489 = vld [vmem:[%s411 + $0xa4] sm:$0xf]
          %v4490 = vld [vmem:[%s411 + $0xa8] sm:$0xf]
          %v4491 = vld [vmem:[%s411 + $0xac] sm:$0xf]
          %v4492 = vld [vmem:[%s411 + $0xb0] sm:$0xf]
          %v4493 = vld [vmem:[%s411 + $0xb4] sm:$0xf]
          %v4494 = vld [vmem:[%s411 + $0xb8] sm:$0xf]
          %v4495 = vld [vmem:[%s411 + $0xbc] sm:$0xf]
          %v4496 = vld [vmem:[%s411 + $0xc0] sm:$0xf]
          %v4497 = vld [vmem:[%s411 + $0xc4] sm:$0xf]
          %v4498 = vld [vmem:[%s411 + $0xc8] sm:$0xf]
          %v4499 = vld [vmem:[%s411 + $0xcc] sm:$0xf]
          %v4500 = vld [vmem:[%s411 + $0xd0] sm:$0xf]
          %v4501 = vld [vmem:[%s411 + $0xd4] sm:$0xf]
          %v4502 = vld [vmem:[%s411 + $0xd8] sm:$0xf]
          %v4503 = vld [vmem:[%s411 + $0xdc] sm:$0xf]
          %v4504 = vld [vmem:[%s411 + $0xe0] sm:$0xf]
          %v4505 = vld [vmem:[%s411 + $0xe4] sm:$0xf]
          %v4506 = vld [vmem:[%s411 + $0xe8] sm:$0xf]
          %v4507 = vld [vmem:[%s411 + $0xec] sm:$0xf]
          %v4508 = vld [vmem:[%s411 + $0xf0] sm:$0xf]
          %v4509 = vld [vmem:[%s411 + $0xf4] sm:$0xf]
          %v4510 = vld [vmem:[%s411 + $0xf8] sm:$0xf]
          %v4511 = vld [vmem:[%s411 + $0xfc] sm:$0xf]
          %v4512 = vld [vmem:[%s414] sm:$0x1]
          %v4514 = vperm.slane %v4512, 0
          %v4580 = vunpack.c.l.b16 %v4448
          %v4581 = vunpack.c.l.b16 %v4449
          %v4582 = vunpack.c.l.b16 %v4450
          %v4583 = vunpack.c.l.b16 %v4451
          %v4584 = vunpack.c.l.b16 %v4452
          %v4585 = vunpack.c.l.b16 %v4453
          %v4586 = vunpack.c.l.b16 %v4454
          %v4587 = vunpack.c.l.b16 %v4455
          %v4588 = vunpack.c.l.b16 %v4456
          %v4589 = vunpack.c.l.b16 %v4457
          %v4590 = vunpack.c.l.b16 %v4458
          %v4591 = vunpack.c.l.b16 %v4459
          %v4592 = vunpack.c.l.b16 %v4460
          %v4593 = vunpack.c.l.b16 %v4461
          %v4594 = vunpack.c.l.b16 %v4462
          %v4595 = vunpack.c.l.b16 %v4463
          %v4596 = vunpack.c.l.b16 %v4464
          %v4597 = vunpack.c.l.b16 %v4465
          %v4598 = vunpack.c.l.b16 %v4466
          %v4599 = vunpack.c.l.b16 %v4467
          %v4600 = vunpack.c.l.b16 %v4468
          %v4601 = vunpack.c.l.b16 %v4469
          %v4602 = vunpack.c.l.b16 %v4470
          %v4603 = vunpack.c.l.b16 %v4471
          %v4604 = vunpack.c.l.b16 %v4472
          %v4605 = vunpack.c.l.b16 %v4473
          %v4606 = vunpack.c.l.b16 %v4474
          %v4607 = vunpack.c.l.b16 %v4475
          %v4608 = vunpack.c.l.b16 %v4476
          %v4609 = vunpack.c.l.b16 %v4477
          %v4610 = vunpack.c.l.b16 %v4478
          %v4611 = vunpack.c.l.b16 %v4479
          %v4612 = vunpack.c.l.b16 %v4480
          %v4613 = vunpack.c.l.b16 %v4481
          %v4614 = vunpack.c.l.b16 %v4482
          %v4615 = vunpack.c.l.b16 %v4483
          %v4616 = vunpack.c.l.b16 %v4484
          %v4617 = vunpack.c.l.b16 %v4485
          %v4618 = vunpack.c.l.b16 %v4486
          %v4619 = vunpack.c.l.b16 %v4487
          %v4620 = vunpack.c.l.b16 %v4488
          %v4621 = vunpack.c.l.b16 %v4489
          %v4622 = vunpack.c.l.b16 %v4490
          %v4623 = vunpack.c.l.b16 %v4491
          %v4624 = vunpack.c.l.b16 %v4492
          %v4625 = vunpack.c.l.b16 %v4493
          %v4626 = vunpack.c.l.b16 %v4494
          %v4627 = vunpack.c.l.b16 %v4495
          %v4628 = vunpack.c.l.b16 %v4496
          %v4629 = vunpack.c.l.b16 %v4497
          %v4630 = vunpack.c.l.b16 %v4498
          %v4631 = vunpack.c.l.b16 %v4499
          %v4632 = vunpack.c.l.b16 %v4500
          %v4633 = vunpack.c.l.b16 %v4501
          %v4634 = vunpack.c.l.b16 %v4502
          %v4635 = vunpack.c.l.b16 %v4503
          %v4636 = vunpack.c.l.b16 %v4504
          %v4637 = vunpack.c.l.b16 %v4505
          %v4638 = vunpack.c.l.b16 %v4506
          %v4639 = vunpack.c.l.b16 %v4507
          %v4640 = vunpack.c.l.b16 %v4508
          %v4641 = vunpack.c.l.b16 %v4509
          %v4642 = vunpack.c.l.b16 %v4510
          %v4643 = vunpack.c.l.b16 %v4511
          %v4644 = vpack.c.b16 %v4581, %v4580
          %v4645 = vpack.c.b16 %v4583, %v4582
          %v4646 = vpack.c.b16 %v4585, %v4584
          %v4647 = vpack.c.b16 %v4587, %v4586
          %v4648 = vpack.c.b16 %v4589, %v4588
          %v4649 = vpack.c.b16 %v4591, %v4590
          %v4650 = vpack.c.b16 %v4593, %v4592
          %v4651 = vpack.c.b16 %v4595, %v4594
          %v4652 = vpack.c.b16 %v4597, %v4596
          %v4653 = vpack.c.b16 %v4599, %v4598
          %v4654 = vpack.c.b16 %v4601, %v4600
          %v4655 = vpack.c.b16 %v4603, %v4602
          %v4656 = vpack.c.b16 %v4605, %v4604
          %v4657 = vpack.c.b16 %v4607, %v4606
          %v4658 = vpack.c.b16 %v4609, %v4608
          %v4659 = vpack.c.b16 %v4611, %v4610
          %v4660 = vpack.c.b16 %v4613, %v4612
          %v4661 = vpack.c.b16 %v4615, %v4614
          %v4662 = vpack.c.b16 %v4617, %v4616
          %v4663 = vpack.c.b16 %v4619, %v4618
          %v4664 = vpack.c.b16 %v4621, %v4620
          %v4665 = vpack.c.b16 %v4623, %v4622
          %v4666 = vpack.c.b16 %v4625, %v4624
          %v4667 = vpack.c.b16 %v4627, %v4626
          %v4668 = vpack.c.b16 %v4629, %v4628
          %v4669 = vpack.c.b16 %v4631, %v4630
          %v4670 = vpack.c.b16 %v4633, %v4632
          %v4671 = vpack.c.b16 %v4635, %v4634
          %v4672 = vpack.c.b16 %v4637, %v4636
          %v4673 = vpack.c.b16 %v4639, %v4638
          %v4674 = vpack.c.b16 %v4641, %v4640
          %v4675 = vpack.c.b16 %v4643, %v4642
          %4708 = vmatpush.bf16.msra.mxu0 %v4651
          %4709 = vmatpush.bf16.msra.mxu0 %v4650
          %4710 = vmatpush.bf16.msra.mxu0 %v4649
          %4711 = vmatpush.bf16.msra.mxu0 %v4648
          %4712 = vmatpush.bf16.msra.mxu0 %v4647
          %4713 = vmatpush.bf16.msra.mxu0 %v4646
          %4714 = vmatpush.bf16.msra.mxu0 %v4645
          %4715 = vmatpush.bf16.msra.mxu0 %v4644
          %4716 = vmatmul.bf16.gmra.mxu0 %v4444
          %v4717 = vpop.f32.mrf.mxu0
          %v4718 = vadd.f32 %v4514, %v4717
          %v4719 = vpop.f32.mrf.mxu0
          %4720 = vdwg.mxu0
          %4721 = vmatpush.bf16.msra.mxu0 %v4659
          %4722 = vmatpush.bf16.msra.mxu0 %v4658
          %4723 = vmatpush.bf16.msra.mxu0 %v4657
          %4724 = vmatpush.bf16.msra.mxu0 %v4656
          %4725 = vmatpush.bf16.msra.mxu0 %v4655
          %4726 = vmatpush.bf16.msra.mxu0 %v4654
          %4727 = vmatpush.bf16.msra.mxu0 %v4653
          %4728 = vmatpush.bf16.msra.mxu0 %v4652
          %4729 = vmatmul.bf16.gmra.mxu0 %v4445
          %v4730 = vpop.f32.mrf.mxu0
          %v4731 = vadd.f32 %v4718, %v4730
          %v4732 = vpop.f32.mrf.mxu0
          %4733 = vdwg.mxu0
          %4734 = vmatpush.bf16.msra.mxu0 %v4667
          %4735 = vmatpush.bf16.msra.mxu0 %v4666
          %4736 = vmatpush.bf16.msra.mxu0 %v4665
          %4737 = vmatpush.bf16.msra.mxu0 %v4664
          %4738 = vmatpush.bf16.msra.mxu0 %v4663
          %4739 = vmatpush.bf16.msra.mxu0 %v4662
          %4740 = vmatpush.bf16.msra.mxu0 %v4661
          %4741 = vmatpush.bf16.msra.mxu0 %v4660
          %4742 = vmatmul.bf16.gmra.mxu0 %v4446
          %v4743 = vpop.f32.mrf.mxu0
          %v4744 = vadd.f32 %v4731, %v4743
          %v4745 = vpop.f32.mrf.mxu0
          %4746 = vdwg.mxu0
          %4747 = vmatpush.bf16.msra.mxu0 %v4675
          %4748 = vmatpush.bf16.msra.mxu0 %v4674
          %4749 = vmatpush.bf16.msra.mxu0 %v4673
          %4750 = vmatpush.bf16.msra.mxu0 %v4672
          %4751 = vmatpush.bf16.msra.mxu0 %v4671
          %4752 = vmatpush.bf16.msra.mxu0 %v4670
          %4753 = vmatpush.bf16.msra.mxu0 %v4669
          %4754 = vmatpush.bf16.msra.mxu0 %v4668
          %4755 = vmatmul.bf16.gmra.mxu0 %v4447
          %v4756 = vpop.f32.mrf.mxu0
          %v4757 = vadd.f32 %v4744, %v4756
          %v4758 = vpop.f32.mrf.mxu0
          %4759 = vdwg.mxu0
          %4760 = vst [vmem:[%s377] sm:$0x3] %v4757
        $region56: #{inception_v3_multitask_forward.3} parent=47 // pred_fallthru
          _
        %s4761 = sand.u32 %s225, 1
        %s4762 = scalar_lea.sflag [#allocation4], %s4761
        %s4763 = sand.u32 %s225, 1
        %s4764 = smul.addr %s4763, 2
        %s4765 = scalar_lea.vmem [#allocation3], %s4764
        // Predicated region
        $region57: #{inception_v3_multitask_forward.3} parent=47 // pred_check
          %p4766 = pneg %p235
        $region58: #{inception_v3_multitask_forward.3} parent=47 // pred_check_branch
          %4768 = sbr.rel (%p4766) target = $region60
        $region59: #{inception_v3_multitask_forward.3} parent=47 // pred_region
          %4770 = vsyncadd %s4762, 0
          %s4771 = smul.addr %s25, 2
          %s4772 = scalar_lea.hbm %s7, %s4771
          %s4774 = sshll.u32 %s4765, 4
          %s4775 = int_to_ptr.vmem [resolvable:$true] %s4774
          %s4776 = sshll.u32 %s4772, 4
          %s4777 = int_to_ptr.hbm [resolvable:$true] %s4776
          %4779 = dma.vmem_to_hbm [thread:$0]  %s4775, 32, %s4777, %s4762
        $region60: #{inception_v3_multitask_forward.3} parent=47 // pred_fallthru
          _
      $region48: #{inception_v3_multitask_forward.3} parent=5 // pred_fallthru
        _
      %p4780 = scmp.le.s32.totalorder 2, %s16
      // Predicated region
      $region61: #{inception_v3_multitask_forward.3} parent=5 // pred_check
        %p4781 = pneg %p4780
      $region62: #{inception_v3_multitask_forward.3} parent=5 // pred_check_branch
        %4783 = sbr.rel (%p4781) target = $region64
      $region63: #{inception_v3_multitask_forward.3} parent=5 // pred_region
        %s4784 = ssub.s32 %s16, 2
        // Predicated region
        $region65: #{inception_v3_multitask_forward.3} parent=63 // pred_check
          %p4785 = pneg %p241
        $region66: #{inception_v3_multitask_forward.3} parent=63 // pred_check_branch
          %4787 = sbr.rel (%p4785) target = $region68
        $region67: #{inception_v3_multitask_forward.3} parent=63 // pred_region
          %s4788 = sand.u32 %s226, 1
          %s4789 = scalar_lea.sflag [#allocation4], %s4788
          %s4790 = sand.u32 %s226, 1
          %s4791 = smul.addr %s4790, 2
          %s4792 = scalar_lea.vmem [#allocation3], %s4791
          %4794 = dma.done %s4789, 32
        $region68: #{inception_v3_multitask_forward.3} parent=63 // pred_fallthru
          _
      $region64: #{inception_v3_multitask_forward.3} parent=5 // pred_fallthru
        _
    $region6: #{inception_v3_multitask_forward.3} parent=1 // loop_footer
      %s20 = sadd.s32 1, %s16
    $region7: #{inception_v3_multitask_forward.3} parent=1 // loop_footer_branch
      %15 = sbr.rel target = $region3
    $region8: #{inception_v3_multitask_forward.3} parent=1 // loop_exit
      _
    %4795 = vsyncpa [#allocation4], 1
    %s4796 = scalar_lea.sflag [#allocation4], 1
    %4797 = vsyncpa %s4796, 1

</llo_original>
